<compile_context>
chip_gen: v7x
topology: tpu7x:2x2x1
jax: 0.10.0
libtpu: 0.0.40
codegen_flags: <defaults>
</compile_context>

<pallas_src>
import math

import jax
import jax.numpy as jnp
from jax.experimental import pallas as pl
from jax.experimental.pallas import tpu as pltpu

ACT_IDENTITY, ACT_RELU, ACT_TANH = 0, 1, 2

# single-buffer grid-invariant weight blocks (pl.Buffered(1)); flipped off if
# the installed jax / Mosaic build rejects pipeline_mode.
_WEIGHT_SINGLE_BUFFER = [True]


def _apply_act(code, z):
    # Trace-time activation specialization (code is a static Python int).
    if code == ACT_RELU:
        return jnp.maximum(z, 0.0)
    if code == ACT_TANH:
        return jnp.tanh(z)
    return z


def _split_primitives(primitives):
    """Classify primitives into skip / identity-linear / nonlinear-linear groups."""
    skip_idx, idlin_idxs, nl = None, [], []
    for o, p in enumerate(primitives):
        if p == "skip_connect":
            skip_idx = o
        elif p == "linear":
            idlin_idxs.append(o)
        elif p == "relu_linear":
            nl.append((o, ACT_RELU))
        elif p == "tanh_linear":
            nl.append((o, ACT_TANH))
        else:
            raise ValueError(f"unsupported primitive: {p}")
    return skip_idx, tuple(idlin_idxs), tuple(nl)


def _round_up(x, m):
    return ((x + m - 1) // m) * m


def _weight_spec(shape):
    """Grid-invariant weight/bias block: constant index_map, single-buffered."""
    index_map = lambda b: (0,) * len(shape)
    if _WEIGHT_SINGLE_BUFFER[0]:
        try:
            return pl.BlockSpec(shape, index_map, pipeline_mode=pl.Buffered(1))
        except Exception:  # older builds without pipeline_mode / Buffered
            _WEIGHT_SINGLE_BUFFER[0] = False
    return pl.BlockSpec(shape, index_map)


def _vmem_limit_bytes(n_arg_bytes):
    # Explicit scoped-VMEM limit: generous headroom, never above the 64 MiB
    # physical VMEM of v7x (v5e/v6e have 128 MiB so this is always safe).
    return int(min(max(3 * n_arg_bytes, 32 << 20), 64 << 20))


def _init_linear_padded(key, din, dout, din_pad=None, dout_pad=None):
    """Linear init (uniform +-1/sqrt(din)) zero-padded to lane-dense shapes.

    Padded rows/cols/bias entries are exactly zero, so padded channels stay
    zero through the whole network (identity/relu/tanh of 0 is 0)."""
    din_pad = din if din_pad is None else din_pad
    dout_pad = dout if dout_pad is None else dout_pad
    scale = 1.0 / float(din) ** 0.5
    kw, kb = jax.random.split(key)
    W = jax.random.uniform(kw, (din, dout), jnp.float32, -scale, scale)
    b = jax.random.uniform(kb, (dout,), jnp.float32, -scale, scale)
    Wp = jnp.zeros((din_pad, dout_pad), jnp.float32).at[:din, :dout].set(W)
    bp = jnp.zeros((dout_pad,), jnp.float32).at[:dout].set(b)
    return Wp, bp


# ----------------------------------------------------------------------------
# Fused branch kernel: embedding + n_cells DARTS cells (+ cross connections for
# the decoder) + mixed head, for one batch element per grid step.
# ----------------------------------------------------------------------------
def _make_branch_kernel(cfg):
    n_in = cfg["n_in"]
    n_nodes = cfg["n_nodes"]
    n_edges = cfg["n_edges"]
    n_cells = cfg["n_cells"]
    dm = cfg["dm_pad"]
    has_skip = cfg["has_skip"]
    has_id = cfg["has_id"]
    nl_acts = cfg["nl_acts"]
    n_nl = len(nl_acts)
    head_has_id = cfg["head_has_id"]
    head_nl_acts = cfg["head_nl_acts"]
    n_nlh = len(head_nl_acts)
    is_decoder = cfg["is_decoder"]
    edge_start = cfg["edge_start"]

    def kernel(*refs):
        it = iter(refs)
        cskip_ref = next(it) if has_skip else None       # SMEM (n_edges,)
        anl_ref = next(it) if n_nl else None             # SMEM (n_edges*n_nl,)
        ahead_ref = next(it) if n_nlh else None          # SMEM (n_nlh,)
        choice_ref = next(it) if is_decoder else None    # SMEM (1,)
        x_ref = next(it)                                 # (1, T, d_in) f32
        ctx_ref = next(it) if is_decoder else None       # (n_cells, 1, 1, dm) f32
        wemb_ref = next(it)                              # (d_in, dm) bf16
        bemb_ref = next(it)                              # (1, dm) f32
        wid_ref = bidn_ref = None
        if has_id:
            wid_ref = next(it)                           # (n_cells, n_edges*dm, dm) bf16
            bidn_ref = next(it)                          # (n_cells*n_nodes, 1, dm) f32
        wnl_ref = bnl_ref = None
        if n_nl:
            wnl_ref = next(it)                           # (n_cells*n_edges, dm, n_nl*dm) bf16
            bnl_ref = next(it)                           # (n_cells*n_edges, 1, n_nl*dm) f32
        whid_ref = bhid_ref = None
        if head_has_id:
            whid_ref = next(it)                          # (dm, d_out) bf16
            bhid_ref = next(it)                          # (1, d_out) f32
        whnl_ref = bhnl_ref = None
        if n_nlh:
            whnl_ref = next(it)                          # (dm, n_nlh*d_out) bf16
            bhnl_ref = next(it)                          # (1, n_nlh*d_out) f32
        out_ref = next(it)                               # (1, T, d_out) f32
        means_ref = None if is_decoder else next(it)     # (n_cells, 1, 1, dm) f32

        T = x_ref.shape[1]
        d_out = out_ref.shape[2]

        # ---- input embedding: Linear(d_input -> d_model) -------------------
        x = x_ref[0]                                     # (T, d_in) f32
        emb = (jnp.dot(x.astype(jnp.bfloat16), wemb_ref[...],
                       preferred_element_type=jnp.float32) + bemb_ref[...])

        # ---- DARTS cell stack (all states stay in VMEM/registers) ----------
        inputs = [emb] * n_in
        cell_outs = []
        for c in range(n_cells):
            states = list(inputs)
            if is_decoder:
                # cross connection: per-batch time-mean of the matching encoder
                # cell output, broadcast over the horizon inside the kernel.
                states[0] = states[0] + ctx_ref[c, 0]
            for j in range(n_nodes):
                n_inc = n_in + j
                e0 = edge_start[j]
                s_bf = [states[k].astype(jnp.bfloat16) for k in range(n_inc)]
                acc = jnp.zeros((T, dm), jnp.float32)
                if has_skip:
                    # skip_connect: f32 axpy per incoming edge (VPU; no matmul)
                    for k in range(n_inc):
                        acc = acc + cskip_ref[e0 + k] * states[k]
                if has_id:
                    # all identity-activation linears of every incoming edge:
                    # one K-concatenated matmul; the MXU K-reduction sums edges.
                    x_cat = s_bf[0] if n_inc == 1 else jnp.concatenate(s_bf, axis=-1)
                    w_cat = wid_ref[c, e0 * dm:(e0 + n_inc) * dm, :]
                    acc = acc + jnp.dot(x_cat, w_cat,
                                        preferred_element_type=jnp.float32)
                    acc = acc + bidn_ref[c * n_nodes + j]
                if n_nl:
                    # nonlinear linears: per source state, one matmul over the
                    # op-concatenated weights, then slice + activate + alpha-sum.
                    for k in range(n_inc):
                        e = e0 + k
                        z = (jnp.dot(s_bf[k], wnl_ref[c * n_edges + e],
                                     preferred_element_type=jnp.float32)
                             + bnl_ref[c * n_edges + e])
                        for r, act in enumerate(nl_acts):
                            zr = z[:, r * dm:(r + 1) * dm]
                            acc = acc + anl_ref[e * n_nl + r] * _apply_act(act, zr)
                states.append(acc)
            cell_out = states[n_in]
            for j in range(1, n_nodes):
                cell_out = cell_out + states[n_in + j]
            cell_out = cell_out * (1.0 / n_nodes)
            cell_outs.append(cell_out)
            inputs = (inputs + [cell_out])[-n_in:]

        final = cell_outs[-1]
        if is_decoder:
            final = final * choice_ref[0]    # decoder-choice weighting ('seq')

        # ---- mixed head (fused; single store of the lane-sparse d_out) -----
        fb = final.astype(jnp.bfloat16)
        if head_has_id:
            y = (jnp.dot(fb, whid_ref[...], preferred_element_type=jnp.float32)
                 + bhid_ref[...])
        else:
            y = jnp.zeros((T, d_out), jnp.float32)
        if n_nlh:
            zh = (jnp.dot(fb, whnl_ref[...], preferred_element_type=jnp.float32)
                  + bhnl_ref[...])
            for r, act in enumerate(head_nl_acts):
                y = y + ahead_ref[r] * _apply_act(act, zh[:, r * d_out:(r + 1) * d_out])
        out_ref[0] = y.astype(out_ref.dtype)

        # ---- per-cell time-means for the decoder cross connections ---------
        if means_ref is not None:
            for c in range(n_cells):
                means_ref[c, 0] = jnp.mean(cell_outs[c], axis=0, keepdims=True)

    return kernel


# ----------------------------------------------------------------------------
# Network
# ----------------------------------------------------------------------------
class ForecastingAbstractNetwork:
    def __init__(self, d_input_past, d_input_future, window_size, forecasting_horizon,
                 d_model, d_output, n_cells, n_nodes, n_cell_input_nodes,
                 PRIMITIVES_encoder, PRIMITIVES_decoder, OPS_kwargs,
                 HEADs, HEADs_kwargs, DECODERS=("seq",), forecast_only=False, seed=0):
        self.d_input_past = d_input_past
        self.d_input_future = d_input_future
        self.d_model = d_model
        self.dm_pad = _round_up(d_model, 128)       # lane-dense channel axis
        self.d_output = d_output
        self.n_cells = n_cells
        self.n_nodes = n_nodes
        self.n_cell_input_nodes = n_cell_input_nodes
        self.n_cell_nodes = n_nodes + n_cell_input_nodes
        self.forecast_only = forecast_only
        self.window_size = window_size
        self.forecasting_horizon = forecasting_horizon
        self.PRIMITIVES_encoder = PRIMITIVES_encoder
        self.PRIMITIVES_decoder = PRIMITIVES_decoder
        self.HEADs = HEADs
        self.DECODERS = list(DECODERS)
        # TODO(synk): only the 'seq' decoder branch is implemented; the 'linear'
        # (time-axis) decoder of the original search space is omitted.

        # edge indexing of the cell DAG (edges of node j are contiguous)
        self.edge2index = {}
        idx = 0
        edge_start = []
        for j in range(n_nodes):
            edge_start.append(idx)
            for i in range(n_cell_input_nodes + j):
                self.edge2index[(i, j + n_cell_input_nodes)] = idx
                idx += 1
        self.n_edges = idx
        self.edge_start = tuple(edge_start)

        self.enc_prim_cfg = _split_primitives(PRIMITIVES_encoder)
        self.dec_prim_cfg = _split_primitives(PRIMITIVES_decoder)
        self.head_cfg = _split_primitives(HEADs)
        if self.head_cfg[0] is not None:
            raise ValueError("skip_connect is not a valid head primitive")
        if not self.head_cfg[1] and not self.head_cfg[2]:
            raise ValueError("HEADs must contain at least one linear-type head")

        key = jax.random.PRNGKey(seed + 1234)
        k_enc_emb, k_dec_emb, k_enc, k_dec, k_head = jax.random.split(key, 5)
        dmp = self.dm_pad

        W, b = _init_linear_padded(k_enc_emb, d_input_past, d_model, dout_pad=dmp)
        self.enc_emb_W, self.enc_emb_b = W.astype(jnp.bfloat16), b.reshape(1, dmp)
        W, b = _init_linear_padded(k_dec_emb, d_input_future, d_model, dout_pad=dmp)
        self.dec_emb_W, self.dec_emb_b = W.astype(jnp.bfloat16), b.reshape(1, dmp)

        self.enc_cells = self._init_cell_stack(k_enc, self.enc_prim_cfg)
        self.dec_cells = self._init_cell_stack(k_dec, self.dec_prim_cfg)

        # heads: per-head Linear(d_model -> d_output)
        head_Ws, head_bs = [], []
        for h in range(len(HEADs)):
            W, b = _init_linear_padded(jax.random.fold_in(k_head, h),
                                       d_model, d_output, din_pad=dmp)
            head_Ws.append(W)
            head_bs.append(b)
        self.head_W = jnp.stack(head_Ws)            # (n_heads, dmp, d_output) f32
        self.head_b = jnp.stack(head_bs)            # (n_heads, d_output)      f32
        _, _, nlh = self.head_cfg
        if nlh:
            self.head_W_nl = jnp.concatenate(
                [head_Ws[o] for o, _ in nlh], axis=-1).astype(jnp.bfloat16)
            self.head_b_nl = jnp.concatenate(
                [head_bs[o] for o, _ in nlh], axis=-1).reshape(1, len(nlh) * d_output)
        else:
            self.head_W_nl = self.head_b_nl = None

    def _init_cell_stack(self, key, prim_cfg):
        _, idlin_idxs, nl = prim_cfg
        dmp = self.dm_pad
        n_cells, n_edges = self.n_cells, self.n_edges
        params = {}
        if idlin_idxs:
            W_all, b_all = [], []
            for c in range(n_cells):
                Wc, bc = [], []
                for e in range(n_edges):
                    We, be = [], []
                    for o in idlin_idxs:
                        W, b = _init_linear_padded(
                            jax.random.fold_in(key, (c * n_edges + e) * 100 + o),
                            self.d_model, self.d_model, din_pad=dmp, dout_pad=dmp)
                        We.append(W)
                        be.append(b)
                    Wc.append(jnp.stack(We))
                    bc.append(jnp.stack(be))
                W_all.append(jnp.stack(Wc))
                b_all.append(jnp.stack(bc))
            params["W_lin"] = jnp.stack(W_all)   # (C, E, n_id, dmp, dmp) f32
            params["b_lin"] = jnp.stack(b_all)   # (C, E, n_id, dmp)      f32
        if nl:
            W_all, b_all = [], []
            for c in range(n_cells):
                for e in range(n_edges):
                    Ws, bs = [], []
                    for o, _ in nl:
                        W, b = _init_linear_padded(
                            jax.random.fold_in(key, (c * n_edges + e) * 100 + o),
                            self.d_model, self.d_model, din_pad=dmp, dout_pad=dmp)
                        Ws.append(W)
                        bs.append(b)
                    # op-concatenation along the output dim -> one wide matmul
                    W_all.append(jnp.concatenate(Ws, axis=-1))
                    b_all.append(jnp.concatenate(bs, axis=-1))
            params["W_nl"] = jnp.stack(W_all).astype(jnp.bfloat16)   # (C*E, dmp, n_nl*dmp)
            params["b_nl"] = jnp.stack(b_all).reshape(
                n_cells * n_edges, 1, len(nl) * dmp)                  # (C*E, 1, n_nl*dmp)
        return params

    # ---- one fused branch (embedding + cells + head) ------------------------
    def _branch_forward(self, x, arch_p, arch_p_heads, cell_params, prim_cfg, *,
                        emb_W, emb_b, is_decoder, enc_means=None, choice=None):
        B, T, d_in = x.shape
        dmp, d_out = self.dm_pad, self.d_output
        n_cells, n_edges = self.n_cells, self.n_edges
        n_nodes, n_in = self.n_nodes, self.n_cell_input_nodes
        skip_idx, idlin_idxs, nl = prim_cfg
        has_skip = skip_idx is not None
        has_id = len(idlin_idxs) > 0
        n_nl = len(nl)
        _, idh_idxs, nlh = self.head_cfg
        head_has_id = len(idh_idxs) > 0
        n_nlh = len(nlh)

        smem = pl.BlockSpec(memory_space=pltpu.MemorySpace.SMEM)
        args, specs = [], []

        # architecture scalars (SMEM)
        if has_skip:
            args.append(arch_p[:, skip_idx].astype(jnp.float32))
            specs.append(smem)
        if n_nl:
            anl = jnp.stack([arch_p[:, o] for o, _ in nl], axis=1).reshape(-1)
            args.append(anl.astype(jnp.float32))
            specs.append(smem)
        if n_nlh:
            args.append(jnp.stack([arch_p_heads[o] for o, _ in nlh]).astype(jnp.float32))
            specs.append(smem)
        if is_decoder:
            args.append(choice.astype(jnp.float32))
            specs.append(smem)

        # per-batch row blocks (grid over batch -> >=2 parallel steps at B>=2)
        args.append(x.astype(jnp.float32))
        specs.append(pl.BlockSpec((1, T, d_in), lambda b: (b, 0, 0)))
        if is_decoder:
            args.append(enc_means)
            specs.append(pl.BlockSpec((n_cells, 1, 1, dmp), lambda b: (0, b, 0, 0)))

        # grid-invariant weights (constant index_map, single-buffered)
        args += [emb_W, emb_b]
        specs += [_weight_spec((d_in, dmp)), _weight_spec((1, dmp))]
        if has_id:
            # fold all identity-activation linears of each edge into one matmul,
            # then stack the per-edge weights along K (edges of a node are
            # contiguous, so the reshape is exactly the per-node K-concat).
            alpha_id = jnp.stack([arch_p[:, o] for o in idlin_idxs], axis=1)  # (E, n_id)
            W_id = jnp.einsum('eo,ceoij->ceij', alpha_id, cell_params["W_lin"])
            W_id = W_id.reshape(n_cells, n_edges * dmp, dmp).astype(jnp.bfloat16)
            b_id = jnp.einsum('eo,ceoj->cej', alpha_id, cell_params["b_lin"])
            b_node = jnp.stack(
                [b_id[:, self.edge_start[j]:self.edge_start[j] + n_in + j, :].sum(axis=1)
                 for j in range(n_nodes)], axis=1)
            b_node = b_node.reshape(n_cells * n_nodes, 1, dmp)
            args += [W_id, b_node]
            specs += [_weight_spec((n_cells, n_edges * dmp, dmp)),
                      _weight_spec((n_cells * n_nodes, 1, dmp))]
        if n_nl:
            args += [cell_params["W_nl"], cell_params["b_nl"]]
            specs += [_weight_spec((n_cells * n_edges, dmp, n_nl * dmp)),
                      _weight_spec((n_cells * n_edges, 1, n_nl * dmp))]
        if head_has_id:
            W_h = sum(arch_p_heads[o] * self.head_W[o] for o in idh_idxs).astype(jnp.bfloat16)
            b_h = sum(arch_p_heads[o] * self.head_b[o] for o in idh_idxs).reshape(1, d_out)
            args += [W_h, b_h]
            specs += [_weight_spec((dmp, d_out)), _weight_spec((1, d_out))]
        if n_nlh:
            args += [self.head_W_nl, self.head_b_nl]
            specs += [_weight_spec((dmp, n_nlh * d_out)), _weight_spec((1, n_nlh * d_out))]

        out_shapes = [jax.ShapeDtypeStruct((B, T, d_out), jnp.float32)]
        out_specs = [pl.BlockSpec((1, T, d_out), lambda b: (b, 0, 0))]
        if not is_decoder:
            out_shapes.append(jax.ShapeDtypeStruct((n_cells, B, 1, dmp), jnp.float32))
            out_specs.append(pl.BlockSpec((n_cells, 1, 1, dmp), lambda b: (0, b, 0, 0)))

        n_bytes = sum(int(a.size) * a.dtype.itemsize for a in args)
        n_bytes += sum(math.prod(s.shape) * 4 for s in out_shapes)

        cfg = dict(n_in=n_in, n_nodes=n_nodes, n_edges=n_edges, n_cells=n_cells,
                   dm_pad=dmp, has_skip=has_skip, has_id=has_id,
                   nl_acts=tuple(a for _, a in nl),
                   head_has_id=head_has_id, head_nl_acts=tuple(a for _, a in nlh),
                   is_decoder=is_decoder, edge_start=self.edge_start)
        kernel = _make_branch_kernel(cfg)

        out_shape_arg = out_shapes[0] if is_decoder else tuple(out_shapes)
        out_specs_arg = out_specs[0] if is_decoder else list(out_specs)

        return pl.pallas_call(
            kernel,
            out_shape=out_shape_arg,
            grid_spec=pltpu.PrefetchScalarGridSpec(
                num_scalar_prefetch=0, grid=(B,),
                in_specs=specs, out_specs=out_specs_arg),
            compiler_params=pltpu.CompilerParams(
                dimension_semantics=("parallel",),
                vmem_limit_bytes=_vmem_limit_bytes(n_bytes)),
        )(*args)

    # ---- forward -------------------------------------------------------------
    def forward(self, x_past, x_future, arch_p_encoder, arch_p_decoder,
                arch_p_heads, arch_p_decoder_choices):
        # encoder branch: embedding + cells + backcast head + per-cell time-means
        backcast, enc_means = self._branch_forward(
            x_past, arch_p_encoder, arch_p_heads, self.enc_cells, self.enc_prim_cfg,
            emb_W=self.enc_emb_W, emb_b=self.enc_emb_b, is_decoder=False)

        # seq decoder branch (cross connections from encoder cell time-means),
        # decoder-choice scaling and forecast head fused in-kernel.
        choice = arch_p_decoder_choices[0][:1].astype(jnp.float32)
        forecast = self._branch_forward(
            x_future, arch_p_decoder, arch_p_heads, self.dec_cells, self.dec_prim_cfg,
            emb_W=self.dec_emb_W, emb_b=self.dec_emb_b, is_decoder=True,
            enc_means=enc_means, choice=choice)

        if self.forecast_only:
            return forecast
        return backcast, forecast


# ----------------------------------------------------------------------------
if __name__ == "__main__":
    B, Wsz, Hfc = 2, 8, 4
    d_input_past, d_input_future = 5, 3
    d_model, d_output = 32, 2
    n_cells, n_nodes, n_cell_input_nodes = 2, 2, 1
    PRIM_E = ["skip_connect", "linear", "relu_linear"]
    PRIM_D = ["skip_connect", "tanh_linear", "linear"]
    HEADS = ["linear", "relu_linear"]

    net = ForecastingAbstractNetwork(
        d_input_past=d_input_past, d_input_future=d_input_future,
        window_size=Wsz, forecasting_horizon=Hfc,
        d_model=d_model, d_output=d_output,
        n_cells=n_cells, n_nodes=n_nodes, n_cell_input_nodes=n_cell_input_nodes,
        PRIMITIVES_encoder=PRIM_E, PRIMITIVES_decoder=PRIM_D, OPS_kwargs={},
        HEADs=HEADS, HEADs_kwargs={}, DECODERS=["seq"], forecast_only=False, seed=0)

    key = jax.random.PRNGKey(0)
    k1, k2, k3, k4, k5 = jax.random.split(key, 5)
    x_past = jax.random.normal(k1, (B, Wsz, d_input_past), jnp.float32)
    x_future = jax.random.normal(k2, (B, Hfc, d_input_future), jnp.float32)
    arch_p_encoder = jax.nn.softmax(jax.random.normal(k3, (net.n_edges, len(PRIM_E))), axis=-1)
    arch_p_decoder = jax.nn.softmax(jax.random.normal(k4, (net.n_edges, len(PRIM_D))), axis=-1)
    arch_p_heads = jax.nn.softmax(jax.random.normal(k5, (len(HEADS),)), axis=-1)
    arch_p_decoder_choices = jnp.ones((1, 1), jnp.float32)   # single 'seq' decoder

    def _run():
        fwd = jax.jit(net.forward)
        out = fwd(x_past, x_future, arch_p_encoder, arch_p_decoder,
                  arch_p_heads, arch_p_decoder_choices)
        jax.block_until_ready(out)
        return out

    try:
        backcast, forecast = _run()
    except Exception:
        # graceful fallback: default double-buffered weight blocks if this
        # jax/Mosaic build does not support pipeline_mode=pl.Buffered(1).
        _WEIGHT_SINGLE_BUFFER[0] = False
        backcast, forecast = _run()

    assert backcast.shape == (B, Wsz, d_output), backcast.shape
    assert forecast.shape == (B, Hfc, d_output), forecast.shape
    assert jnp.all(jnp.isfinite(backcast)) and jnp.all(jnp.isfinite(forecast))
    print("KERNEL_OK")
</pallas_src>

<mosaic_0001>
module attributes {stable_mosaic.version = 11 : i64} {
  func.func @kernel(%arg0: i32, %arg1: memref<3xf32, #tpu.memory_space<smem>>, %arg2: memref<3xf32, #tpu.memory_space<smem>>, %arg3: memref<1xf32, #tpu.memory_space<smem>>, %arg4: memref<1x8x5xf32, #tpu.memory_space<vmem>>, %arg5: memref<5x128xbf16, #tpu.memory_space<vmem>>, %arg6: memref<1x128xf32, #tpu.memory_space<vmem>>, %arg7: memref<2x384x128xbf16, #tpu.memory_space<vmem>>, %arg8: memref<4x1x128xf32, #tpu.memory_space<vmem>>, %arg9: memref<6x128x128xbf16, #tpu.memory_space<vmem>>, %arg10: memref<6x1x128xf32, #tpu.memory_space<vmem>>, %arg11: memref<128x2xbf16, #tpu.memory_space<vmem>>, %arg12: memref<1x2xf32, #tpu.memory_space<vmem>>, %arg13: memref<128x2xbf16, #tpu.memory_space<vmem>>, %arg14: memref<1x2xf32, #tpu.memory_space<vmem>>, %arg15: memref<1x8x2xf32, #tpu.memory_space<vmem>>, %arg16: memref<2x1x1x128xf32, #tpu.memory_space<vmem>>) attributes {dimension_semantics = [#tpu.dimension_semantics<parallel>], iteration_bounds = array<i64: 2>, scalar_prefetch = 0 : i64, scratch_operands = 0 : i64, tpu.core_type = #tpu.core_type<tc>, window_params = [{transform_indices = @transform_0, window_bounds = array<i64: 3>}, {transform_indices = @transform_1, window_bounds = array<i64: 3>}, {transform_indices = @transform_2, window_bounds = array<i64: 1>}, {transform_indices = @transform_3, window_bounds = array<i64: 1, 8, 5>}, {pipeline_mode = #tpu.pipeline_mode<synchronous>, transform_indices = @transform_4, window_bounds = array<i64: 5, 128>}, {pipeline_mode = #tpu.pipeline_mode<synchronous>, transform_indices = @transform_5, window_bounds = array<i64: 1, 128>}, {pipeline_mode = #tpu.pipeline_mode<synchronous>, transform_indices = @transform_6, window_bounds = array<i64: 2, 384, 128>}, {pipeline_mode = #tpu.pipeline_mode<synchronous>, transform_indices = @transform_7, window_bounds = array<i64: 4, 1, 128>}, {pipeline_mode = #tpu.pipeline_mode<synchronous>, transform_indices = @transform_8, window_bounds = array<i64: 6, 128, 128>}, {pipeline_mode = #tpu.pipeline_mode<synchronous>, transform_indices = @transform_9, window_bounds = array<i64: 6, 1, 128>}, {pipeline_mode = #tpu.pipeline_mode<synchronous>, transform_indices = @transform_10, window_bounds = array<i64: 128, 2>}, {pipeline_mode = #tpu.pipeline_mode<synchronous>, transform_indices = @transform_11, window_bounds = array<i64: 1, 2>}, {pipeline_mode = #tpu.pipeline_mode<synchronous>, transform_indices = @transform_12, window_bounds = array<i64: 128, 2>}, {pipeline_mode = #tpu.pipeline_mode<synchronous>, transform_indices = @transform_13, window_bounds = array<i64: 1, 2>}, {transform_indices = @transform_14, window_bounds = array<i64: 1, 8, 2>}, {transform_indices = @transform_15, window_bounds = array<i64: 2, 1, 1, 128>}]} {
    %c0 = arith.constant 0 : index
    %c0_0 = arith.constant 0 : index
    %c0_1 = arith.constant 0 : index
    %0 = vector.load %arg4[%c0, %c0_0, %c0_1] : memref<1x8x5xf32, #tpu.memory_space<vmem>>, vector<1x8x5xf32>
    %1 = vector.shape_cast %0 : vector<1x8x5xf32> to vector<8x5xf32>
    %2 = arith.truncf %1 : vector<8x5xf32> to vector<8x5xbf16>
    %c0_2 = arith.constant 0 : index
    %c0_3 = arith.constant 0 : index
    %3 = vector.load %arg5[%c0_2, %c0_3] : memref<5x128xbf16, #tpu.memory_space<vmem>>, vector<5x128xbf16>
    %cst = arith.constant dense<0.000000e+00> : vector<8x128xf32>
    %4 = tpu.matmul %2, %3, %cst {dimension_numbers = #tpu.dot_dimension_numbers<[1], [0], [0], [1], [0, 0, 1, 1], [], []>} : vector<8x5xbf16>, vector<5x128xbf16>, vector<8x128xf32> -> vector<8x128xf32>
    %c0_4 = arith.constant 0 : index
    %c0_5 = arith.constant 0 : index
    %5 = vector.load %arg6[%c0_4, %c0_5] : memref<1x128xf32, #tpu.memory_space<vmem>>, vector<1x128xf32>
    %6 = vector.broadcast %5 : vector<1x128xf32> to vector<8x128xf32>
    %7 = arith.addf %4, %6 : vector<8x128xf32>
    %8 = arith.truncf %7 : vector<8x128xf32> to vector<8x128xbf16>
    %cst_6 = arith.constant 0.000000e+00 : f32
    %9 = vector.broadcast %cst_6 : f32 to vector<8x128xf32>
    %c0_7 = arith.constant 0 : index
    %10 = memref.load %arg1[%c0_7] : memref<3xf32, #tpu.memory_space<smem>>
    %11 = vector.broadcast %10 : f32 to vector<8x128xf32>
    %12 = arith.mulf %11, %7 : vector<8x128xf32>
    %13 = arith.addf %9, %12 : vector<8x128xf32>
    %c0_8 = arith.constant 0 : index
    %c0_9 = arith.constant 0 : index
    %c0_10 = arith.constant 0 : index
    %14 = vector.load %arg7[%c0_8, %c0_9, %c0_10] : memref<2x384x128xbf16, #tpu.memory_space<vmem>>, vector<1x128x128xbf16>
    %15 = vector.shape_cast %14 : vector<1x128x128xbf16> to vector<128x128xbf16>
    %cst_11 = arith.constant dense<0.000000e+00> : vector<8x128xf32>
    %16 = tpu.matmul %8, %15, %cst_11 {dimension_numbers = #tpu.dot_dimension_numbers<[1], [0], [0], [1], [0, 0, 1, 1], [], []>} : vector<8x128xbf16>, vector<128x128xbf16>, vector<8x128xf32> -> vector<8x128xf32>
    %17 = arith.addf %13, %16 : vector<8x128xf32>
    %c0_12 = arith.constant 0 : index
    %c0_13 = arith.constant 0 : index
    %c0_14 = arith.constant 0 : index
    %18 = vector.load %arg8[%c0_12, %c0_13, %c0_14] : memref<4x1x128xf32, #tpu.memory_space<vmem>>, vector<1x1x128xf32>
    %19 = vector.shape_cast %18 : vector<1x1x128xf32> to vector<1x128xf32>
    %20 = vector.broadcast %19 : vector<1x128xf32> to vector<8x128xf32>
    %21 = arith.addf %17, %20 : vector<8x128xf32>
    %c0_15 = arith.constant 0 : index
    %c0_16 = arith.constant 0 : index
    %c0_17 = arith.constant 0 : index
    %22 = vector.load %arg9[%c0_15, %c0_16, %c0_17] : memref<6x128x128xbf16, #tpu.memory_space<vmem>>, vector<1x128x128xbf16>
    %23 = vector.shape_cast %22 : vector<1x128x128xbf16> to vector<128x128xbf16>
    %cst_18 = arith.constant dense<0.000000e+00> : vector<8x128xf32>
    %24 = tpu.matmul %8, %23, %cst_18 {dimension_numbers = #tpu.dot_dimension_numbers<[1], [0], [0], [1], [0, 0, 1, 1], [], []>} : vector<8x128xbf16>, vector<128x128xbf16>, vector<8x128xf32> -> vector<8x128xf32>
    %c0_19 = arith.constant 0 : index
    %c0_20 = arith.constant 0 : index
    %c0_21 = arith.constant 0 : index
    %25 = vector.load %arg10[%c0_19, %c0_20, %c0_21] : memref<6x1x128xf32, #tpu.memory_space<vmem>>, vector<1x1x128xf32>
    %26 = vector.shape_cast %25 : vector<1x1x128xf32> to vector<1x128xf32>
    %27 = vector.broadcast %26 : vector<1x128xf32> to vector<8x128xf32>
    %28 = arith.addf %24, %27 : vector<8x128xf32>
    %c0_22 = arith.constant 0 : index
    %29 = memref.load %arg2[%c0_22] : memref<3xf32, #tpu.memory_space<smem>>
    %cst_23 = arith.constant 0.000000e+00 : f32
    %30 = vector.broadcast %cst_23 : f32 to vector<8x128xf32>
    %31 = arith.maximumf %28, %30 : vector<8x128xf32>
    %32 = vector.broadcast %29 : f32 to vector<8x128xf32>
    %33 = arith.mulf %32, %31 : vector<8x128xf32>
    %34 = arith.addf %21, %33 : vector<8x128xf32>
    %35 = arith.truncf %7 : vector<8x128xf32> to vector<8x128xbf16>
    %36 = arith.truncf %34 : vector<8x128xf32> to vector<8x128xbf16>
    %cst_24 = arith.constant 0.000000e+00 : f32
    %37 = vector.broadcast %cst_24 : f32 to vector<8x128xf32>
    %c1 = arith.constant 1 : index
    %38 = memref.load %arg1[%c1] : memref<3xf32, #tpu.memory_space<smem>>
    %39 = vector.broadcast %38 : f32 to vector<8x128xf32>
    %40 = arith.mulf %39, %7 : vector<8x128xf32>
    %41 = arith.addf %37, %40 : vector<8x128xf32>
    %c2 = arith.constant 2 : index
    %42 = memref.load %arg1[%c2] : memref<3xf32, #tpu.memory_space<smem>>
    %43 = vector.broadcast %42 : f32 to vector<8x128xf32>
    %44 = arith.mulf %43, %34 : vector<8x128xf32>
    %45 = arith.addf %41, %44 : vector<8x128xf32>
    %46 = tpu.concatenate %35, %36 in 1 : vector<8x128xbf16>, vector<8x128xbf16> -> vector<8x256xbf16>
    %c0_25 = arith.constant 0 : index
    %c128 = arith.constant 128 : index
    %c0_26 = arith.constant 0 : index
    %47 = vector.load %arg7[%c0_25, %c128, %c0_26] : memref<2x384x128xbf16, #tpu.memory_space<vmem>>, vector<1x256x128xbf16>
    %48 = vector.shape_cast %47 : vector<1x256x128xbf16> to vector<256x128xbf16>
    %cst_27 = arith.constant dense<0.000000e+00> : vector<8x128xf32>
    %49 = tpu.matmul %46, %48, %cst_27 {dimension_numbers = #tpu.dot_dimension_numbers<[1], [0], [0], [1], [0, 0, 1, 1], [], []>} : vector<8x256xbf16>, vector<256x128xbf16>, vector<8x128xf32> -> vector<8x128xf32>
    %50 = arith.addf %45, %49 : vector<8x128xf32>
    %c1_28 = arith.constant 1 : index
    %c0_29 = arith.constant 0 : index
    %c0_30 = arith.constant 0 : index
    %51 = vector.load %arg8[%c1_28, %c0_29, %c0_30] : memref<4x1x128xf32, #tpu.memory_space<vmem>>, vector<1x1x128xf32>
    %52 = vector.shape_cast %51 : vector<1x1x128xf32> to vector<1x128xf32>
    %53 = vector.broadcast %52 : vector<1x128xf32> to vector<8x128xf32>
    %54 = arith.addf %50, %53 : vector<8x128xf32>
    %c1_31 = arith.constant 1 : index
    %c0_32 = arith.constant 0 : index
    %c0_33 = arith.constant 0 : index
    %55 = vector.load %arg9[%c1_31, %c0_32, %c0_33] : memref<6x128x128xbf16, #tpu.memory_space<vmem>>, vector<1x128x128xbf16>
    %56 = vector.shape_cast %55 : vector<1x128x128xbf16> to vector<128x128xbf16>
    %cst_34 = arith.constant dense<0.000000e+00> : vector<8x128xf32>
    %57 = tpu.matmul %35, %56, %cst_34 {dimension_numbers = #tpu.dot_dimension_numbers<[1], [0], [0], [1], [0, 0, 1, 1], [], []>} : vector<8x128xbf16>, vector<128x128xbf16>, vector<8x128xf32> -> vector<8x128xf32>
    %c1_35 = arith.constant 1 : index
    %c0_36 = arith.constant 0 : index
    %c0_37 = arith.constant 0 : index
    %58 = vector.load %arg10[%c1_35, %c0_36, %c0_37] : memref<6x1x128xf32, #tpu.memory_space<vmem>>, vector<1x1x128xf32>
    %59 = vector.shape_cast %58 : vector<1x1x128xf32> to vector<1x128xf32>
    %60 = vector.broadcast %59 : vector<1x128xf32> to vector<8x128xf32>
    %61 = arith.addf %57, %60 : vector<8x128xf32>
    %c1_38 = arith.constant 1 : index
    %62 = memref.load %arg2[%c1_38] : memref<3xf32, #tpu.memory_space<smem>>
    %cst_39 = arith.constant 0.000000e+00 : f32
    %63 = vector.broadcast %cst_39 : f32 to vector<8x128xf32>
    %64 = arith.maximumf %61, %63 : vector<8x128xf32>
    %65 = vector.broadcast %62 : f32 to vector<8x128xf32>
    %66 = arith.mulf %65, %64 : vector<8x128xf32>
    %67 = arith.addf %54, %66 : vector<8x128xf32>
    %c2_40 = arith.constant 2 : index
    %c0_41 = arith.constant 0 : index
    %c0_42 = arith.constant 0 : index
    %68 = vector.load %arg9[%c2_40, %c0_41, %c0_42] : memref<6x128x128xbf16, #tpu.memory_space<vmem>>, vector<1x128x128xbf16>
    %69 = vector.shape_cast %68 : vector<1x128x128xbf16> to vector<128x128xbf16>
    %cst_43 = arith.constant dense<0.000000e+00> : vector<8x128xf32>
    %70 = tpu.matmul %36, %69, %cst_43 {dimension_numbers = #tpu.dot_dimension_numbers<[1], [0], [0], [1], [0, 0, 1, 1], [], []>} : vector<8x128xbf16>, vector<128x128xbf16>, vector<8x128xf32> -> vector<8x128xf32>
    %c2_44 = arith.constant 2 : index
    %c0_45 = arith.constant 0 : index
    %c0_46 = arith.constant 0 : index
    %71 = vector.load %arg10[%c2_44, %c0_45, %c0_46] : memref<6x1x128xf32, #tpu.memory_space<vmem>>, vector<1x1x128xf32>
    %72 = vector.shape_cast %71 : vector<1x1x128xf32> to vector<1x128xf32>
    %73 = vector.broadcast %72 : vector<1x128xf32> to vector<8x128xf32>
    %74 = arith.addf %70, %73 : vector<8x128xf32>
    %c2_47 = arith.constant 2 : index
    %75 = memref.load %arg2[%c2_47] : memref<3xf32, #tpu.memory_space<smem>>
    %cst_48 = arith.constant 0.000000e+00 : f32
    %76 = vector.broadcast %cst_48 : f32 to vector<8x128xf32>
    %77 = arith.maximumf %74, %76 : vector<8x128xf32>
    %78 = vector.broadcast %75 : f32 to vector<8x128xf32>
    %79 = arith.mulf %78, %77 : vector<8x128xf32>
    %80 = arith.addf %67, %79 : vector<8x128xf32>
    %81 = arith.addf %34, %80 : vector<8x128xf32>
    %cst_49 = arith.constant 5.000000e-01 : f32
    %82 = vector.broadcast %cst_49 : f32 to vector<8x128xf32>
    %83 = arith.mulf %81, %82 : vector<8x128xf32>
    %84 = arith.truncf %83 : vector<8x128xf32> to vector<8x128xbf16>
    %cst_50 = arith.constant 0.000000e+00 : f32
    %85 = vector.broadcast %cst_50 : f32 to vector<8x128xf32>
    %c0_51 = arith.constant 0 : index
    %86 = memref.load %arg1[%c0_51] : memref<3xf32, #tpu.memory_space<smem>>
    %87 = vector.broadcast %86 : f32 to vector<8x128xf32>
    %88 = arith.mulf %87, %83 : vector<8x128xf32>
    %89 = arith.addf %85, %88 : vector<8x128xf32>
    %c1_52 = arith.constant 1 : index
    %c0_53 = arith.constant 0 : index
    %c0_54 = arith.constant 0 : index
    %90 = vector.load %arg7[%c1_52, %c0_53, %c0_54] : memref<2x384x128xbf16, #tpu.memory_space<vmem>>, vector<1x128x128xbf16>
    %91 = vector.shape_cast %90 : vector<1x128x128xbf16> to vector<128x128xbf16>
    %cst_55 = arith.constant dense<0.000000e+00> : vector<8x128xf32>
    %92 = tpu.matmul %84, %91, %cst_55 {dimension_numbers = #tpu.dot_dimension_numbers<[1], [0], [0], [1], [0, 0, 1, 1], [], []>} : vector<8x128xbf16>, vector<128x128xbf16>, vector<8x128xf32> -> vector<8x128xf32>
    %93 = arith.addf %89, %92 : vector<8x128xf32>
    %c2_56 = arith.constant 2 : index
    %c0_57 = arith.constant 0 : index
    %c0_58 = arith.constant 0 : index
    %94 = vector.load %arg8[%c2_56, %c0_57, %c0_58] : memref<4x1x128xf32, #tpu.memory_space<vmem>>, vector<1x1x128xf32>
    %95 = vector.shape_cast %94 : vector<1x1x128xf32> to vector<1x128xf32>
    %96 = vector.broadcast %95 : vector<1x128xf32> to vector<8x128xf32>
    %97 = arith.addf %93, %96 : vector<8x128xf32>
    %c3 = arith.constant 3 : index
    %c0_59 = arith.constant 0 : index
    %c0_60 = arith.constant 0 : index
    %98 = vector.load %arg9[%c3, %c0_59, %c0_60] : memref<6x128x128xbf16, #tpu.memory_space<vmem>>, vector<1x128x128xbf16>
    %99 = vector.shape_cast %98 : vector<1x128x128xbf16> to vector<128x128xbf16>
    %cst_61 = arith.constant dense<0.000000e+00> : vector<8x128xf32>
    %100 = tpu.matmul %84, %99, %cst_61 {dimension_numbers = #tpu.dot_dimension_numbers<[1], [0], [0], [1], [0, 0, 1, 1], [], []>} : vector<8x128xbf16>, vector<128x128xbf16>, vector<8x128xf32> -> vector<8x128xf32>
    %c3_62 = arith.constant 3 : index
    %c0_63 = arith.constant 0 : index
    %c0_64 = arith.constant 0 : index
    %101 = vector.load %arg10[%c3_62, %c0_63, %c0_64] : memref<6x1x128xf32, #tpu.memory_space<vmem>>, vector<1x1x128xf32>
    %102 = vector.shape_cast %101 : vector<1x1x128xf32> to vector<1x128xf32>
    %103 = vector.broadcast %102 : vector<1x128xf32> to vector<8x128xf32>
    %104 = arith.addf %100, %103 : vector<8x128xf32>
    %c0_65 = arith.constant 0 : index
    %105 = memref.load %arg2[%c0_65] : memref<3xf32, #tpu.memory_space<smem>>
    %cst_66 = arith.constant 0.000000e+00 : f32
    %106 = vector.broadcast %cst_66 : f32 to vector<8x128xf32>
    %107 = arith.maximumf %104, %106 : vector<8x128xf32>
    %108 = vector.broadcast %105 : f32 to vector<8x128xf32>
    %109 = arith.mulf %108, %107 : vector<8x128xf32>
    %110 = arith.addf %97, %109 : vector<8x128xf32>
    %111 = arith.truncf %83 : vector<8x128xf32> to vector<8x128xbf16>
    %112 = arith.truncf %110 : vector<8x128xf32> to vector<8x128xbf16>
    %cst_67 = arith.constant 0.000000e+00 : f32
    %113 = vector.broadcast %cst_67 : f32 to vector<8x128xf32>
    %c1_68 = arith.constant 1 : index
    %114 = memref.load %arg1[%c1_68] : memref<3xf32, #tpu.memory_space<smem>>
    %115 = vector.broadcast %114 : f32 to vector<8x128xf32>
    %116 = arith.mulf %115, %83 : vector<8x128xf32>
    %117 = arith.addf %113, %116 : vector<8x128xf32>
    %c2_69 = arith.constant 2 : index
    %118 = memref.load %arg1[%c2_69] : memref<3xf32, #tpu.memory_space<smem>>
    %119 = vector.broadcast %118 : f32 to vector<8x128xf32>
    %120 = arith.mulf %119, %110 : vector<8x128xf32>
    %121 = arith.addf %117, %120 : vector<8x128xf32>
    %122 = tpu.concatenate %111, %112 in 1 : vector<8x128xbf16>, vector<8x128xbf16> -> vector<8x256xbf16>
    %c1_70 = arith.constant 1 : index
    %c128_71 = arith.constant 128 : index
    %c0_72 = arith.constant 0 : index
    %123 = vector.load %arg7[%c1_70, %c128_71, %c0_72] : memref<2x384x128xbf16, #tpu.memory_space<vmem>>, vector<1x256x128xbf16>
    %124 = vector.shape_cast %123 : vector<1x256x128xbf16> to vector<256x128xbf16>
    %cst_73 = arith.constant dense<0.000000e+00> : vector<8x128xf32>
    %125 = tpu.matmul %122, %124, %cst_73 {dimension_numbers = #tpu.dot_dimension_numbers<[1], [0], [0], [1], [0, 0, 1, 1], [], []>} : vector<8x256xbf16>, vector<256x128xbf16>, vector<8x128xf32> -> vector<8x128xf32>
    %126 = arith.addf %121, %125 : vector<8x128xf32>
    %c3_74 = arith.constant 3 : index
    %c0_75 = arith.constant 0 : index
    %c0_76 = arith.constant 0 : index
    %127 = vector.load %arg8[%c3_74, %c0_75, %c0_76] : memref<4x1x128xf32, #tpu.memory_space<vmem>>, vector<1x1x128xf32>
    %128 = vector.shape_cast %127 : vector<1x1x128xf32> to vector<1x128xf32>
    %129 = vector.broadcast %128 : vector<1x128xf32> to vector<8x128xf32>
    %130 = arith.addf %126, %129 : vector<8x128xf32>
    %c4 = arith.constant 4 : index
    %c0_77 = arith.constant 0 : index
    %c0_78 = arith.constant 0 : index
    %131 = vector.load %arg9[%c4, %c0_77, %c0_78] : memref<6x128x128xbf16, #tpu.memory_space<vmem>>, vector<1x128x128xbf16>
    %132 = vector.shape_cast %131 : vector<1x128x128xbf16> to vector<128x128xbf16>
    %cst_79 = arith.constant dense<0.000000e+00> : vector<8x128xf32>
    %133 = tpu.matmul %111, %132, %cst_79 {dimension_numbers = #tpu.dot_dimension_numbers<[1], [0], [0], [1], [0, 0, 1, 1], [], []>} : vector<8x128xbf16>, vector<128x128xbf16>, vector<8x128xf32> -> vector<8x128xf32>
    %c4_80 = arith.constant 4 : index
    %c0_81 = arith.constant 0 : index
    %c0_82 = arith.constant 0 : index
    %134 = vector.load %arg10[%c4_80, %c0_81, %c0_82] : memref<6x1x128xf32, #tpu.memory_space<vmem>>, vector<1x1x128xf32>
    %135 = vector.shape_cast %134 : vector<1x1x128xf32> to vector<1x128xf32>
    %136 = vector.broadcast %135 : vector<1x128xf32> to vector<8x128xf32>
    %137 = arith.addf %133, %136 : vector<8x128xf32>
    %c1_83 = arith.constant 1 : index
    %138 = memref.load %arg2[%c1_83] : memref<3xf32, #tpu.memory_space<smem>>
    %cst_84 = arith.constant 0.000000e+00 : f32
    %139 = vector.broadcast %cst_84 : f32 to vector<8x128xf32>
    %140 = arith.maximumf %137, %139 : vector<8x128xf32>
    %141 = vector.broadcast %138 : f32 to vector<8x128xf32>
    %142 = arith.mulf %141, %140 : vector<8x128xf32>
    %143 = arith.addf %130, %142 : vector<8x128xf32>
    %c5 = arith.constant 5 : index
    %c0_85 = arith.constant 0 : index
    %c0_86 = arith.constant 0 : index
    %144 = vector.load %arg9[%c5, %c0_85, %c0_86] : memref<6x128x128xbf16, #tpu.memory_space<vmem>>, vector<1x128x128xbf16>
    %145 = vector.shape_cast %144 : vector<1x128x128xbf16> to vector<128x128xbf16>
    %cst_87 = arith.constant dense<0.000000e+00> : vector<8x128xf32>
    %146 = tpu.matmul %112, %145, %cst_87 {dimension_numbers = #tpu.dot_dimension_numbers<[1], [0], [0], [1], [0, 0, 1, 1], [], []>} : vector<8x128xbf16>, vector<128x128xbf16>, vector<8x128xf32> -> vector<8x128xf32>
    %c5_88 = arith.constant 5 : index
    %c0_89 = arith.constant 0 : index
    %c0_90 = arith.constant 0 : index
    %147 = vector.load %arg10[%c5_88, %c0_89, %c0_90] : memref<6x1x128xf32, #tpu.memory_space<vmem>>, vector<1x1x128xf32>
    %148 = vector.shape_cast %147 : vector<1x1x128xf32> to vector<1x128xf32>
    %149 = vector.broadcast %148 : vector<1x128xf32> to vector<8x128xf32>
    %150 = arith.addf %146, %149 : vector<8x128xf32>
    %c2_91 = arith.constant 2 : index
    %151 = memref.load %arg2[%c2_91] : memref<3xf32, #tpu.memory_space<smem>>
    %cst_92 = arith.constant 0.000000e+00 : f32
    %152 = vector.broadcast %cst_92 : f32 to vector<8x128xf32>
    %153 = arith.maximumf %150, %152 : vector<8x128xf32>
    %154 = vector.broadcast %151 : f32 to vector<8x128xf32>
    %155 = arith.mulf %154, %153 : vector<8x128xf32>
    %156 = arith.addf %143, %155 : vector<8x128xf32>
    %157 = arith.addf %110, %156 : vector<8x128xf32>
    %cst_93 = arith.constant 5.000000e-01 : f32
    %158 = vector.broadcast %cst_93 : f32 to vector<8x128xf32>
    %159 = arith.mulf %157, %158 : vector<8x128xf32>
    %160 = arith.truncf %159 : vector<8x128xf32> to vector<8x128xbf16>
    %c0_94 = arith.constant 0 : index
    %c0_95 = arith.constant 0 : index
    %161 = vector.load %arg11[%c0_94, %c0_95] : memref<128x2xbf16, #tpu.memory_space<vmem>>, vector<128x2xbf16>
    %cst_96 = arith.constant dense<0.000000e+00> : vector<8x2xf32>
    %162 = tpu.matmul %160, %161, %cst_96 {dimension_numbers = #tpu.dot_dimension_numbers<[1], [0], [0], [1], [0, 0, 1, 1], [], []>} : vector<8x128xbf16>, vector<128x2xbf16>, vector<8x2xf32> -> vector<8x2xf32>
    %c0_97 = arith.constant 0 : index
    %c0_98 = arith.constant 0 : index
    %163 = vector.load %arg12[%c0_97, %c0_98] : memref<1x2xf32, #tpu.memory_space<vmem>>, vector<1x2xf32>
    %164 = vector.broadcast %163 : vector<1x2xf32> to vector<8x2xf32>
    %165 = arith.addf %162, %164 : vector<8x2xf32>
    %c0_99 = arith.constant 0 : index
    %c0_100 = arith.constant 0 : index
    %166 = vector.load %arg13[%c0_99, %c0_100] : memref<128x2xbf16, #tpu.memory_space<vmem>>, vector<128x2xbf16>
    %cst_101 = arith.constant dense<0.000000e+00> : vector<8x2xf32>
    %167 = tpu.matmul %160, %166, %cst_101 {dimension_numbers = #tpu.dot_dimension_numbers<[1], [0], [0], [1], [0, 0, 1, 1], [], []>} : vector<8x128xbf16>, vector<128x2xbf16>, vector<8x2xf32> -> vector<8x2xf32>
    %c0_102 = arith.constant 0 : index
    %c0_103 = arith.constant 0 : index
    %168 = vector.load %arg14[%c0_102, %c0_103] : memref<1x2xf32, #tpu.memory_space<vmem>>, vector<1x2xf32>
    %169 = vector.broadcast %168 : vector<1x2xf32> to vector<8x2xf32>
    %170 = arith.addf %167, %169 : vector<8x2xf32>
    %c0_104 = arith.constant 0 : index
    %171 = memref.load %arg3[%c0_104] : memref<1xf32, #tpu.memory_space<smem>>
    %cst_105 = arith.constant 0.000000e+00 : f32
    %172 = vector.broadcast %cst_105 : f32 to vector<8x2xf32>
    %173 = arith.maximumf %170, %172 : vector<8x2xf32>
    %174 = vector.broadcast %171 : f32 to vector<8x2xf32>
    %175 = arith.mulf %174, %173 : vector<8x2xf32>
    %176 = arith.addf %165, %175 : vector<8x2xf32>
    %c0_106 = arith.constant 0 : index
    %c0_107 = arith.constant 0 : index
    %c0_108 = arith.constant 0 : index
    %177 = vector.load %arg15[%c0_106, %c0_107, %c0_108] : memref<1x8x2xf32, #tpu.memory_space<vmem>>, vector<1x8x2xf32>
    %178 = vector.shape_cast %177 : vector<1x8x2xf32> to vector<8x2xf32>
    %179 = vector.shape_cast %176 : vector<8x2xf32> to vector<1x8x2xf32>
    tpu.vector_store %arg15[%c0_106, %c0_107, %c0_108], %179 {strides = array<i32>} : memref<1x8x2xf32, #tpu.memory_space<vmem>>, vector<1x8x2xf32>,
    %cst_109 = arith.constant dense<0.000000e+00> : vector<128xf32>
    %180 = vector.multi_reduction <add>, %83, %cst_109 [0] : vector<8x128xf32> to vector<128xf32>
    %181 = vector.shape_cast %180 : vector<128xf32> to vector<1x128xf32>
    %cst_110 = arith.constant 8.000000e+00 : f32
    %182 = vector.broadcast %cst_110 : f32 to vector<1x128xf32>
    %183 = arith.divf %181, %182 : vector<1x128xf32>
    %c0_111 = arith.constant 0 : index
    %c0_112 = arith.constant 0 : index
    %c0_113 = arith.constant 0 : index
    %c0_114 = arith.constant 0 : index
    %184 = vector.load %arg16[%c0_111, %c0_112, %c0_113, %c0_114] : memref<2x1x1x128xf32, #tpu.memory_space<vmem>>, vector<1x1x1x128xf32>
    %185 = vector.shape_cast %184 : vector<1x1x1x128xf32> to vector<1x128xf32>
    %186 = vector.shape_cast %183 : vector<1x128xf32> to vector<1x1x1x128xf32>
    tpu.vector_store %arg16[%c0_111, %c0_112, %c0_113, %c0_114], %186 {strides = array<i32>} : memref<2x1x1x128xf32, #tpu.memory_space<vmem>>, vector<1x1x1x128xf32>,
    %cst_115 = arith.constant dense<0.000000e+00> : vector<128xf32>
    %187 = vector.multi_reduction <add>, %159, %cst_115 [0] : vector<8x128xf32> to vector<128xf32>
    %188 = vector.shape_cast %187 : vector<128xf32> to vector<1x128xf32>
    %cst_116 = arith.constant 8.000000e+00 : f32
    %189 = vector.broadcast %cst_116 : f32 to vector<1x128xf32>
    %190 = arith.divf %188, %189 : vector<1x128xf32>
    %c1_117 = arith.constant 1 : index
    %c0_118 = arith.constant 0 : index
    %c0_119 = arith.constant 0 : index
    %c0_120 = arith.constant 0 : index
    %191 = vector.load %arg16[%c1_117, %c0_118, %c0_119, %c0_120] : memref<2x1x1x128xf32, #tpu.memory_space<vmem>>, vector<1x1x1x128xf32>
    %192 = vector.shape_cast %191 : vector<1x1x1x128xf32> to vector<1x128xf32>
    %193 = vector.shape_cast %190 : vector<1x128xf32> to vector<1x1x1x128xf32>
    tpu.vector_store %arg16[%c1_117, %c0_118, %c0_119, %c0_120], %193 {strides = array<i32>} : memref<2x1x1x128xf32, #tpu.memory_space<vmem>>, vector<1x1x1x128xf32>,
    return
  }
  func.func @transform_0(%arg0: i32) -> i32 {
    %c0_i32 = arith.constant 0 : i32
    %c0_i32_0 = arith.constant 0 : i32
    return %c0_i32 : i32
  }
  func.func @transform_1(%arg0: i32) -> i32 {
    %c0_i32 = arith.constant 0 : i32
    %c0_i32_0 = arith.constant 0 : i32
    return %c0_i32 : i32
  }
  func.func @transform_2(%arg0: i32) -> i32 {
    %c0_i32 = arith.constant 0 : i32
    %c0_i32_0 = arith.constant 0 : i32
    return %c0_i32 : i32
  }
  func.func @transform_3(%arg0: i32) -> (i32, i32, i32) {
    %c0_i32 = arith.constant 0 : i32
    %c0_i32_0 = arith.constant 0 : i32
    %c0_i32_1 = arith.constant 0 : i32
    return %arg0, %c0_i32, %c0_i32_0 : i32, i32, i32
  }
  func.func @transform_4(%arg0: i32) -> (i32, i32) {
    %c0_i32 = arith.constant 0 : i32
    %c0_i32_0 = arith.constant 0 : i32
    %c0_i32_1 = arith.constant 0 : i32
    return %c0_i32, %c0_i32_0 : i32, i32
  }
  func.func @transform_5(%arg0: i32) -> (i32, i32) {
    %c0_i32 = arith.constant 0 : i32
    %c0_i32_0 = arith.constant 0 : i32
    %c0_i32_1 = arith.constant 0 : i32
    return %c0_i32, %c0_i32_0 : i32, i32
  }
  func.func @transform_6(%arg0: i32) -> (i32, i32, i32) {
    %c0_i32 = arith.constant 0 : i32
    %c0_i32_0 = arith.constant 0 : i32
    %c0_i32_1 = arith.constant 0 : i32
    %c0_i32_2 = arith.constant 0 : i32
    return %c0_i32, %c0_i32_0, %c0_i32_1 : i32, i32, i32
  }
  func.func @transform_7(%arg0: i32) -> (i32, i32, i32) {
    %c0_i32 = arith.constant 0 : i32
    %c0_i32_0 = arith.constant 0 : i32
    %c0_i32_1 = arith.constant 0 : i32
    %c0_i32_2 = arith.constant 0 : i32
    return %c0_i32, %c0_i32_0, %c0_i32_1 : i32, i32, i32
  }
  func.func @transform_8(%arg0: i32) -> (i32, i32, i32) {
    %c0_i32 = arith.constant 0 : i32
    %c0_i32_0 = arith.constant 0 : i32
    %c0_i32_1 = arith.constant 0 : i32
    %c0_i32_2 = arith.constant 0 : i32
    return %c0_i32, %c0_i32_0, %c0_i32_1 : i32, i32, i32
  }
  func.func @transform_9(%arg0: i32) -> (i32, i32, i32) {
    %c0_i32 = arith.constant 0 : i32
    %c0_i32_0 = arith.constant 0 : i32
    %c0_i32_1 = arith.constant 0 : i32
    %c0_i32_2 = arith.constant 0 : i32
    return %c0_i32, %c0_i32_0, %c0_i32_1 : i32, i32, i32
  }
  func.func @transform_10(%arg0: i32) -> (i32, i32) {
    %c0_i32 = arith.constant 0 : i32
    %c0_i32_0 = arith.constant 0 : i32
    %c0_i32_1 = arith.constant 0 : i32
    return %c0_i32, %c0_i32_0 : i32, i32
  }
  func.func @transform_11(%arg0: i32) -> (i32, i32) {
    %c0_i32 = arith.constant 0 : i32
    %c0_i32_0 = arith.constant 0 : i32
    %c0_i32_1 = arith.constant 0 : i32
    return %c0_i32, %c0_i32_0 : i32, i32
  }
  func.func @transform_12(%arg0: i32) -> (i32, i32) {
    %c0_i32 = arith.constant 0 : i32
    %c0_i32_0 = arith.constant 0 : i32
    %c0_i32_1 = arith.constant 0 : i32
    return %c0_i32, %c0_i32_0 : i32, i32
  }
  func.func @transform_13(%arg0: i32) -> (i32, i32) {
    %c0_i32 = arith.constant 0 : i32
    %c0_i32_0 = arith.constant 0 : i32
    %c0_i32_1 = arith.constant 0 : i32
    return %c0_i32, %c0_i32_0 : i32, i32
  }
  func.func @transform_14(%arg0: i32) -> (i32, i32, i32) {
    %c0_i32 = arith.constant 0 : i32
    %c0_i32_0 = arith.constant 0 : i32
    %c0_i32_1 = arith.constant 0 : i32
    return %arg0, %c0_i32, %c0_i32_0 : i32, i32, i32
  }
  func.func @transform_15(%arg0: i32) -> (i32, i32, i32, i32) {
    %c0_i32 = arith.constant 0 : i32
    %c0_i32_0 = arith.constant 0 : i32
    %c0_i32_1 = arith.constant 0 : i32
    %c0_i32_2 = arith.constant 0 : i32
    return %c0_i32, %arg0, %c0_i32_0, %c0_i32_1 : i32, i32, i32, i32
  }
}

module attributes {stable_mosaic.version = 11 : i64} {
  func.func @kernel(%arg0: i32, %arg1: memref<3xf32, #tpu.memory_space<smem>>, %arg2: memref<3xf32, #tpu.memory_space<smem>>, %arg3: memref<1xf32, #tpu.memory_space<smem>>, %arg4: memref<1xf32, #tpu.memory_space<smem>>, %arg5: memref<1x4x3xf32, #tpu.memory_space<vmem>>, %arg6: memref<2x1x1x128xf32, #tpu.memory_space<vmem>>, %arg7: memref<3x128xbf16, #tpu.memory_space<vmem>>, %arg8: memref<1x128xf32, #tpu.memory_space<vmem>>, %arg9: memref<2x384x128xbf16, #tpu.memory_space<vmem>>, %arg10: memref<4x1x128xf32, #tpu.memory_space<vmem>>, %arg11: memref<6x128x128xbf16, #tpu.memory_space<vmem>>, %arg12: memref<6x1x128xf32, #tpu.memory_space<vmem>>, %arg13: memref<128x2xbf16, #tpu.memory_space<vmem>>, %arg14: memref<1x2xf32, #tpu.memory_space<vmem>>, %arg15: memref<128x2xbf16, #tpu.memory_space<vmem>>, %arg16: memref<1x2xf32, #tpu.memory_space<vmem>>, %arg17: memref<1x4x2xf32, #tpu.memory_space<vmem>>) attributes {dimension_semantics = [#tpu.dimension_semantics<parallel>], iteration_bounds = array<i64: 2>, scalar_prefetch = 0 : i64, scratch_operands = 0 : i64, tpu.core_type = #tpu.core_type<tc>, window_params = [{transform_indices = @transform_0, window_bounds = array<i64: 3>}, {transform_indices = @transform_1, window_bounds = array<i64: 3>}, {transform_indices = @transform_2, window_bounds = array<i64: 1>}, {transform_indices = @transform_3, window_bounds = array<i64: 1>}, {transform_indices = @transform_4, window_bounds = array<i64: 1, 4, 3>}, {transform_indices = @transform_5, window_bounds = array<i64: 2, 1, 1, 128>}, {pipeline_mode = #tpu.pipeline_mode<synchronous>, transform_indices = @transform_6, window_bounds = array<i64: 3, 128>}, {pipeline_mode = #tpu.pipeline_mode<synchronous>, transform_indices = @transform_7, window_bounds = array<i64: 1, 128>}, {pipeline_mode = #tpu.pipeline_mode<synchronous>, transform_indices = @transform_8, window_bounds = array<i64: 2, 384, 128>}, {pipeline_mode = #tpu.pipeline_mode<synchronous>, transform_indices = @transform_9, window_bounds = array<i64: 4, 1, 128>}, {pipeline_mode = #tpu.pipeline_mode<synchronous>, transform_indices = @transform_10, window_bounds = array<i64: 6, 128, 128>}, {pipeline_mode = #tpu.pipeline_mode<synchronous>, transform_indices = @transform_11, window_bounds = array<i64: 6, 1, 128>}, {pipeline_mode = #tpu.pipeline_mode<synchronous>, transform_indices = @transform_12, window_bounds = array<i64: 128, 2>}, {pipeline_mode = #tpu.pipeline_mode<synchronous>, transform_indices = @transform_13, window_bounds = array<i64: 1, 2>}, {pipeline_mode = #tpu.pipeline_mode<synchronous>, transform_indices = @transform_14, window_bounds = array<i64: 128, 2>}, {pipeline_mode = #tpu.pipeline_mode<synchronous>, transform_indices = @transform_15, window_bounds = array<i64: 1, 2>}, {transform_indices = @transform_16, window_bounds = array<i64: 1, 4, 2>}]} {
    %c0 = arith.constant 0 : index
    %c0_0 = arith.constant 0 : index
    %c0_1 = arith.constant 0 : index
    %0 = vector.load %arg5[%c0, %c0_0, %c0_1] : memref<1x4x3xf32, #tpu.memory_space<vmem>>, vector<1x4x3xf32>
    %1 = vector.shape_cast %0 : vector<1x4x3xf32> to vector<4x3xf32>
    %2 = arith.truncf %1 : vector<4x3xf32> to vector<4x3xbf16>
    %c0_2 = arith.constant 0 : index
    %c0_3 = arith.constant 0 : index
    %3 = vector.load %arg7[%c0_2, %c0_3] : memref<3x128xbf16, #tpu.memory_space<vmem>>, vector<3x128xbf16>
    %cst = arith.constant dense<0.000000e+00> : vector<4x128xf32>
    %4 = tpu.matmul %2, %3, %cst {dimension_numbers = #tpu.dot_dimension_numbers<[1], [0], [0], [1], [0, 0, 1, 1], [], []>} : vector<4x3xbf16>, vector<3x128xbf16>, vector<4x128xf32> -> vector<4x128xf32>
    %c0_4 = arith.constant 0 : index
    %c0_5 = arith.constant 0 : index
    %5 = vector.load %arg8[%c0_4, %c0_5] : memref<1x128xf32, #tpu.memory_space<vmem>>, vector<1x128xf32>
    %6 = vector.broadcast %5 : vector<1x128xf32> to vector<4x128xf32>
    %7 = arith.addf %4, %6 : vector<4x128xf32>
    %c0_6 = arith.constant 0 : index
    %c0_7 = arith.constant 0 : index
    %c0_8 = arith.constant 0 : index
    %c0_9 = arith.constant 0 : index
    %8 = vector.load %arg6[%c0_6, %c0_7, %c0_8, %c0_9] : memref<2x1x1x128xf32, #tpu.memory_space<vmem>>, vector<1x1x1x128xf32>
    %9 = vector.shape_cast %8 : vector<1x1x1x128xf32> to vector<1x128xf32>
    %10 = vector.broadcast %9 : vector<1x128xf32> to vector<4x128xf32>
    %11 = arith.addf %7, %10 : vector<4x128xf32>
    %12 = arith.truncf %11 : vector<4x128xf32> to vector<4x128xbf16>
    %cst_10 = arith.constant 0.000000e+00 : f32
    %13 = vector.broadcast %cst_10 : f32 to vector<4x128xf32>
    %c0_11 = arith.constant 0 : index
    %14 = memref.load %arg1[%c0_11] : memref<3xf32, #tpu.memory_space<smem>>
    %15 = vector.broadcast %14 : f32 to vector<4x128xf32>
    %16 = arith.mulf %15, %11 : vector<4x128xf32>
    %17 = arith.addf %13, %16 : vector<4x128xf32>
    %c0_12 = arith.constant 0 : index
    %c0_13 = arith.constant 0 : index
    %c0_14 = arith.constant 0 : index
    %18 = vector.load %arg9[%c0_12, %c0_13, %c0_14] : memref<2x384x128xbf16, #tpu.memory_space<vmem>>, vector<1x128x128xbf16>
    %19 = vector.shape_cast %18 : vector<1x128x128xbf16> to vector<128x128xbf16>
    %cst_15 = arith.constant dense<0.000000e+00> : vector<4x128xf32>
    %20 = tpu.matmul %12, %19, %cst_15 {dimension_numbers = #tpu.dot_dimension_numbers<[1], [0], [0], [1], [0, 0, 1, 1], [], []>} : vector<4x128xbf16>, vector<128x128xbf16>, vector<4x128xf32> -> vector<4x128xf32>
    %21 = arith.addf %17, %20 : vector<4x128xf32>
    %c0_16 = arith.constant 0 : index
    %c0_17 = arith.constant 0 : index
    %c0_18 = arith.constant 0 : index
    %22 = vector.load %arg10[%c0_16, %c0_17, %c0_18] : memref<4x1x128xf32, #tpu.memory_space<vmem>>, vector<1x1x128xf32>
    %23 = vector.shape_cast %22 : vector<1x1x128xf32> to vector<1x128xf32>
    %24 = vector.broadcast %23 : vector<1x128xf32> to vector<4x128xf32>
    %25 = arith.addf %21, %24 : vector<4x128xf32>
    %c0_19 = arith.constant 0 : index
    %c0_20 = arith.constant 0 : index
    %c0_21 = arith.constant 0 : index
    %26 = vector.load %arg11[%c0_19, %c0_20, %c0_21] : memref<6x128x128xbf16, #tpu.memory_space<vmem>>, vector<1x128x128xbf16>
    %27 = vector.shape_cast %26 : vector<1x128x128xbf16> to vector<128x128xbf16>
    %cst_22 = arith.constant dense<0.000000e+00> : vector<4x128xf32>
    %28 = tpu.matmul %12, %27, %cst_22 {dimension_numbers = #tpu.dot_dimension_numbers<[1], [0], [0], [1], [0, 0, 1, 1], [], []>} : vector<4x128xbf16>, vector<128x128xbf16>, vector<4x128xf32> -> vector<4x128xf32>
    %c0_23 = arith.constant 0 : index
    %c0_24 = arith.constant 0 : index
    %c0_25 = arith.constant 0 : index
    %29 = vector.load %arg12[%c0_23, %c0_24, %c0_25] : memref<6x1x128xf32, #tpu.memory_space<vmem>>, vector<1x1x128xf32>
    %30 = vector.shape_cast %29 : vector<1x1x128xf32> to vector<1x128xf32>
    %31 = vector.broadcast %30 : vector<1x128xf32> to vector<4x128xf32>
    %32 = arith.addf %28, %31 : vector<4x128xf32>
    %c0_26 = arith.constant 0 : index
    %33 = memref.load %arg2[%c0_26] : memref<3xf32, #tpu.memory_space<smem>>
    %34 = math.tanh %32 : vector<4x128xf32>
    %35 = vector.broadcast %33 : f32 to vector<4x128xf32>
    %36 = arith.mulf %35, %34 : vector<4x128xf32>
    %37 = arith.addf %25, %36 : vector<4x128xf32>
    %38 = arith.truncf %11 : vector<4x128xf32> to vector<4x128xbf16>
    %39 = arith.truncf %37 : vector<4x128xf32> to vector<4x128xbf16>
    %cst_27 = arith.constant 0.000000e+00 : f32
    %40 = vector.broadcast %cst_27 : f32 to vector<4x128xf32>
    %c1 = arith.constant 1 : index
    %41 = memref.load %arg1[%c1] : memref<3xf32, #tpu.memory_space<smem>>
    %42 = vector.broadcast %41 : f32 to vector<4x128xf32>
    %43 = arith.mulf %42, %11 : vector<4x128xf32>
    %44 = arith.addf %40, %43 : vector<4x128xf32>
    %c2 = arith.constant 2 : index
    %45 = memref.load %arg1[%c2] : memref<3xf32, #tpu.memory_space<smem>>
    %46 = vector.broadcast %45 : f32 to vector<4x128xf32>
    %47 = arith.mulf %46, %37 : vector<4x128xf32>
    %48 = arith.addf %44, %47 : vector<4x128xf32>
    %49 = tpu.concatenate %38, %39 in 1 : vector<4x128xbf16>, vector<4x128xbf16> -> vector<4x256xbf16>
    %c0_28 = arith.constant 0 : index
    %c128 = arith.constant 128 : index
    %c0_29 = arith.constant 0 : index
    %50 = vector.load %arg9[%c0_28, %c128, %c0_29] : memref<2x384x128xbf16, #tpu.memory_space<vmem>>, vector<1x256x128xbf16>
    %51 = vector.shape_cast %50 : vector<1x256x128xbf16> to vector<256x128xbf16>
    %cst_30 = arith.constant dense<0.000000e+00> : vector<4x128xf32>
    %52 = tpu.matmul %49, %51, %cst_30 {dimension_numbers = #tpu.dot_dimension_numbers<[1], [0], [0], [1], [0, 0, 1, 1], [], []>} : vector<4x256xbf16>, vector<256x128xbf16>, vector<4x128xf32> -> vector<4x128xf32>
    %53 = arith.addf %48, %52 : vector<4x128xf32>
    %c1_31 = arith.constant 1 : index
    %c0_32 = arith.constant 0 : index
    %c0_33 = arith.constant 0 : index
    %54 = vector.load %arg10[%c1_31, %c0_32, %c0_33] : memref<4x1x128xf32, #tpu.memory_space<vmem>>, vector<1x1x128xf32>
    %55 = vector.shape_cast %54 : vector<1x1x128xf32> to vector<1x128xf32>
    %56 = vector.broadcast %55 : vector<1x128xf32> to vector<4x128xf32>
    %57 = arith.addf %53, %56 : vector<4x128xf32>
    %c1_34 = arith.constant 1 : index
    %c0_35 = arith.constant 0 : index
    %c0_36 = arith.constant 0 : index
    %58 = vector.load %arg11[%c1_34, %c0_35, %c0_36] : memref<6x128x128xbf16, #tpu.memory_space<vmem>>, vector<1x128x128xbf16>
    %59 = vector.shape_cast %58 : vector<1x128x128xbf16> to vector<128x128xbf16>
    %cst_37 = arith.constant dense<0.000000e+00> : vector<4x128xf32>
    %60 = tpu.matmul %38, %59, %cst_37 {dimension_numbers = #tpu.dot_dimension_numbers<[1], [0], [0], [1], [0, 0, 1, 1], [], []>} : vector<4x128xbf16>, vector<128x128xbf16>, vector<4x128xf32> -> vector<4x128xf32>
    %c1_38 = arith.constant 1 : index
    %c0_39 = arith.constant 0 : index
    %c0_40 = arith.constant 0 : index
    %61 = vector.load %arg12[%c1_38, %c0_39, %c0_40] : memref<6x1x128xf32, #tpu.memory_space<vmem>>, vector<1x1x128xf32>
    %62 = vector.shape_cast %61 : vector<1x1x128xf32> to vector<1x128xf32>
    %63 = vector.broadcast %62 : vector<1x128xf32> to vector<4x128xf32>
    %64 = arith.addf %60, %63 : vector<4x128xf32>
    %c1_41 = arith.constant 1 : index
    %65 = memref.load %arg2[%c1_41] : memref<3xf32, #tpu.memory_space<smem>>
    %66 = math.tanh %64 : vector<4x128xf32>
    %67 = vector.broadcast %65 : f32 to vector<4x128xf32>
    %68 = arith.mulf %67, %66 : vector<4x128xf32>
    %69 = arith.addf %57, %68 : vector<4x128xf32>
    %c2_42 = arith.constant 2 : index
    %c0_43 = arith.constant 0 : index
    %c0_44 = arith.constant 0 : index
    %70 = vector.load %arg11[%c2_42, %c0_43, %c0_44] : memref<6x128x128xbf16, #tpu.memory_space<vmem>>, vector<1x128x128xbf16>
    %71 = vector.shape_cast %70 : vector<1x128x128xbf16> to vector<128x128xbf16>
    %cst_45 = arith.constant dense<0.000000e+00> : vector<4x128xf32>
    %72 = tpu.matmul %39, %71, %cst_45 {dimension_numbers = #tpu.dot_dimension_numbers<[1], [0], [0], [1], [0, 0, 1, 1], [], []>} : vector<4x128xbf16>, vector<128x128xbf16>, vector<4x128xf32> -> vector<4x128xf32>
    %c2_46 = arith.constant 2 : index
    %c0_47 = arith.constant 0 : index
    %c0_48 = arith.constant 0 : index
    %73 = vector.load %arg12[%c2_46, %c0_47, %c0_48] : memref<6x1x128xf32, #tpu.memory_space<vmem>>, vector<1x1x128xf32>
    %74 = vector.shape_cast %73 : vector<1x1x128xf32> to vector<1x128xf32>
    %75 = vector.broadcast %74 : vector<1x128xf32> to vector<4x128xf32>
    %76 = arith.addf %72, %75 : vector<4x128xf32>
    %c2_49 = arith.constant 2 : index
    %77 = memref.load %arg2[%c2_49] : memref<3xf32, #tpu.memory_space<smem>>
    %78 = math.tanh %76 : vector<4x128xf32>
    %79 = vector.broadcast %77 : f32 to vector<4x128xf32>
    %80 = arith.mulf %79, %78 : vector<4x128xf32>
    %81 = arith.addf %69, %80 : vector<4x128xf32>
    %82 = arith.addf %37, %81 : vector<4x128xf32>
    %cst_50 = arith.constant 5.000000e-01 : f32
    %83 = vector.broadcast %cst_50 : f32 to vector<4x128xf32>
    %84 = arith.mulf %82, %83 : vector<4x128xf32>
    %c1_51 = arith.constant 1 : index
    %c0_52 = arith.constant 0 : index
    %c0_53 = arith.constant 0 : index
    %c0_54 = arith.constant 0 : index
    %85 = vector.load %arg6[%c1_51, %c0_52, %c0_53, %c0_54] : memref<2x1x1x128xf32, #tpu.memory_space<vmem>>, vector<1x1x1x128xf32>
    %86 = vector.shape_cast %85 : vector<1x1x1x128xf32> to vector<1x128xf32>
    %87 = vector.broadcast %86 : vector<1x128xf32> to vector<4x128xf32>
    %88 = arith.addf %84, %87 : vector<4x128xf32>
    %89 = arith.truncf %88 : vector<4x128xf32> to vector<4x128xbf16>
    %cst_55 = arith.constant 0.000000e+00 : f32
    %90 = vector.broadcast %cst_55 : f32 to vector<4x128xf32>
    %c0_56 = arith.constant 0 : index
    %91 = memref.load %arg1[%c0_56] : memref<3xf32, #tpu.memory_space<smem>>
    %92 = vector.broadcast %91 : f32 to vector<4x128xf32>
    %93 = arith.mulf %92, %88 : vector<4x128xf32>
    %94 = arith.addf %90, %93 : vector<4x128xf32>
    %c1_57 = arith.constant 1 : index
    %c0_58 = arith.constant 0 : index
    %c0_59 = arith.constant 0 : index
    %95 = vector.load %arg9[%c1_57, %c0_58, %c0_59] : memref<2x384x128xbf16, #tpu.memory_space<vmem>>, vector<1x128x128xbf16>
    %96 = vector.shape_cast %95 : vector<1x128x128xbf16> to vector<128x128xbf16>
    %cst_60 = arith.constant dense<0.000000e+00> : vector<4x128xf32>
    %97 = tpu.matmul %89, %96, %cst_60 {dimension_numbers = #tpu.dot_dimension_numbers<[1], [0], [0], [1], [0, 0, 1, 1], [], []>} : vector<4x128xbf16>, vector<128x128xbf16>, vector<4x128xf32> -> vector<4x128xf32>
    %98 = arith.addf %94, %97 : vector<4x128xf32>
    %c2_61 = arith.constant 2 : index
    %c0_62 = arith.constant 0 : index
    %c0_63 = arith.constant 0 : index
    %99 = vector.load %arg10[%c2_61, %c0_62, %c0_63] : memref<4x1x128xf32, #tpu.memory_space<vmem>>, vector<1x1x128xf32>
    %100 = vector.shape_cast %99 : vector<1x1x128xf32> to vector<1x128xf32>
    %101 = vector.broadcast %100 : vector<1x128xf32> to vector<4x128xf32>
    %102 = arith.addf %98, %101 : vector<4x128xf32>
    %c3 = arith.constant 3 : index
    %c0_64 = arith.constant 0 : index
    %c0_65 = arith.constant 0 : index
    %103 = vector.load %arg11[%c3, %c0_64, %c0_65] : memref<6x128x128xbf16, #tpu.memory_space<vmem>>, vector<1x128x128xbf16>
    %104 = vector.shape_cast %103 : vector<1x128x128xbf16> to vector<128x128xbf16>
    %cst_66 = arith.constant dense<0.000000e+00> : vector<4x128xf32>
    %105 = tpu.matmul %89, %104, %cst_66 {dimension_numbers = #tpu.dot_dimension_numbers<[1], [0], [0], [1], [0, 0, 1, 1], [], []>} : vector<4x128xbf16>, vector<128x128xbf16>, vector<4x128xf32> -> vector<4x128xf32>
    %c3_67 = arith.constant 3 : index
    %c0_68 = arith.constant 0 : index
    %c0_69 = arith.constant 0 : index
    %106 = vector.load %arg12[%c3_67, %c0_68, %c0_69] : memref<6x1x128xf32, #tpu.memory_space<vmem>>, vector<1x1x128xf32>
    %107 = vector.shape_cast %106 : vector<1x1x128xf32> to vector<1x128xf32>
    %108 = vector.broadcast %107 : vector<1x128xf32> to vector<4x128xf32>
    %109 = arith.addf %105, %108 : vector<4x128xf32>
    %c0_70 = arith.constant 0 : index
    %110 = memref.load %arg2[%c0_70] : memref<3xf32, #tpu.memory_space<smem>>
    %111 = math.tanh %109 : vector<4x128xf32>
    %112 = vector.broadcast %110 : f32 to vector<4x128xf32>
    %113 = arith.mulf %112, %111 : vector<4x128xf32>
    %114 = arith.addf %102, %113 : vector<4x128xf32>
    %115 = arith.truncf %88 : vector<4x128xf32> to vector<4x128xbf16>
    %116 = arith.truncf %114 : vector<4x128xf32> to vector<4x128xbf16>
    %cst_71 = arith.constant 0.000000e+00 : f32
    %117 = vector.broadcast %cst_71 : f32 to vector<4x128xf32>
    %c1_72 = arith.constant 1 : index
    %118 = memref.load %arg1[%c1_72] : memref<3xf32, #tpu.memory_space<smem>>
    %119 = vector.broadcast %118 : f32 to vector<4x128xf32>
    %120 = arith.mulf %119, %88 : vector<4x128xf32>
    %121 = arith.addf %117, %120 : vector<4x128xf32>
    %c2_73 = arith.constant 2 : index
    %122 = memref.load %arg1[%c2_73] : memref<3xf32, #tpu.memory_space<smem>>
    %123 = vector.broadcast %122 : f32 to vector<4x128xf32>
    %124 = arith.mulf %123, %114 : vector<4x128xf32>
    %125 = arith.addf %121, %124 : vector<4x128xf32>
    %126 = tpu.concatenate %115, %116 in 1 : vector<4x128xbf16>, vector<4x128xbf16> -> vector<4x256xbf16>
    %c1_74 = arith.constant 1 : index
    %c128_75 = arith.constant 128 : index
    %c0_76 = arith.constant 0 : index
    %127 = vector.load %arg9[%c1_74, %c128_75, %c0_76] : memref<2x384x128xbf16, #tpu.memory_space<vmem>>, vector<1x256x128xbf16>
    %128 = vector.shape_cast %127 : vector<1x256x128xbf16> to vector<256x128xbf16>
    %cst_77 = arith.constant dense<0.000000e+00> : vector<4x128xf32>
    %129 = tpu.matmul %126, %128, %cst_77 {dimension_numbers = #tpu.dot_dimension_numbers<[1], [0], [0], [1], [0, 0, 1, 1], [], []>} : vector<4x256xbf16>, vector<256x128xbf16>, vector<4x128xf32> -> vector<4x128xf32>
    %130 = arith.addf %125, %129 : vector<4x128xf32>
    %c3_78 = arith.constant 3 : index
    %c0_79 = arith.constant 0 : index
    %c0_80 = arith.constant 0 : index
    %131 = vector.load %arg10[%c3_78, %c0_79, %c0_80] : memref<4x1x128xf32, #tpu.memory_space<vmem>>, vector<1x1x128xf32>
    %132 = vector.shape_cast %131 : vector<1x1x128xf32> to vector<1x128xf32>
    %133 = vector.broadcast %132 : vector<1x128xf32> to vector<4x128xf32>
    %134 = arith.addf %130, %133 : vector<4x128xf32>
    %c4 = arith.constant 4 : index
    %c0_81 = arith.constant 0 : index
    %c0_82 = arith.constant 0 : index
    %135 = vector.load %arg11[%c4, %c0_81, %c0_82] : memref<6x128x128xbf16, #tpu.memory_space<vmem>>, vector<1x128x128xbf16>
    %136 = vector.shape_cast %135 : vector<1x128x128xbf16> to vector<128x128xbf16>
    %cst_83 = arith.constant dense<0.000000e+00> : vector<4x128xf32>
    %137 = tpu.matmul %115, %136, %cst_83 {dimension_numbers = #tpu.dot_dimension_numbers<[1], [0], [0], [1], [0, 0, 1, 1], [], []>} : vector<4x128xbf16>, vector<128x128xbf16>, vector<4x128xf32> -> vector<4x128xf32>
    %c4_84 = arith.constant 4 : index
    %c0_85 = arith.constant 0 : index
    %c0_86 = arith.constant 0 : index
    %138 = vector.load %arg12[%c4_84, %c0_85, %c0_86] : memref<6x1x128xf32, #tpu.memory_space<vmem>>, vector<1x1x128xf32>
    %139 = vector.shape_cast %138 : vector<1x1x128xf32> to vector<1x128xf32>
    %140 = vector.broadcast %139 : vector<1x128xf32> to vector<4x128xf32>
    %141 = arith.addf %137, %140 : vector<4x128xf32>
    %c1_87 = arith.constant 1 : index
    %142 = memref.load %arg2[%c1_87] : memref<3xf32, #tpu.memory_space<smem>>
    %143 = math.tanh %141 : vector<4x128xf32>
    %144 = vector.broadcast %142 : f32 to vector<4x128xf32>
    %145 = arith.mulf %144, %143 : vector<4x128xf32>
    %146 = arith.addf %134, %145 : vector<4x128xf32>
    %c5 = arith.constant 5 : index
    %c0_88 = arith.constant 0 : index
    %c0_89 = arith.constant 0 : index
    %147 = vector.load %arg11[%c5, %c0_88, %c0_89] : memref<6x128x128xbf16, #tpu.memory_space<vmem>>, vector<1x128x128xbf16>
    %148 = vector.shape_cast %147 : vector<1x128x128xbf16> to vector<128x128xbf16>
    %cst_90 = arith.constant dense<0.000000e+00> : vector<4x128xf32>
    %149 = tpu.matmul %116, %148, %cst_90 {dimension_numbers = #tpu.dot_dimension_numbers<[1], [0], [0], [1], [0, 0, 1, 1], [], []>} : vector<4x128xbf16>, vector<128x128xbf16>, vector<4x128xf32> -> vector<4x128xf32>
    %c5_91 = arith.constant 5 : index
    %c0_92 = arith.constant 0 : index
    %c0_93 = arith.constant 0 : index
    %150 = vector.load %arg12[%c5_91, %c0_92, %c0_93] : memref<6x1x128xf32, #tpu.memory_space<vmem>>, vector<1x1x128xf32>
    %151 = vector.shape_cast %150 : vector<1x1x128xf32> to vector<1x128xf32>
    %152 = vector.broadcast %151 : vector<1x128xf32> to vector<4x128xf32>
    %153 = arith.addf %149, %152 : vector<4x128xf32>
    %c2_94 = arith.constant 2 : index
    %154 = memref.load %arg2[%c2_94] : memref<3xf32, #tpu.memory_space<smem>>
    %155 = math.tanh %153 : vector<4x128xf32>
    %156 = vector.broadcast %154 : f32 to vector<4x128xf32>
    %157 = arith.mulf %156, %155 : vector<4x128xf32>
    %158 = arith.addf %146, %157 : vector<4x128xf32>
    %159 = arith.addf %114, %158 : vector<4x128xf32>
    %cst_95 = arith.constant 5.000000e-01 : f32
    %160 = vector.broadcast %cst_95 : f32 to vector<4x128xf32>
    %161 = arith.mulf %159, %160 : vector<4x128xf32>
    %c0_96 = arith.constant 0 : index
    %162 = memref.load %arg4[%c0_96] : memref<1xf32, #tpu.memory_space<smem>>
    %163 = vector.broadcast %162 : f32 to vector<4x128xf32>
    %164 = arith.mulf %161, %163 : vector<4x128xf32>
    %165 = arith.truncf %164 : vector<4x128xf32> to vector<4x128xbf16>
    %c0_97 = arith.constant 0 : index
    %c0_98 = arith.constant 0 : index
    %166 = vector.load %arg13[%c0_97, %c0_98] : memref<128x2xbf16, #tpu.memory_space<vmem>>, vector<128x2xbf16>
    %cst_99 = arith.constant dense<0.000000e+00> : vector<4x2xf32>
    %167 = tpu.matmul %165, %166, %cst_99 {dimension_numbers = #tpu.dot_dimension_numbers<[1], [0], [0], [1], [0, 0, 1, 1], [], []>} : vector<4x128xbf16>, vector<128x2xbf16>, vector<4x2xf32> -> vector<4x2xf32>
    %c0_100 = arith.constant 0 : index
    %c0_101 = arith.constant 0 : index
    %168 = vector.load %arg14[%c0_100, %c0_101] : memref<1x2xf32, #tpu.memory_space<vmem>>, vector<1x2xf32>
    %169 = vector.broadcast %168 : vector<1x2xf32> to vector<4x2xf32>
    %170 = arith.addf %167, %169 : vector<4x2xf32>
    %c0_102 = arith.constant 0 : index
    %c0_103 = arith.constant 0 : index
    %171 = vector.load %arg15[%c0_102, %c0_103] : memref<128x2xbf16, #tpu.memory_space<vmem>>, vector<128x2xbf16>
    %cst_104 = arith.constant dense<0.000000e+00> : vector<4x2xf32>
    %172 = tpu.matmul %165, %171, %cst_104 {dimension_numbers = #tpu.dot_dimension_numbers<[1], [0], [0], [1], [0, 0, 1, 1], [], []>} : vector<4x128xbf16>, vector<128x2xbf16>, vector<4x2xf32> -> vector<4x2xf32>
    %c0_105 = arith.constant 0 : index
    %c0_106 = arith.constant 0 : index
    %173 = vector.load %arg16[%c0_105, %c0_106] : memref<1x2xf32, #tpu.memory_space<vmem>>, vector<1x2xf32>
    %174 = vector.broadcast %173 : vector<1x2xf32> to vector<4x2xf32>
    %175 = arith.addf %172, %174 : vector<4x2xf32>
    %c0_107 = arith.constant 0 : index
    %176 = memref.load %arg3[%c0_107] : memref<1xf32, #tpu.memory_space<smem>>
    %cst_108 = arith.constant 0.000000e+00 : f32
    %177 = vector.broadcast %cst_108 : f32 to vector<4x2xf32>
    %178 = arith.maximumf %175, %177 : vector<4x2xf32>
    %179 = vector.broadcast %176 : f32 to vector<4x2xf32>
    %180 = arith.mulf %179, %178 : vector<4x2xf32>
    %181 = arith.addf %170, %180 : vector<4x2xf32>
    %c0_109 = arith.constant 0 : index
    %c0_110 = arith.constant 0 : index
    %c0_111 = arith.constant 0 : index
    %182 = vector.load %arg17[%c0_109, %c0_110, %c0_111] : memref<1x4x2xf32, #tpu.memory_space<vmem>>, vector<1x4x2xf32>
    %183 = vector.shape_cast %182 : vector<1x4x2xf32> to vector<4x2xf32>
    %184 = vector.shape_cast %181 : vector<4x2xf32> to vector<1x4x2xf32>
    tpu.vector_store %arg17[%c0_109, %c0_110, %c0_111], %184 {strides = array<i32>} : memref<1x4x2xf32, #tpu.memory_space<vmem>>, vector<1x4x2xf32>,
    return
  }
  func.func @transform_0(%arg0: i32) -> i32 {
    %c0_i32 = arith.constant 0 : i32
    %c0_i32_0 = arith.constant 0 : i32
    return %c0_i32 : i32
  }
  func.func @transform_1(%arg0: i32) -> i32 {
    %c0_i32 = arith.constant 0 : i32
    %c0_i32_0 = arith.constant 0 : i32
    return %c0_i32 : i32
  }
  func.func @transform_2(%arg0: i32) -> i32 {
    %c0_i32 = arith.constant 0 : i32
    %c0_i32_0 = arith.constant 0 : i32
    return %c0_i32 : i32
  }
  func.func @transform_3(%arg0: i32) -> i32 {
    %c0_i32 = arith.constant 0 : i32
    %c0_i32_0 = arith.constant 0 : i32
    return %c0_i32 : i32
  }
  func.func @transform_4(%arg0: i32) -> (i32, i32, i32) {
    %c0_i32 = arith.constant 0 : i32
    %c0_i32_0 = arith.constant 0 : i32
    %c0_i32_1 = arith.constant 0 : i32
    return %arg0, %c0_i32, %c0_i32_0 : i32, i32, i32
  }
  func.func @transform_5(%arg0: i32) -> (i32, i32, i32, i32) {
    %c0_i32 = arith.constant 0 : i32
    %c0_i32_0 = arith.constant 0 : i32
    %c0_i32_1 = arith.constant 0 : i32
    %c0_i32_2 = arith.constant 0 : i32
    return %c0_i32, %arg0, %c0_i32_0, %c0_i32_1 : i32, i32, i32, i32
  }
  func.func @transform_6(%arg0: i32) -> (i32, i32) {
    %c0_i32 = arith.constant 0 : i32
    %c0_i32_0 = arith.constant 0 : i32
    %c0_i32_1 = arith.constant 0 : i32
    return %c0_i32, %c0_i32_0 : i32, i32
  }
  func.func @transform_7(%arg0: i32) -> (i32, i32) {
    %c0_i32 = arith.constant 0 : i32
    %c0_i32_0 = arith.constant 0 : i32
    %c0_i32_1 = arith.constant 0 : i32
    return %c0_i32, %c0_i32_0 : i32, i32
  }
  func.func @transform_8(%arg0: i32) -> (i32, i32, i32) {
    %c0_i32 = arith.constant 0 : i32
    %c0_i32_0 = arith.constant 0 : i32
    %c0_i32_1 = arith.constant 0 : i32
    %c0_i32_2 = arith.constant 0 : i32
    return %c0_i32, %c0_i32_0, %c0_i32_1 : i32, i32, i32
  }
  func.func @transform_9(%arg0: i32) -> (i32, i32, i32) {
    %c0_i32 = arith.constant 0 : i32
    %c0_i32_0 = arith.constant 0 : i32
    %c0_i32_1 = arith.constant 0 : i32
    %c0_i32_2 = arith.constant 0 : i32
    return %c0_i32, %c0_i32_0, %c0_i32_1 : i32, i32, i32
  }
  func.func @transform_10(%arg0: i32) -> (i32, i32, i32) {
    %c0_i32 = arith.constant 0 : i32
    %c0_i32_0 = arith.constant 0 : i32
    %c0_i32_1 = arith.constant 0 : i32
    %c0_i32_2 = arith.constant 0 : i32
    return %c0_i32, %c0_i32_0, %c0_i32_1 : i32, i32, i32
  }
  func.func @transform_11(%arg0: i32) -> (i32, i32, i32) {
    %c0_i32 = arith.constant 0 : i32
    %c0_i32_0 = arith.constant 0 : i32
    %c0_i32_1 = arith.constant 0 : i32
    %c0_i32_2 = arith.constant 0 : i32
    return %c0_i32, %c0_i32_0, %c0_i32_1 : i32, i32, i32
  }
  func.func @transform_12(%arg0: i32) -> (i32, i32) {
    %c0_i32 = arith.constant 0 : i32
    %c0_i32_0 = arith.constant 0 : i32
    %c0_i32_1 = arith.constant 0 : i32
    return %c0_i32, %c0_i32_0 : i32, i32
  }
  func.func @transform_13(%arg0: i32) -> (i32, i32) {
    %c0_i32 = arith.constant 0 : i32
    %c0_i32_0 = arith.constant 0 : i32
    %c0_i32_1 = arith.constant 0 : i32
    return %c0_i32, %c0_i32_0 : i32, i32
  }
  func.func @transform_14(%arg0: i32) -> (i32, i32) {
    %c0_i32 = arith.constant 0 : i32
    %c0_i32_0 = arith.constant 0 : i32
    %c0_i32_1 = arith.constant 0 : i32
    return %c0_i32, %c0_i32_0 : i32, i32
  }
  func.func @transform_15(%arg0: i32) -> (i32, i32) {
    %c0_i32 = arith.constant 0 : i32
    %c0_i32_0 = arith.constant 0 : i32
    %c0_i32_1 = arith.constant 0 : i32
    return %c0_i32, %c0_i32_0 : i32, i32
  }
  func.func @transform_16(%arg0: i32) -> (i32, i32, i32) {
    %c0_i32 = arith.constant 0 : i32
    %c0_i32_0 = arith.constant 0 : i32
    %c0_i32_1 = arith.constant 0 : i32
    return %arg0, %c0_i32, %c0_i32_0 : i32, i32, i32
  }
}

</mosaic_0001>

<llo_original>
// kernel: forward.2
$region0: #{forward.2}
  #allocation0 [shape = 'u32[]', space=smem, size = 0x4, offset = 0x4, fixed_abs, tag = 'smem constant byte address 0x4 - core index']
  #allocation1 [shape = 'u32[144,128]{1,0:T(1,128)}', space=vmem, size = 0x12000, scoped, tag = 'internal scratch']
  #allocation2 [shape = 'f32[1]{0:T(128)S(6)}', space=smem, size = 0x200, scoped, tag = 'scoped memory for forward.2']
  %s0 = inlined_call_operand.vmem [shape: f32[3], index: 0, kind: input, shape index: {}]
  %s1 = inlined_call_operand.vmem [shape: f32[3], index: 1, kind: input, shape index: {}]
  %s2 = inlined_call_operand.<no memory space> [shape: f32[1], index: 2, kind: input, shape index: {}]
  %s3 = inlined_call_operand.vmem [shape: f32[2,8,5], index: 3, kind: input, shape index: {}]
  %s4 = inlined_call_operand.vmem [shape: bf16[5,128], index: 4, kind: input, shape index: {}]
  %s5 = inlined_call_operand.vmem [shape: f32[1,128], index: 5, kind: input, shape index: {}]
  %s6 = inlined_call_operand.vmem [shape: bf16[2,384,128], index: 6, kind: input, shape index: {}]
  %s7 = inlined_call_operand.vmem [shape: f32[4,1,128], index: 7, kind: input, shape index: {}]
  %s8 = inlined_call_operand.vmem [shape: bf16[6,128,128], index: 8, kind: input, shape index: {}]
  %s9 = inlined_call_operand.vmem [shape: f32[6,1,128], index: 9, kind: input, shape index: {}]
  %s10 = inlined_call_operand.vmem [shape: bf16[128,2], index: 10, kind: input, shape index: {}]
  %s11 = inlined_call_operand.vmem [shape: f32[1,2], index: 11, kind: input, shape index: {}]
  %s12 = inlined_call_operand.vmem [shape: bf16[128,2], index: 12, kind: input, shape index: {}]
  %s13 = inlined_call_operand.vmem [shape: f32[1,2], index: 13, kind: input, shape index: {}]
  %s14 = inlined_call_operand.vmem [shape: f32[2,8,2], index: 14, kind: output, shape index: {0}]
  %s15 = inlined_call_operand.vmem [shape: f32[2,2,1,128], index: 15, kind: output, shape index: {1}]
  %16 = xla_tuple %s14, %s15
  %s17 = sld [smem:[#allocation0]]
  $region135: #{forward.2} parent=0
    _
  %s19 = ssub.s32 1, %s17
  %s20 = scalar_select 0, %s19, %s17
  %21 = sst [smem:[#allocation2]] %s2
  $region1: #{forward.2} parent=0
    #allocation3 [shape = 'u8[512]{0}', space=smem, size = 0x200, scoped, tag = 'input window, operand 0, single buffered']
    #allocation4 [shape = 's32[2]{0}', space=sflag, size = 0x8, scoped, tag = 'scoped memory for forward.2']
    #allocation5 [shape = 'u8[512]{0}', space=smem, size = 0x200, scoped, tag = 'input window, operand 1, single buffered']
    #allocation6 [shape = 's32[1]{0}', space=sflag, size = 0x4, scoped, tag = 'scoped memory for forward.2']
    #allocation7 [shape = 'u8[2048]{0}', space=vmem, size = 0x800, scoped, tag = 'output window, operand 1']
    %22 = vsyncpa [#allocation4], 0
    %23 = vsyncpa [#allocation6], 0
    loop: start=0, step=1, limit=4
    $region2: #{forward.2} parent=1 // loop_pre_header
      _
    $region3: #{forward.2} parent=1 // loop_header
      %s25 = sphi 0, %s29
      %p26 = scmp.ge.s32.totalorder %s25, 4
      %s33 = sphi 0, %s33
      %s35 = sphi 0, %s33
      %s36 = sphi 0, %s35
      %s50 = sphi 0, %s36
      %s54 = sphi 0, %s54
      %s56 = sphi 0, %s54
      %s57 = sphi 0, %s56
      %s71 = sphi 0, %s57
      %s75 = sphi 0, %s75
      %s77 = sphi 0, %s75
      %s78 = sphi 0, %s77
      %s92 = sphi 0, %s78
      %s98 = sphi 0, %s100
      %s101 = sphi 0, %s98
      %s102 = sphi 0, %s101
      %s118 = sphi 0, %s102
      %s122 = sphi 0, %s122
      %s124 = sphi 0, %s122
      %s125 = sphi 0, %s124
      %s139 = sphi 0, %s125
      %s143 = sphi 0, %s143
      %s145 = sphi 0, %s143
      %s146 = sphi 0, %s145
      %s160 = sphi 0, %s146
      %s164 = sphi 0, %s164
      %s166 = sphi 0, %s164
      %s167 = sphi 0, %s166
      %s181 = sphi 0, %s167
      %s185 = sphi 0, %s185
      %s187 = sphi 0, %s185
      %s188 = sphi 0, %s187
      %s202 = sphi 0, %s188
      %s206 = sphi 0, %s206
      %s208 = sphi 0, %s206
      %s209 = sphi 0, %s208
      %s223 = sphi 0, %s209
      %s227 = sphi 0, %s227
      %s229 = sphi 0, %s227
      %s230 = sphi 0, %s229
      %s244 = sphi 0, %s230
      %s248 = sphi 0, %s248
      %s250 = sphi 0, %s248
      %s251 = sphi 0, %s250
      %s265 = sphi 0, %s251
      %s269 = sphi 0, %s269
      %s271 = sphi 0, %s269
      %s272 = sphi 0, %s271
      %s286 = sphi 0, %s272
      %s290 = sphi 0, %s290
      %s292 = sphi 0, %s290
      %s293 = sphi 0, %s292
      %s307 = sphi 0, %s293
      %s311 = sphi 0, %s311
      %s313 = sphi 0, %s311
      %s314 = sphi 0, %s313
      %s328 = sphi 0, %s314
      %s334 = sphi 0, %s336
      %s337 = sphi 0, %s334
      %s338 = sphi 0, %s337
      %s354 = sphi 0, %s338
      %s360 = sphi 0, %s362
      %s363 = sphi 0, %s360
      %s364 = sphi 0, %s363
      %s380 = sphi 0, %s364
    $region4: #{forward.2} parent=1 // loop_header_branch
      %28 = sbr.rel (%p26) target = $region8
    $region5: #{forward.2} parent=1 // loop_body
      %s30 = ssub.s32 %s25, 1
      %s31 = ssub.s32 %s25, 2
      %s32 = sadd.s32 %s25, 1
      %s34 = sadd.s32 %s33, 1
      %p37 = scmp.eq.s32.totalorder %s25, 1
      %p38 = scmp.ne.s32.totalorder %s33, %s35
      %p39 = scmp.eq.s32.totalorder %s25, 0
      %p40 = por %p38, %p39
      %p41 = scmp.ne.s32.totalorder %s33, %s35
      %p42 = scmp.eq.s32.totalorder %s30, 1
      %p43 = por %p41, %p42
      %p44 = scmp.ne.s32.totalorder %s35, %s36
      %p45 = scmp.eq.s32.totalorder %s30, 0
      %p46 = por %p44, %p45
      %p47 = scmp.ne.s32.totalorder %s35, %s36
      %p48 = scmp.eq.s32.totalorder %s31, 1
      %p49 = por %p47, %p48
      %p51 = scmp.ne.s32.totalorder %s36, %s50
      %p52 = scmp.eq.s32.totalorder %s31, 0
      %p53 = por %p51, %p52
      %s55 = sadd.s32 %s54, 1
      %p58 = scmp.eq.s32.totalorder %s25, 1
      %p59 = scmp.ne.s32.totalorder %s54, %s56
      %p60 = scmp.eq.s32.totalorder %s25, 0
      %p61 = por %p59, %p60
      %p62 = scmp.ne.s32.totalorder %s54, %s56
      %p63 = scmp.eq.s32.totalorder %s30, 1
      %p64 = por %p62, %p63
      %p65 = scmp.ne.s32.totalorder %s56, %s57
      %p66 = scmp.eq.s32.totalorder %s30, 0
      %p67 = por %p65, %p66
      %p68 = scmp.ne.s32.totalorder %s56, %s57
      %p69 = scmp.eq.s32.totalorder %s31, 1
      %p70 = por %p68, %p69
      %p72 = scmp.ne.s32.totalorder %s57, %s71
      %p73 = scmp.eq.s32.totalorder %s31, 0
      %p74 = por %p72, %p73
      %s76 = sadd.s32 %s75, 1
      %p79 = scmp.eq.s32.totalorder %s25, 1
      %p80 = scmp.ne.s32.totalorder %s75, %s77
      %p81 = scmp.eq.s32.totalorder %s25, 0
      %p82 = por %p80, %p81
      %p83 = scmp.ne.s32.totalorder %s75, %s77
      %p84 = scmp.eq.s32.totalorder %s30, 1
      %p85 = por %p83, %p84
      %p86 = scmp.ne.s32.totalorder %s77, %s78
      %p87 = scmp.eq.s32.totalorder %s30, 0
      %p88 = por %p86, %p87
      %p89 = scmp.ne.s32.totalorder %s77, %s78
      %p90 = scmp.eq.s32.totalorder %s31, 1
      %p91 = por %p89, %p90
      %p93 = scmp.ne.s32.totalorder %s78, %s92
      %p94 = scmp.eq.s32.totalorder %s31, 0
      %p95 = por %p93, %p94
      %s96 = ssub.s32 %s25, %s32
      %p97 = scmp.eq.s32.totalorder %s96, 0
      %s99 = sadd.s32 %s98, 1
      %s100 = scalar_select %p97, %s98, %s99
      %p103 = pneg %p97
      %p104 = scmp.eq.s32.totalorder %s25, 1
      %p105 = por %p103, %p104
      %p106 = scmp.ne.s32.totalorder %s98, %s101
      %p107 = scmp.eq.s32.totalorder %s25, 0
      %p108 = por %p106, %p107
      %p109 = scmp.ne.s32.totalorder %s98, %s101
      %p110 = scmp.eq.s32.totalorder %s30, 1
      %p111 = por %p109, %p110
      %p112 = scmp.ne.s32.totalorder %s101, %s102
      %p113 = scmp.eq.s32.totalorder %s30, 0
      %p114 = por %p112, %p113
      %p115 = scmp.ne.s32.totalorder %s101, %s102
      %p116 = scmp.eq.s32.totalorder %s31, 1
      %p117 = por %p115, %p116
      %p119 = scmp.ne.s32.totalorder %s102, %s118
      %p120 = scmp.eq.s32.totalorder %s31, 0
      %p121 = por %p119, %p120
      %s123 = sadd.s32 %s122, 1
      %p126 = scmp.eq.s32.totalorder %s25, 1
      %p127 = scmp.ne.s32.totalorder %s122, %s124
      %p128 = scmp.eq.s32.totalorder %s25, 0
      %p129 = por %p127, %p128
      %p130 = scmp.ne.s32.totalorder %s122, %s124
      %p131 = scmp.eq.s32.totalorder %s30, 1
      %p132 = por %p130, %p131
      %p133 = scmp.ne.s32.totalorder %s124, %s125
      %p134 = scmp.eq.s32.totalorder %s30, 0
      %p135 = por %p133, %p134
      %p136 = scmp.ne.s32.totalorder %s124, %s125
      %p137 = scmp.eq.s32.totalorder %s31, 1
      %p138 = por %p136, %p137
      %p140 = scmp.ne.s32.totalorder %s125, %s139
      %p141 = scmp.eq.s32.totalorder %s31, 0
      %p142 = por %p140, %p141
      %s144 = sadd.s32 %s143, 1
      %p147 = scmp.eq.s32.totalorder %s25, 1
      %p148 = scmp.ne.s32.totalorder %s143, %s145
      %p149 = scmp.eq.s32.totalorder %s25, 0
      %p150 = por %p148, %p149
      %p151 = scmp.ne.s32.totalorder %s143, %s145
      %p152 = scmp.eq.s32.totalorder %s30, 1
      %p153 = por %p151, %p152
      %p154 = scmp.ne.s32.totalorder %s145, %s146
      %p155 = scmp.eq.s32.totalorder %s30, 0
      %p156 = por %p154, %p155
      %p157 = scmp.ne.s32.totalorder %s145, %s146
      %p158 = scmp.eq.s32.totalorder %s31, 1
      %p159 = por %p157, %p158
      %p161 = scmp.ne.s32.totalorder %s146, %s160
      %p162 = scmp.eq.s32.totalorder %s31, 0
      %p163 = por %p161, %p162
      %s165 = sadd.s32 %s164, 1
      %p168 = scmp.eq.s32.totalorder %s25, 1
      %p169 = scmp.ne.s32.totalorder %s164, %s166
      %p170 = scmp.eq.s32.totalorder %s25, 0
      %p171 = por %p169, %p170
      %p172 = scmp.ne.s32.totalorder %s164, %s166
      %p173 = scmp.eq.s32.totalorder %s30, 1
      %p174 = por %p172, %p173
      %p175 = scmp.ne.s32.totalorder %s166, %s167
      %p176 = scmp.eq.s32.totalorder %s30, 0
      %p177 = por %p175, %p176
      %p178 = scmp.ne.s32.totalorder %s166, %s167
      %p179 = scmp.eq.s32.totalorder %s31, 1
      %p180 = por %p178, %p179
      %p182 = scmp.ne.s32.totalorder %s167, %s181
      %p183 = scmp.eq.s32.totalorder %s31, 0
      %p184 = por %p182, %p183
      %s186 = sadd.s32 %s185, 1
      %p189 = scmp.eq.s32.totalorder %s25, 1
      %p190 = scmp.ne.s32.totalorder %s185, %s187
      %p191 = scmp.eq.s32.totalorder %s25, 0
      %p192 = por %p190, %p191
      %p193 = scmp.ne.s32.totalorder %s185, %s187
      %p194 = scmp.eq.s32.totalorder %s30, 1
      %p195 = por %p193, %p194
      %p196 = scmp.ne.s32.totalorder %s187, %s188
      %p197 = scmp.eq.s32.totalorder %s30, 0
      %p198 = por %p196, %p197
      %p199 = scmp.ne.s32.totalorder %s187, %s188
      %p200 = scmp.eq.s32.totalorder %s31, 1
      %p201 = por %p199, %p200
      %p203 = scmp.ne.s32.totalorder %s188, %s202
      %p204 = scmp.eq.s32.totalorder %s31, 0
      %p205 = por %p203, %p204
      %s207 = sadd.s32 %s206, 1
      %p210 = scmp.eq.s32.totalorder %s25, 1
      %p211 = scmp.ne.s32.totalorder %s206, %s208
      %p212 = scmp.eq.s32.totalorder %s25, 0
      %p213 = por %p211, %p212
      %p214 = scmp.ne.s32.totalorder %s206, %s208
      %p215 = scmp.eq.s32.totalorder %s30, 1
      %p216 = por %p214, %p215
      %p217 = scmp.ne.s32.totalorder %s208, %s209
      %p218 = scmp.eq.s32.totalorder %s30, 0
      %p219 = por %p217, %p218
      %p220 = scmp.ne.s32.totalorder %s208, %s209
      %p221 = scmp.eq.s32.totalorder %s31, 1
      %p222 = por %p220, %p221
      %p224 = scmp.ne.s32.totalorder %s209, %s223
      %p225 = scmp.eq.s32.totalorder %s31, 0
      %p226 = por %p224, %p225
      %s228 = sadd.s32 %s227, 1
      %p231 = scmp.eq.s32.totalorder %s25, 1
      %p232 = scmp.ne.s32.totalorder %s227, %s229
      %p233 = scmp.eq.s32.totalorder %s25, 0
      %p234 = por %p232, %p233
      %p235 = scmp.ne.s32.totalorder %s227, %s229
      %p236 = scmp.eq.s32.totalorder %s30, 1
      %p237 = por %p235, %p236
      %p238 = scmp.ne.s32.totalorder %s229, %s230
      %p239 = scmp.eq.s32.totalorder %s30, 0
      %p240 = por %p238, %p239
      %p241 = scmp.ne.s32.totalorder %s229, %s230
      %p242 = scmp.eq.s32.totalorder %s31, 1
      %p243 = por %p241, %p242
      %p245 = scmp.ne.s32.totalorder %s230, %s244
      %p246 = scmp.eq.s32.totalorder %s31, 0
      %p247 = por %p245, %p246
      %s249 = sadd.s32 %s248, 1
      %p252 = scmp.eq.s32.totalorder %s25, 1
      %p253 = scmp.ne.s32.totalorder %s248, %s250
      %p254 = scmp.eq.s32.totalorder %s25, 0
      %p255 = por %p253, %p254
      %p256 = scmp.ne.s32.totalorder %s248, %s250
      %p257 = scmp.eq.s32.totalorder %s30, 1
      %p258 = por %p256, %p257
      %p259 = scmp.ne.s32.totalorder %s250, %s251
      %p260 = scmp.eq.s32.totalorder %s30, 0
      %p261 = por %p259, %p260
      %p262 = scmp.ne.s32.totalorder %s250, %s251
      %p263 = scmp.eq.s32.totalorder %s31, 1
      %p264 = por %p262, %p263
      %p266 = scmp.ne.s32.totalorder %s251, %s265
      %p267 = scmp.eq.s32.totalorder %s31, 0
      %p268 = por %p266, %p267
      %s270 = sadd.s32 %s269, 1
      %p273 = scmp.eq.s32.totalorder %s25, 1
      %p274 = scmp.ne.s32.totalorder %s269, %s271
      %p275 = scmp.eq.s32.totalorder %s25, 0
      %p276 = por %p274, %p275
      %p277 = scmp.ne.s32.totalorder %s269, %s271
      %p278 = scmp.eq.s32.totalorder %s30, 1
      %p279 = por %p277, %p278
      %p280 = scmp.ne.s32.totalorder %s271, %s272
      %p281 = scmp.eq.s32.totalorder %s30, 0
      %p282 = por %p280, %p281
      %p283 = scmp.ne.s32.totalorder %s271, %s272
      %p284 = scmp.eq.s32.totalorder %s31, 1
      %p285 = por %p283, %p284
      %p287 = scmp.ne.s32.totalorder %s272, %s286
      %p288 = scmp.eq.s32.totalorder %s31, 0
      %p289 = por %p287, %p288
      %s291 = sadd.s32 %s290, 1
      %p294 = scmp.eq.s32.totalorder %s25, 1
      %p295 = scmp.ne.s32.totalorder %s290, %s292
      %p296 = scmp.eq.s32.totalorder %s25, 0
      %p297 = por %p295, %p296
      %p298 = scmp.ne.s32.totalorder %s290, %s292
      %p299 = scmp.eq.s32.totalorder %s30, 1
      %p300 = por %p298, %p299
      %p301 = scmp.ne.s32.totalorder %s292, %s293
      %p302 = scmp.eq.s32.totalorder %s30, 0
      %p303 = por %p301, %p302
      %p304 = scmp.ne.s32.totalorder %s292, %s293
      %p305 = scmp.eq.s32.totalorder %s31, 1
      %p306 = por %p304, %p305
      %p308 = scmp.ne.s32.totalorder %s293, %s307
      %p309 = scmp.eq.s32.totalorder %s31, 0
      %p310 = por %p308, %p309
      %s312 = sadd.s32 %s311, 1
      %p315 = scmp.eq.s32.totalorder %s25, 1
      %p316 = scmp.ne.s32.totalorder %s311, %s313
      %p317 = scmp.eq.s32.totalorder %s25, 0
      %p318 = por %p316, %p317
      %p319 = scmp.ne.s32.totalorder %s311, %s313
      %p320 = scmp.eq.s32.totalorder %s30, 1
      %p321 = por %p319, %p320
      %p322 = scmp.ne.s32.totalorder %s313, %s314
      %p323 = scmp.eq.s32.totalorder %s30, 0
      %p324 = por %p322, %p323
      %p325 = scmp.ne.s32.totalorder %s313, %s314
      %p326 = scmp.eq.s32.totalorder %s31, 1
      %p327 = por %p325, %p326
      %p329 = scmp.ne.s32.totalorder %s314, %s328
      %p330 = scmp.eq.s32.totalorder %s31, 0
      %p331 = por %p329, %p330
      %s332 = ssub.s32 %s25, %s32
      %p333 = scmp.eq.s32.totalorder %s332, 0
      %s335 = sadd.s32 %s334, 1
      %s336 = scalar_select %p333, %s334, %s335
      %p339 = pneg %p333
      %p340 = scmp.eq.s32.totalorder %s25, 1
      %p341 = por %p339, %p340
      %p342 = scmp.ne.s32.totalorder %s334, %s337
      %p343 = scmp.eq.s32.totalorder %s25, 0
      %p344 = por %p342, %p343
      %p345 = scmp.ne.s32.totalorder %s334, %s337
      %p346 = scmp.eq.s32.totalorder %s30, 1
      %p347 = por %p345, %p346
      %p348 = scmp.ne.s32.totalorder %s337, %s338
      %p349 = scmp.eq.s32.totalorder %s30, 0
      %p350 = por %p348, %p349
      %p351 = scmp.ne.s32.totalorder %s337, %s338
      %p352 = scmp.eq.s32.totalorder %s31, 1
      %p353 = por %p351, %p352
      %p355 = scmp.ne.s32.totalorder %s338, %s354
      %p356 = scmp.eq.s32.totalorder %s31, 0
      %p357 = por %p355, %p356
      %s358 = ssub.s32 %s25, %s32
      %p359 = scmp.eq.s32.totalorder %s358, 0
      %s361 = sadd.s32 %s360, 1
      %s362 = scalar_select %p359, %s360, %s361
      %p365 = pneg %p359
      %p366 = scmp.eq.s32.totalorder %s25, 1
      %p367 = por %p365, %p366
      %p368 = scmp.ne.s32.totalorder %s360, %s363
      %p369 = scmp.eq.s32.totalorder %s25, 0
      %p370 = por %p368, %p369
      %p371 = scmp.ne.s32.totalorder %s360, %s363
      %p372 = scmp.eq.s32.totalorder %s30, 1
      %p373 = por %p371, %p372
      %p374 = scmp.ne.s32.totalorder %s363, %s364
      %p375 = scmp.eq.s32.totalorder %s30, 0
      %p376 = por %p374, %p375
      %p377 = scmp.ne.s32.totalorder %s363, %s364
      %p378 = scmp.eq.s32.totalorder %s31, 1
      %p379 = por %p377, %p378
      %p381 = scmp.ne.s32.totalorder %s364, %s380
      %p382 = scmp.eq.s32.totalorder %s31, 0
      %p383 = por %p381, %p382
      %p384 = scmp.le.s32.totalorder 1, %s25
      %p385 = scmp.lt.s32.totalorder %s25, 3
      %p386 = pnand %p384, %p385
      %p387 = pneg %p386
      // Predicated region
      $region9: #{forward.2} parent=5 // pred_check
        _
      $region10: #{forward.2} parent=5 // pred_check_branch
        %389 = sbr.rel (%p386) target = $region12
      $region11: #{forward.2} parent=5 // pred_region
        %s390 = ssub.s32 %s25, 1
        // Predicated region
        $region13: #{forward.2} parent=11 // pred_check
          %p391 = pneg %p46
        $region14: #{forward.2} parent=11 // pred_check_branch
          %393 = sbr.rel (%p391) target = $region16
        $region15: #{forward.2} parent=11 // pred_region
          %s395 = ssub.s32 16, 16
          %396 = vsyncadd [#allocation4], %s395
          %s398 = sshll.u32 %s0, 4
          %s399 = int_to_ptr.vmem [resolvable:$true] %s398
          %401 = dma.vmem_to_smem %s399, 16, [#allocation3], [#allocation4]
        $region16: #{forward.2} parent=11 // pred_fallthru
          _
        // Predicated region
        $region17: #{forward.2} parent=11 // pred_check
          %p402 = pneg %p67
        $region18: #{forward.2} parent=11 // pred_check_branch
          %404 = sbr.rel (%p402) target = $region20
        $region19: #{forward.2} parent=11 // pred_region
          %s406 = ssub.s32 16, 16
          %407 = vsyncadd [#allocation6], %s406
          %s409 = sshll.u32 %s1, 4
          %s410 = int_to_ptr.vmem [resolvable:$true] %s409
          %412 = dma.vmem_to_smem %s410, 16, [#allocation5], [#allocation6]
        $region20: #{forward.2} parent=11 // pred_fallthru
          _
        // Predicated region
        $region21: #{forward.2} parent=11 // pred_check
          %p413 = pneg %p88
        $region22: #{forward.2} parent=11 // pred_check_branch
          %415 = sbr.rel (%p413) target = $region24
        $region23: #{forward.2} parent=11 // pred_region
          _
        $region24: #{forward.2} parent=11 // pred_fallthru
          _
        // Predicated region
        $region25: #{forward.2} parent=11 // pred_check
          %p416 = pneg %p135
        $region26: #{forward.2} parent=11 // pred_check_branch
          %418 = sbr.rel (%p416) target = $region28
        $region27: #{forward.2} parent=11 // pred_region
          _
        $region28: #{forward.2} parent=11 // pred_fallthru
          _
        // Predicated region
        $region29: #{forward.2} parent=11 // pred_check
          %p419 = pneg %p156
        $region30: #{forward.2} parent=11 // pred_check_branch
          %421 = sbr.rel (%p419) target = $region32
        $region31: #{forward.2} parent=11 // pred_region
          _
        $region32: #{forward.2} parent=11 // pred_fallthru
          _
        // Predicated region
        $region33: #{forward.2} parent=11 // pred_check
          %p422 = pneg %p177
        $region34: #{forward.2} parent=11 // pred_check_branch
          %424 = sbr.rel (%p422) target = $region36
        $region35: #{forward.2} parent=11 // pred_region
          _
        $region36: #{forward.2} parent=11 // pred_fallthru
          _
        // Predicated region
        $region37: #{forward.2} parent=11 // pred_check
          %p425 = pneg %p198
        $region38: #{forward.2} parent=11 // pred_check_branch
          %427 = sbr.rel (%p425) target = $region40
        $region39: #{forward.2} parent=11 // pred_region
          _
        $region40: #{forward.2} parent=11 // pred_fallthru
          _
        // Predicated region
        $region41: #{forward.2} parent=11 // pred_check
          %p428 = pneg %p219
        $region42: #{forward.2} parent=11 // pred_check_branch
          %430 = sbr.rel (%p428) target = $region44
        $region43: #{forward.2} parent=11 // pred_region
          _
        $region44: #{forward.2} parent=11 // pred_fallthru
          _
        // Predicated region
        $region45: #{forward.2} parent=11 // pred_check
          %p431 = pneg %p240
        $region46: #{forward.2} parent=11 // pred_check_branch
          %433 = sbr.rel (%p431) target = $region48
        $region47: #{forward.2} parent=11 // pred_region
          _
        $region48: #{forward.2} parent=11 // pred_fallthru
          _
        // Predicated region
        $region49: #{forward.2} parent=11 // pred_check
          %p434 = pneg %p261
        $region50: #{forward.2} parent=11 // pred_check_branch
          %436 = sbr.rel (%p434) target = $region52
        $region51: #{forward.2} parent=11 // pred_region
          _
        $region52: #{forward.2} parent=11 // pred_fallthru
          _
        // Predicated region
        $region53: #{forward.2} parent=11 // pred_check
          %p437 = pneg %p282
        $region54: #{forward.2} parent=11 // pred_check_branch
          %439 = sbr.rel (%p437) target = $region56
        $region55: #{forward.2} parent=11 // pred_region
          _
        $region56: #{forward.2} parent=11 // pred_fallthru
          _
        // Predicated region
        $region57: #{forward.2} parent=11 // pred_check
          %p440 = pneg %p303
        $region58: #{forward.2} parent=11 // pred_check_branch
          %442 = sbr.rel (%p440) target = $region60
        $region59: #{forward.2} parent=11 // pred_region
          _
        $region60: #{forward.2} parent=11 // pred_fallthru
          _
        // Predicated region
        $region61: #{forward.2} parent=11 // pred_check
          %p443 = pneg %p324
        $region62: #{forward.2} parent=11 // pred_check_branch
          %445 = sbr.rel (%p443) target = $region64
        $region63: #{forward.2} parent=11 // pred_region
          _
        $region64: #{forward.2} parent=11 // pred_fallthru
          _
      $region12: #{forward.2} parent=5 // pred_fallthru
        _
      %p446 = scmp.lt.s32.totalorder %s25, 2
      // Predicated region
      $region65: #{forward.2} parent=5 // pred_check
        %p447 = pneg %p446
      $region66: #{forward.2} parent=5 // pred_check_branch
        %449 = sbr.rel (%p447) target = $region68
      $region67: #{forward.2} parent=5 // pred_region
        // Predicated region
        $region69: #{forward.2} parent=67 // pred_check
          %p450 = pneg %p108
        $region70: #{forward.2} parent=67 // pred_check_branch
          %452 = sbr.rel (%p450) target = $region72
        $region71: #{forward.2} parent=67 // pred_region
          %p453 = scmp.lt.s32.totalorder %s25, 1
          %s454 = scalar_select %p453, %s25, 1
          %s455 = smul.addr %s454, 8
          %s456 = scalar_lea.vmem %s3, %s455
        $region72: #{forward.2} parent=67 // pred_fallthru
          _
      $region68: #{forward.2} parent=5 // pred_fallthru
        _
      %p457 = scmp.le.s32.totalorder 1, %s25
      %p458 = scmp.lt.s32.totalorder %s25, 3
      %p459 = pnand %p457, %p458
      %p460 = pneg %p459
      // Predicated region
      $region73: #{forward.2} parent=5 // pred_check
        _
      $region74: #{forward.2} parent=5 // pred_check_branch
        %462 = sbr.rel (%p459) target = $region76
      $region75: #{forward.2} parent=5 // pred_region
        %s463 = ssub.s32 %s25, 1
        // Predicated region
        $region77: #{forward.2} parent=75 // pred_check
          %p464 = pneg %p46
        $region78: #{forward.2} parent=75 // pred_check_branch
          %466 = sbr.rel (%p464) target = $region80
        $region79: #{forward.2} parent=75 // pred_region
          %467 = dma.done [#allocation4], 16
        $region80: #{forward.2} parent=75 // pred_fallthru
          _
        // Predicated region
        $region81: #{forward.2} parent=75 // pred_check
          %p468 = pneg %p67
        $region82: #{forward.2} parent=75 // pred_check_branch
          %470 = sbr.rel (%p468) target = $region84
        $region83: #{forward.2} parent=75 // pred_region
          %471 = dma.done [#allocation6], 16
        $region84: #{forward.2} parent=75 // pred_fallthru
          _
        %472 = sfence
        %p473 = pneg %p46
        %p474 = pneg %p43
        %p475 = pneg %p67
        %p476 = pneg %p64
        %p477 = pneg %p88
        %p478 = pneg %p85
        %p479 = scmp.lt.s32.totalorder %s30, 1
        %s480 = scalar_select %p479, %s30, 1
        %s481 = smul.addr %s480, 8
        %s482 = scalar_lea.vmem %s3, %s481
        %p483 = pneg %p114
        %p484 = pneg %p111
        %p485 = pneg %p135
        %p486 = pneg %p132
        %p487 = pneg %p156
        %p488 = pneg %p153
        %p489 = pneg %p177
        %p490 = pneg %p174
        %p491 = pneg %p198
        %p492 = pneg %p195
        %p493 = pneg %p219
        %p494 = pneg %p216
        %p495 = pneg %p240
        %p496 = pneg %p237
        %p497 = pneg %p261
        %p498 = pneg %p258
        %p499 = pneg %p282
        %p500 = pneg %p279
        %p501 = pneg %p303
        %p502 = pneg %p300
        %p503 = pneg %p324
        %p504 = pneg %p321
        %p505 = pneg %p350
        %p506 = pneg %p347
        %p507 = scmp.lt.s32.totalorder %s30, 1
        %s508 = scalar_select %p507, %s30, 1
        %s509 = smul.addr %s508, 8
        %s510 = scalar_lea.vmem %s14, %s509
        %p511 = pneg %p376
        %p512 = pneg %p373
        %s513 = sand.u32 %s363, 1
        %s514 = sand.u32 %s363, 1
        %s515 = smul.addr %s514, 2
        %s516 = scalar_lea.vmem [#allocation7], %s515
        %p517 = scmp.lt.s32.totalorder %s30, 1
        %s518 = scalar_select %p517, %s30, 1
        %s519 = smul.addr %s518, 8
        %s520 = scalar_lea.vmem %s3, %s519
        %p521 = scmp.lt.s32.totalorder %s30, 1
        %s522 = scalar_select %p521, %s30, 1
        %s523 = smul.addr %s522, 8
        %s524 = scalar_lea.vmem %s14, %s523
        %v526 = vld [vmem:[%s520] sm:$0xff]
        %v527 = vpack.c.bf16 %v526, %v526
        %v528 = vld [vmem:[%s4] sm:$0x7]
        %v529 = vld [vmem:[%s5] sm:$0x1]
        %v531 = vlaneseq
        %v532 = vshrl.u32 %v531, 7
        %v533 = vsub.s32 0, %v532
        %v534 = vrot.slane %v529, %v533
        %vm536 = vcmask 39936
        %v538 = vsel %vm536, %v527, 0
        %vm540 = vcmask 1041408
        %vm541 = vcmask 1042432
        %v542 = vsel %vm540, 4294967295, 65535
        %v543 = vsel %vm541, %v542, 0
        %v545 = vand.u32 %v528, %v543
        %547 = vmatprep.subr.bf16.mxu0 0
        %548 = vmatpush1.bf16.msra.mxu0 %v545
        %549 = vmatprep.subr.bf16.mxu0 0
        %550 = vmatpush1.bf16.msra.mxu0 0
        %551 = vmatprep.subr.bf16.mxu0 0
        %552 = vmatpush1.bf16.msra.mxu0 0
        %553 = vmatprep.subr.bf16.mxu0 0
        %554 = vmatpush1.bf16.msra.mxu0 0
        %555 = vmatprep.subr.bf16.mxu0 0
        %556 = vmatpush1.bf16.msra.mxu0 0
        %557 = vmatprep.subr.bf16.mxu0 0
        %558 = vmatpush1.bf16.msra.mxu0 0
        %559 = vmatprep.subr.bf16.mxu0 0
        %560 = vmatpush1.bf16.msra.mxu0 0
        %561 = vmatprep.subr.bf16.mxu0 0
        %562 = vmatpush1.bf16.msra.mxu0 0
        %563 = vmatprep.subr.bf16.mxu0 0
        %564 = vmatpush1.bf16.msra.mxu0 0
        %565 = vmatprep.subr.bf16.mxu0 0
        %566 = vmatpush1.bf16.msra.mxu0 0
        %567 = vmatprep.subr.bf16.mxu0 0
        %568 = vmatpush1.bf16.msra.mxu0 0
        %569 = vmatprep.subr.bf16.mxu0 0
        %570 = vmatpush1.bf16.msra.mxu0 0
        %571 = vmatprep.subr.bf16.mxu0 0
        %572 = vmatpush1.bf16.msra.mxu0 0
        %573 = vmatprep.subr.bf16.mxu0 0
        %574 = vmatpush1.bf16.msra.mxu0 0
        %575 = vmatprep.subr.bf16.mxu0 0
        %576 = vmatpush1.bf16.msra.mxu0 0
        %577 = vmatprep.subr.bf16.mxu0 0
        %578 = vmatpush1.bf16.msra.mxu0 0
        %579 = vmatprep.mubr.bf16.mxu0 0
        %580 = vmatmul.mubr.bf16.gmra.mrb[0].mxu0 %v538
        %v581 = vpop.f32.mrb[0].mxu0
        %v582 = vadd.f32 %v534, %v581
        %v583 = vpop.f32.mrb[0].mxu0
        %v584 = vpop.f32.mrb[0].mxu0
        %v585 = vpop.f32.mrb[0].mxu0
        %586 = vdwg.mxu0
        %v587 = vpack.c.bf16 %v582, %v582
        %s588 = sld [smem:[#allocation3]]
        %v589 = vstv %s588
        %v590 = vmul.f32 %v589, %v582
        %v591 = vadd.f32 %v590, 0.0
        %v592 = vld [vmem:[%s6] sm:$0xf]
        %v593 = vld [vmem:[%s6 + $0x4] sm:$0xf]
        %v594 = vld [vmem:[%s6 + $0x8] sm:$0xf]
        %v595 = vld [vmem:[%s6 + $0xc] sm:$0xf]
        %v596 = vld [vmem:[%s6 + $0x10] sm:$0xf]
        %v597 = vld [vmem:[%s6 + $0x14] sm:$0xf]
        %v598 = vld [vmem:[%s6 + $0x18] sm:$0xf]
        %v599 = vld [vmem:[%s6 + $0x1c] sm:$0xf]
        %v600 = vld [vmem:[%s6 + $0x20] sm:$0xf]
        %v601 = vld [vmem:[%s6 + $0x24] sm:$0xf]
        %v602 = vld [vmem:[%s6 + $0x28] sm:$0xf]
        %v603 = vld [vmem:[%s6 + $0x2c] sm:$0xf]
        %v604 = vld [vmem:[%s6 + $0x30] sm:$0xf]
        %v605 = vld [vmem:[%s6 + $0x34] sm:$0xf]
        %v606 = vld [vmem:[%s6 + $0x38] sm:$0xf]
        %v607 = vld [vmem:[%s6 + $0x3c] sm:$0xf]
        %v624 = vunpack.c.l.b16 %v592
        %v625 = vunpack.c.l.b16 %v593
        %v626 = vunpack.c.l.b16 %v594
        %v627 = vunpack.c.l.b16 %v595
        %v628 = vunpack.c.l.b16 %v596
        %v629 = vunpack.c.l.b16 %v597
        %v630 = vunpack.c.l.b16 %v598
        %v631 = vunpack.c.l.b16 %v599
        %v632 = vunpack.c.l.b16 %v600
        %v633 = vunpack.c.l.b16 %v601
        %v634 = vunpack.c.l.b16 %v602
        %v635 = vunpack.c.l.b16 %v603
        %v636 = vunpack.c.l.b16 %v604
        %v637 = vunpack.c.l.b16 %v605
        %v638 = vunpack.c.l.b16 %v606
        %v639 = vunpack.c.l.b16 %v607
        %v640 = vpack.c.b16 %v625, %v624
        %v641 = vpack.c.b16 %v627, %v626
        %v642 = vpack.c.b16 %v629, %v628
        %v643 = vpack.c.b16 %v631, %v630
        %v644 = vpack.c.b16 %v633, %v632
        %v645 = vpack.c.b16 %v635, %v634
        %v646 = vpack.c.b16 %v637, %v636
        %v647 = vpack.c.b16 %v639, %v638
        %656 = vmatprep.subr.bf16.mxu0 0
        %657 = vmatpush1.bf16.msra.mxu0 %v640
        %658 = vmatprep.subr.bf16.mxu0 0
        %659 = vmatpush1.bf16.msra.mxu0 %v641
        %660 = vmatprep.subr.bf16.mxu0 0
        %661 = vmatpush1.bf16.msra.mxu0 %v642
        %662 = vmatprep.subr.bf16.mxu0 0
        %663 = vmatpush1.bf16.msra.mxu0 %v643
        %664 = vmatprep.subr.bf16.mxu0 0
        %665 = vmatpush1.bf16.msra.mxu0 %v644
        %666 = vmatprep.subr.bf16.mxu0 0
        %667 = vmatpush1.bf16.msra.mxu0 %v645
        %668 = vmatprep.subr.bf16.mxu0 0
        %669 = vmatpush1.bf16.msra.mxu0 %v646
        %670 = vmatprep.subr.bf16.mxu0 0
        %671 = vmatpush1.bf16.msra.mxu0 %v647
        %672 = vmatprep.subr.bf16.mxu0 0
        %673 = vmatpush1.bf16.msra.mxu0 0
        %674 = vmatprep.subr.bf16.mxu0 0
        %675 = vmatpush1.bf16.msra.mxu0 0
        %676 = vmatprep.subr.bf16.mxu0 0
        %677 = vmatpush1.bf16.msra.mxu0 0
        %678 = vmatprep.subr.bf16.mxu0 0
        %679 = vmatpush1.bf16.msra.mxu0 0
        %680 = vmatprep.subr.bf16.mxu0 0
        %681 = vmatpush1.bf16.msra.mxu0 0
        %682 = vmatprep.subr.bf16.mxu0 0
        %683 = vmatpush1.bf16.msra.mxu0 0
        %684 = vmatprep.subr.bf16.mxu0 0
        %685 = vmatpush1.bf16.msra.mxu0 0
        %686 = vmatprep.subr.bf16.mxu0 0
        %687 = vmatpush1.bf16.msra.mxu0 0
        %688 = vmatprep.mubr.bf16.mxu0 0
        %689 = vmatmul.mubr.bf16.gmra.mrb[0].mxu0 %v587
        %v690 = vpop.f32.mrb[0].mxu0
        %v691 = vadd.f32 0.0, %v690
        %v692 = vpop.f32.mrb[0].mxu0
        %v693 = vpop.f32.mrb[0].mxu0
        %v694 = vpop.f32.mrb[0].mxu0
        %695 = vdwg.mxu0
        %v696 = vadd.f32 %v591, %v691
        %v697 = vld [vmem:[%s7] sm:$0x1]
        %v699 = vlaneseq
        %v700 = vshrl.u32 %v699, 7
        %v701 = vsub.s32 0, %v700
        %v702 = vrot.slane %v697, %v701
        %v704 = vadd.f32 %v696, %v702
        %v705 = vld [vmem:[%s8] sm:$0xf]
        %v706 = vld [vmem:[%s8 + $0x4] sm:$0xf]
        %v707 = vld [vmem:[%s8 + $0x8] sm:$0xf]
        %v708 = vld [vmem:[%s8 + $0xc] sm:$0xf]
        %v709 = vld [vmem:[%s8 + $0x10] sm:$0xf]
        %v710 = vld [vmem:[%s8 + $0x14] sm:$0xf]
        %v711 = vld [vmem:[%s8 + $0x18] sm:$0xf]
        %v712 = vld [vmem:[%s8 + $0x1c] sm:$0xf]
        %v713 = vld [vmem:[%s8 + $0x20] sm:$0xf]
        %v714 = vld [vmem:[%s8 + $0x24] sm:$0xf]
        %v715 = vld [vmem:[%s8 + $0x28] sm:$0xf]
        %v716 = vld [vmem:[%s8 + $0x2c] sm:$0xf]
        %v717 = vld [vmem:[%s8 + $0x30] sm:$0xf]
        %v718 = vld [vmem:[%s8 + $0x34] sm:$0xf]
        %v719 = vld [vmem:[%s8 + $0x38] sm:$0xf]
        %v720 = vld [vmem:[%s8 + $0x3c] sm:$0xf]
        %v721 = vld [vmem:[%s9] sm:$0x1]
        %v723 = vlaneseq
        %v724 = vshrl.u32 %v723, 7
        %v725 = vsub.s32 0, %v724
        %v726 = vrot.slane %v721, %v725
        %v744 = vunpack.c.l.b16 %v705
        %v745 = vunpack.c.l.b16 %v706
        %v746 = vunpack.c.l.b16 %v707
        %v747 = vunpack.c.l.b16 %v708
        %v748 = vunpack.c.l.b16 %v709
        %v749 = vunpack.c.l.b16 %v710
        %v750 = vunpack.c.l.b16 %v711
        %v751 = vunpack.c.l.b16 %v712
        %v752 = vunpack.c.l.b16 %v713
        %v753 = vunpack.c.l.b16 %v714
        %v754 = vunpack.c.l.b16 %v715
        %v755 = vunpack.c.l.b16 %v716
        %v756 = vunpack.c.l.b16 %v717
        %v757 = vunpack.c.l.b16 %v718
        %v758 = vunpack.c.l.b16 %v719
        %v759 = vunpack.c.l.b16 %v720
        %v760 = vpack.c.b16 %v745, %v744
        %v761 = vpack.c.b16 %v747, %v746
        %v762 = vpack.c.b16 %v749, %v748
        %v763 = vpack.c.b16 %v751, %v750
        %v764 = vpack.c.b16 %v753, %v752
        %v765 = vpack.c.b16 %v755, %v754
        %v766 = vpack.c.b16 %v757, %v756
        %v767 = vpack.c.b16 %v759, %v758
        %776 = vmatprep.subr.bf16.mxu0 0
        %777 = vmatpush1.bf16.msra.mxu0 %v760
        %778 = vmatprep.subr.bf16.mxu0 0
        %779 = vmatpush1.bf16.msra.mxu0 %v761
        %780 = vmatprep.subr.bf16.mxu0 0
        %781 = vmatpush1.bf16.msra.mxu0 %v762
        %782 = vmatprep.subr.bf16.mxu0 0
        %783 = vmatpush1.bf16.msra.mxu0 %v763
        %784 = vmatprep.subr.bf16.mxu0 0
        %785 = vmatpush1.bf16.msra.mxu0 %v764
        %786 = vmatprep.subr.bf16.mxu0 0
        %787 = vmatpush1.bf16.msra.mxu0 %v765
        %788 = vmatprep.subr.bf16.mxu0 0
        %789 = vmatpush1.bf16.msra.mxu0 %v766
        %790 = vmatprep.subr.bf16.mxu0 0
        %791 = vmatpush1.bf16.msra.mxu0 %v767
        %792 = vmatprep.subr.bf16.mxu0 0
        %793 = vmatpush1.bf16.msra.mxu0 0
        %794 = vmatprep.subr.bf16.mxu0 0
        %795 = vmatpush1.bf16.msra.mxu0 0
        %796 = vmatprep.subr.bf16.mxu0 0
        %797 = vmatpush1.bf16.msra.mxu0 0
        %798 = vmatprep.subr.bf16.mxu0 0
        %799 = vmatpush1.bf16.msra.mxu0 0
        %800 = vmatprep.subr.bf16.mxu0 0
        %801 = vmatpush1.bf16.msra.mxu0 0
        %802 = vmatprep.subr.bf16.mxu0 0
        %803 = vmatpush1.bf16.msra.mxu0 0
        %804 = vmatprep.subr.bf16.mxu0 0
        %805 = vmatpush1.bf16.msra.mxu0 0
        %806 = vmatprep.subr.bf16.mxu0 0
        %807 = vmatpush1.bf16.msra.mxu0 0
        %808 = vmatprep.mubr.bf16.mxu0 0
        %809 = vmatmul.mubr.bf16.gmra.mrb[0].mxu0 %v587
        %v810 = vpop.f32.mrb[0].mxu0
        %v811 = vadd.f32 %v726, %v810
        %v812 = vpop.f32.mrb[0].mxu0
        %v813 = vpop.f32.mrb[0].mxu0
        %v814 = vpop.f32.mrb[0].mxu0
        %815 = vdwg.mxu0
        %s816 = sld [smem:[#allocation5]]
        %v817 = vmax.f32 %v811, 0.0
        %v818 = vstv %s816
        %v819 = vmul.f32 %v818, %v817
        %v820 = vadd.f32 %v704, %v819
        %v821 = vpack.c.bf16 %v820, %v820
        %s822 = sld [smem:[#allocation3 + $0x1]]
        %v823 = vstv %s822
        %v824 = vmul.f32 %v823, %v582
        %v825 = vadd.f32 %v824, 0.0
        %s826 = sld [smem:[#allocation3 + $0x2]]
        %v827 = vstv %s826
        %v828 = vmul.f32 %v827, %v820
        %v829 = vadd.f32 %v825, %v828
        %v830 = vld [vmem:[%s6 + $0x40] sm:$0xf]
        %v831 = vld [vmem:[%s6 + $0x44] sm:$0xf]
        %v832 = vld [vmem:[%s6 + $0x48] sm:$0xf]
        %v833 = vld [vmem:[%s6 + $0x4c] sm:$0xf]
        %v834 = vld [vmem:[%s6 + $0x50] sm:$0xf]
        %v835 = vld [vmem:[%s6 + $0x54] sm:$0xf]
        %v836 = vld [vmem:[%s6 + $0x58] sm:$0xf]
        %v837 = vld [vmem:[%s6 + $0x5c] sm:$0xf]
        %v838 = vld [vmem:[%s6 + $0x60] sm:$0xf]
        %v839 = vld [vmem:[%s6 + $0x64] sm:$0xf]
        %v840 = vld [vmem:[%s6 + $0x68] sm:$0xf]
        %v841 = vld [vmem:[%s6 + $0x6c] sm:$0xf]
        %v842 = vld [vmem:[%s6 + $0x70] sm:$0xf]
        %v843 = vld [vmem:[%s6 + $0x74] sm:$0xf]
        %v844 = vld [vmem:[%s6 + $0x78] sm:$0xf]
        %v845 = vld [vmem:[%s6 + $0x7c] sm:$0xf]
        %v846 = vld [vmem:[%s6 + $0x80] sm:$0xf]
        %v847 = vld [vmem:[%s6 + $0x84] sm:$0xf]
        %v848 = vld [vmem:[%s6 + $0x88] sm:$0xf]
        %v849 = vld [vmem:[%s6 + $0x8c] sm:$0xf]
        %v850 = vld [vmem:[%s6 + $0x90] sm:$0xf]
        %v851 = vld [vmem:[%s6 + $0x94] sm:$0xf]
        %v852 = vld [vmem:[%s6 + $0x98] sm:$0xf]
        %v853 = vld [vmem:[%s6 + $0x9c] sm:$0xf]
        %v854 = vld [vmem:[%s6 + $0xa0] sm:$0xf]
        %v855 = vld [vmem:[%s6 + $0xa4] sm:$0xf]
        %v856 = vld [vmem:[%s6 + $0xa8] sm:$0xf]
        %v857 = vld [vmem:[%s6 + $0xac] sm:$0xf]
        %v858 = vld [vmem:[%s6 + $0xb0] sm:$0xf]
        %v859 = vld [vmem:[%s6 + $0xb4] sm:$0xf]
        %v860 = vld [vmem:[%s6 + $0xb8] sm:$0xf]
        %v861 = vld [vmem:[%s6 + $0xbc] sm:$0xf]
        %v894 = vunpack.c.l.b16 %v830
        %v895 = vunpack.c.l.b16 %v831
        %v896 = vunpack.c.l.b16 %v832
        %v897 = vunpack.c.l.b16 %v833
        %v898 = vunpack.c.l.b16 %v834
        %v899 = vunpack.c.l.b16 %v835
        %v900 = vunpack.c.l.b16 %v836
        %v901 = vunpack.c.l.b16 %v837
        %v902 = vunpack.c.l.b16 %v838
        %v903 = vunpack.c.l.b16 %v839
        %v904 = vunpack.c.l.b16 %v840
        %v905 = vunpack.c.l.b16 %v841
        %v906 = vunpack.c.l.b16 %v842
        %v907 = vunpack.c.l.b16 %v843
        %v908 = vunpack.c.l.b16 %v844
        %v909 = vunpack.c.l.b16 %v845
        %v910 = vunpack.c.l.b16 %v846
        %v911 = vunpack.c.l.b16 %v847
        %v912 = vunpack.c.l.b16 %v848
        %v913 = vunpack.c.l.b16 %v849
        %v914 = vunpack.c.l.b16 %v850
        %v915 = vunpack.c.l.b16 %v851
        %v916 = vunpack.c.l.b16 %v852
        %v917 = vunpack.c.l.b16 %v853
        %v918 = vunpack.c.l.b16 %v854
        %v919 = vunpack.c.l.b16 %v855
        %v920 = vunpack.c.l.b16 %v856
        %v921 = vunpack.c.l.b16 %v857
        %v922 = vunpack.c.l.b16 %v858
        %v923 = vunpack.c.l.b16 %v859
        %v924 = vunpack.c.l.b16 %v860
        %v925 = vunpack.c.l.b16 %v861
        %v926 = vpack.c.b16 %v895, %v894
        %v927 = vpack.c.b16 %v897, %v896
        %v928 = vpack.c.b16 %v899, %v898
        %v929 = vpack.c.b16 %v901, %v900
        %v930 = vpack.c.b16 %v903, %v902
        %v931 = vpack.c.b16 %v905, %v904
        %v932 = vpack.c.b16 %v907, %v906
        %v933 = vpack.c.b16 %v909, %v908
        %v934 = vpack.c.b16 %v911, %v910
        %v935 = vpack.c.b16 %v913, %v912
        %v936 = vpack.c.b16 %v915, %v914
        %v937 = vpack.c.b16 %v917, %v916
        %v938 = vpack.c.b16 %v919, %v918
        %v939 = vpack.c.b16 %v921, %v920
        %v940 = vpack.c.b16 %v923, %v922
        %v941 = vpack.c.b16 %v925, %v924
        %958 = vmatprep.subr.bf16.mxu0 0
        %959 = vmatpush1.bf16.msra.mxu0 %v926
        %960 = vmatprep.subr.bf16.mxu0 0
        %961 = vmatpush1.bf16.msra.mxu0 %v927
        %962 = vmatprep.subr.bf16.mxu0 0
        %963 = vmatpush1.bf16.msra.mxu0 %v928
        %964 = vmatprep.subr.bf16.mxu0 0
        %965 = vmatpush1.bf16.msra.mxu0 %v929
        %966 = vmatprep.subr.bf16.mxu0 0
        %967 = vmatpush1.bf16.msra.mxu0 %v930
        %968 = vmatprep.subr.bf16.mxu0 0
        %969 = vmatpush1.bf16.msra.mxu0 %v931
        %970 = vmatprep.subr.bf16.mxu0 0
        %971 = vmatpush1.bf16.msra.mxu0 %v932
        %972 = vmatprep.subr.bf16.mxu0 0
        %973 = vmatpush1.bf16.msra.mxu0 %v933
        %974 = vmatprep.subr.bf16.mxu0 0
        %975 = vmatpush1.bf16.msra.mxu0 %v934
        %976 = vmatprep.subr.bf16.mxu0 0
        %977 = vmatpush1.bf16.msra.mxu0 %v935
        %978 = vmatprep.subr.bf16.mxu0 0
        %979 = vmatpush1.bf16.msra.mxu0 %v936
        %980 = vmatprep.subr.bf16.mxu0 0
        %981 = vmatpush1.bf16.msra.mxu0 %v937
        %982 = vmatprep.subr.bf16.mxu0 0
        %983 = vmatpush1.bf16.msra.mxu0 %v938
        %984 = vmatprep.subr.bf16.mxu0 0
        %985 = vmatpush1.bf16.msra.mxu0 %v939
        %986 = vmatprep.subr.bf16.mxu0 0
        %987 = vmatpush1.bf16.msra.mxu0 %v940
        %988 = vmatprep.subr.bf16.mxu0 0
        %989 = vmatpush1.bf16.msra.mxu0 %v941
        %990 = vmatprep.mubr.bf16.mxu0 %v821
        %991 = vmatmul.mubr.bf16.gmra.mrb[0].mxu0 %v587
        %v992 = vpop.f32.mrb[0].mxu0
        %v993 = vadd.f32 0.0, %v992
        %v994 = vpop.f32.mrb[0].mxu0
        %v995 = vpop.f32.mrb[0].mxu0
        %v996 = vpop.f32.mrb[0].mxu0
        %997 = vdwg.mxu0
        %v998 = vadd.f32 %v829, %v993
        %s999 = scalar_lea.vmem %s7, 1
        %v1000 = vld [vmem:[%s999] sm:$0x1]
        %v1002 = vlaneseq
        %v1003 = vshrl.u32 %v1002, 7
        %v1004 = vsub.s32 0, %v1003
        %v1005 = vrot.slane %v1000, %v1004
        %v1007 = vadd.f32 %v998, %v1005
        %s1008 = scalar_lea.vmem %s8, 64
        %v1009 = vld [vmem:[%s1008] sm:$0xf]
        %v1010 = vld [vmem:[%s1008 + $0x4] sm:$0xf]
        %v1011 = vld [vmem:[%s1008 + $0x8] sm:$0xf]
        %v1012 = vld [vmem:[%s1008 + $0xc] sm:$0xf]
        %v1013 = vld [vmem:[%s1008 + $0x10] sm:$0xf]
        %v1014 = vld [vmem:[%s1008 + $0x14] sm:$0xf]
        %v1015 = vld [vmem:[%s1008 + $0x18] sm:$0xf]
        %v1016 = vld [vmem:[%s1008 + $0x1c] sm:$0xf]
        %v1017 = vld [vmem:[%s1008 + $0x20] sm:$0xf]
        %v1018 = vld [vmem:[%s1008 + $0x24] sm:$0xf]
        %v1019 = vld [vmem:[%s1008 + $0x28] sm:$0xf]
        %v1020 = vld [vmem:[%s1008 + $0x2c] sm:$0xf]
        %v1021 = vld [vmem:[%s1008 + $0x30] sm:$0xf]
        %v1022 = vld [vmem:[%s1008 + $0x34] sm:$0xf]
        %v1023 = vld [vmem:[%s1008 + $0x38] sm:$0xf]
        %v1024 = vld [vmem:[%s1008 + $0x3c] sm:$0xf]
        %s1025 = scalar_lea.vmem %s9, 1
        %v1026 = vld [vmem:[%s1025] sm:$0x1]
        %v1028 = vlaneseq
        %v1029 = vshrl.u32 %v1028, 7
        %v1030 = vsub.s32 0, %v1029
        %v1031 = vrot.slane %v1026, %v1030
        %v1049 = vunpack.c.l.b16 %v1009
        %v1050 = vunpack.c.l.b16 %v1010
        %v1051 = vunpack.c.l.b16 %v1011
        %v1052 = vunpack.c.l.b16 %v1012
        %v1053 = vunpack.c.l.b16 %v1013
        %v1054 = vunpack.c.l.b16 %v1014
        %v1055 = vunpack.c.l.b16 %v1015
        %v1056 = vunpack.c.l.b16 %v1016
        %v1057 = vunpack.c.l.b16 %v1017
        %v1058 = vunpack.c.l.b16 %v1018
        %v1059 = vunpack.c.l.b16 %v1019
        %v1060 = vunpack.c.l.b16 %v1020
        %v1061 = vunpack.c.l.b16 %v1021
        %v1062 = vunpack.c.l.b16 %v1022
        %v1063 = vunpack.c.l.b16 %v1023
        %v1064 = vunpack.c.l.b16 %v1024
        %v1065 = vpack.c.b16 %v1050, %v1049
        %v1066 = vpack.c.b16 %v1052, %v1051
        %v1067 = vpack.c.b16 %v1054, %v1053
        %v1068 = vpack.c.b16 %v1056, %v1055
        %v1069 = vpack.c.b16 %v1058, %v1057
        %v1070 = vpack.c.b16 %v1060, %v1059
        %v1071 = vpack.c.b16 %v1062, %v1061
        %v1072 = vpack.c.b16 %v1064, %v1063
        %1081 = vmatprep.subr.bf16.mxu0 0
        %1082 = vmatpush1.bf16.msra.mxu0 %v1065
        %1083 = vmatprep.subr.bf16.mxu0 0
        %1084 = vmatpush1.bf16.msra.mxu0 %v1066
        %1085 = vmatprep.subr.bf16.mxu0 0
        %1086 = vmatpush1.bf16.msra.mxu0 %v1067
        %1087 = vmatprep.subr.bf16.mxu0 0
        %1088 = vmatpush1.bf16.msra.mxu0 %v1068
        %1089 = vmatprep.subr.bf16.mxu0 0
        %1090 = vmatpush1.bf16.msra.mxu0 %v1069
        %1091 = vmatprep.subr.bf16.mxu0 0
        %1092 = vmatpush1.bf16.msra.mxu0 %v1070
        %1093 = vmatprep.subr.bf16.mxu0 0
        %1094 = vmatpush1.bf16.msra.mxu0 %v1071
        %1095 = vmatprep.subr.bf16.mxu0 0
        %1096 = vmatpush1.bf16.msra.mxu0 %v1072
        %1097 = vmatprep.subr.bf16.mxu0 0
        %1098 = vmatpush1.bf16.msra.mxu0 0
        %1099 = vmatprep.subr.bf16.mxu0 0
        %1100 = vmatpush1.bf16.msra.mxu0 0
        %1101 = vmatprep.subr.bf16.mxu0 0
        %1102 = vmatpush1.bf16.msra.mxu0 0
        %1103 = vmatprep.subr.bf16.mxu0 0
        %1104 = vmatpush1.bf16.msra.mxu0 0
        %1105 = vmatprep.subr.bf16.mxu0 0
        %1106 = vmatpush1.bf16.msra.mxu0 0
        %1107 = vmatprep.subr.bf16.mxu0 0
        %1108 = vmatpush1.bf16.msra.mxu0 0
        %1109 = vmatprep.subr.bf16.mxu0 0
        %1110 = vmatpush1.bf16.msra.mxu0 0
        %1111 = vmatprep.subr.bf16.mxu0 0
        %1112 = vmatpush1.bf16.msra.mxu0 0
        %1113 = vmatprep.mubr.bf16.mxu0 0
        %1114 = vmatmul.mubr.bf16.gmra.mrb[0].mxu0 %v587
        %v1115 = vpop.f32.mrb[0].mxu0
        %v1116 = vadd.f32 %v1031, %v1115
        %v1117 = vpop.f32.mrb[0].mxu0
        %v1118 = vpop.f32.mrb[0].mxu0
        %v1119 = vpop.f32.mrb[0].mxu0
        %1120 = vdwg.mxu0
        %s1121 = sld [smem:[#allocation5 + $0x1]]
        %v1122 = vmax.f32 %v1116, 0.0
        %v1123 = vstv %s1121
        %v1124 = vmul.f32 %v1123, %v1122
        %v1125 = vadd.f32 %v1007, %v1124
        %s1126 = scalar_lea.vmem %s8, 128
        %v1127 = vld [vmem:[%s1126] sm:$0xf]
        %v1128 = vld [vmem:[%s1126 + $0x4] sm:$0xf]
        %v1129 = vld [vmem:[%s1126 + $0x8] sm:$0xf]
        %v1130 = vld [vmem:[%s1126 + $0xc] sm:$0xf]
        %v1131 = vld [vmem:[%s1126 + $0x10] sm:$0xf]
        %v1132 = vld [vmem:[%s1126 + $0x14] sm:$0xf]
        %v1133 = vld [vmem:[%s1126 + $0x18] sm:$0xf]
        %v1134 = vld [vmem:[%s1126 + $0x1c] sm:$0xf]
        %v1135 = vld [vmem:[%s1126 + $0x20] sm:$0xf]
        %v1136 = vld [vmem:[%s1126 + $0x24] sm:$0xf]
        %v1137 = vld [vmem:[%s1126 + $0x28] sm:$0xf]
        %v1138 = vld [vmem:[%s1126 + $0x2c] sm:$0xf]
        %v1139 = vld [vmem:[%s1126 + $0x30] sm:$0xf]
        %v1140 = vld [vmem:[%s1126 + $0x34] sm:$0xf]
        %v1141 = vld [vmem:[%s1126 + $0x38] sm:$0xf]
        %v1142 = vld [vmem:[%s1126 + $0x3c] sm:$0xf]
        %s1143 = scalar_lea.vmem %s9, 2
        %v1144 = vld [vmem:[%s1143] sm:$0x1]
        %v1146 = vlaneseq
        %v1147 = vshrl.u32 %v1146, 7
        %v1148 = vsub.s32 0, %v1147
        %v1149 = vrot.slane %v1144, %v1148
        %v1167 = vunpack.c.l.b16 %v1127
        %v1168 = vunpack.c.l.b16 %v1128
        %v1169 = vunpack.c.l.b16 %v1129
        %v1170 = vunpack.c.l.b16 %v1130
        %v1171 = vunpack.c.l.b16 %v1131
        %v1172 = vunpack.c.l.b16 %v1132
        %v1173 = vunpack.c.l.b16 %v1133
        %v1174 = vunpack.c.l.b16 %v1134
        %v1175 = vunpack.c.l.b16 %v1135
        %v1176 = vunpack.c.l.b16 %v1136
        %v1177 = vunpack.c.l.b16 %v1137
        %v1178 = vunpack.c.l.b16 %v1138
        %v1179 = vunpack.c.l.b16 %v1139
        %v1180 = vunpack.c.l.b16 %v1140
        %v1181 = vunpack.c.l.b16 %v1141
        %v1182 = vunpack.c.l.b16 %v1142
        %v1183 = vpack.c.b16 %v1168, %v1167
        %v1184 = vpack.c.b16 %v1170, %v1169
        %v1185 = vpack.c.b16 %v1172, %v1171
        %v1186 = vpack.c.b16 %v1174, %v1173
        %v1187 = vpack.c.b16 %v1176, %v1175
        %v1188 = vpack.c.b16 %v1178, %v1177
        %v1189 = vpack.c.b16 %v1180, %v1179
        %v1190 = vpack.c.b16 %v1182, %v1181
        %1199 = vmatprep.subr.bf16.mxu0 0
        %1200 = vmatpush1.bf16.msra.mxu0 %v1183
        %1201 = vmatprep.subr.bf16.mxu0 0
        %1202 = vmatpush1.bf16.msra.mxu0 %v1184
        %1203 = vmatprep.subr.bf16.mxu0 0
        %1204 = vmatpush1.bf16.msra.mxu0 %v1185
        %1205 = vmatprep.subr.bf16.mxu0 0
        %1206 = vmatpush1.bf16.msra.mxu0 %v1186
        %1207 = vmatprep.subr.bf16.mxu0 0
        %1208 = vmatpush1.bf16.msra.mxu0 %v1187
        %1209 = vmatprep.subr.bf16.mxu0 0
        %1210 = vmatpush1.bf16.msra.mxu0 %v1188
        %1211 = vmatprep.subr.bf16.mxu0 0
        %1212 = vmatpush1.bf16.msra.mxu0 %v1189
        %1213 = vmatprep.subr.bf16.mxu0 0
        %1214 = vmatpush1.bf16.msra.mxu0 %v1190
        %1215 = vmatprep.subr.bf16.mxu0 0
        %1216 = vmatpush1.bf16.msra.mxu0 0
        %1217 = vmatprep.subr.bf16.mxu0 0
        %1218 = vmatpush1.bf16.msra.mxu0 0
        %1219 = vmatprep.subr.bf16.mxu0 0
        %1220 = vmatpush1.bf16.msra.mxu0 0
        %1221 = vmatprep.subr.bf16.mxu0 0
        %1222 = vmatpush1.bf16.msra.mxu0 0
        %1223 = vmatprep.subr.bf16.mxu0 0
        %1224 = vmatpush1.bf16.msra.mxu0 0
        %1225 = vmatprep.subr.bf16.mxu0 0
        %1226 = vmatpush1.bf16.msra.mxu0 0
        %1227 = vmatprep.subr.bf16.mxu0 0
        %1228 = vmatpush1.bf16.msra.mxu0 0
        %1229 = vmatprep.subr.bf16.mxu0 0
        %1230 = vmatpush1.bf16.msra.mxu0 0
        %1231 = vmatprep.mubr.bf16.mxu0 0
        %1232 = vmatmul.mubr.bf16.gmra.mrb[0].mxu0 %v821
        %v1233 = vpop.f32.mrb[0].mxu0
        %v1234 = vadd.f32 %v1149, %v1233
        %v1235 = vpop.f32.mrb[0].mxu0
        %v1236 = vpop.f32.mrb[0].mxu0
        %v1237 = vpop.f32.mrb[0].mxu0
        %1238 = vdwg.mxu0
        %s1239 = sld [smem:[#allocation5 + $0x2]]
        %v1240 = vmax.f32 %v1234, 0.0
        %v1241 = vstv %s1239
        %v1242 = vmul.f32 %v1241, %v1240
        %v1243 = vadd.f32 %v1125, %v1242
        %v1244 = vadd.f32 %v820, %v1243
        %v1245 = vmul.f32 %v1244, 0.5
        %v1246 = vpack.c.bf16 %v1245, %v1245
        %v1247 = vmul.f32 %v589, %v1245
        %v1248 = vadd.f32 %v1247, 0.0
        %s1249 = scalar_lea.vmem %s6, 192
        %v1250 = vld [vmem:[%s1249] sm:$0xf]
        %v1251 = vld [vmem:[%s1249 + $0x4] sm:$0xf]
        %v1252 = vld [vmem:[%s1249 + $0x8] sm:$0xf]
        %v1253 = vld [vmem:[%s1249 + $0xc] sm:$0xf]
        %v1254 = vld [vmem:[%s1249 + $0x10] sm:$0xf]
        %v1255 = vld [vmem:[%s1249 + $0x14] sm:$0xf]
        %v1256 = vld [vmem:[%s1249 + $0x18] sm:$0xf]
        %v1257 = vld [vmem:[%s1249 + $0x1c] sm:$0xf]
        %v1258 = vld [vmem:[%s1249 + $0x20] sm:$0xf]
        %v1259 = vld [vmem:[%s1249 + $0x24] sm:$0xf]
        %v1260 = vld [vmem:[%s1249 + $0x28] sm:$0xf]
        %v1261 = vld [vmem:[%s1249 + $0x2c] sm:$0xf]
        %v1262 = vld [vmem:[%s1249 + $0x30] sm:$0xf]
        %v1263 = vld [vmem:[%s1249 + $0x34] sm:$0xf]
        %v1264 = vld [vmem:[%s1249 + $0x38] sm:$0xf]
        %v1265 = vld [vmem:[%s1249 + $0x3c] sm:$0xf]
        %v1282 = vunpack.c.l.b16 %v1250
        %v1283 = vunpack.c.l.b16 %v1251
        %v1284 = vunpack.c.l.b16 %v1252
        %v1285 = vunpack.c.l.b16 %v1253
        %v1286 = vunpack.c.l.b16 %v1254
        %v1287 = vunpack.c.l.b16 %v1255
        %v1288 = vunpack.c.l.b16 %v1256
        %v1289 = vunpack.c.l.b16 %v1257
        %v1290 = vunpack.c.l.b16 %v1258
        %v1291 = vunpack.c.l.b16 %v1259
        %v1292 = vunpack.c.l.b16 %v1260
        %v1293 = vunpack.c.l.b16 %v1261
        %v1294 = vunpack.c.l.b16 %v1262
        %v1295 = vunpack.c.l.b16 %v1263
        %v1296 = vunpack.c.l.b16 %v1264
        %v1297 = vunpack.c.l.b16 %v1265
        %v1298 = vpack.c.b16 %v1283, %v1282
        %v1299 = vpack.c.b16 %v1285, %v1284
        %v1300 = vpack.c.b16 %v1287, %v1286
        %v1301 = vpack.c.b16 %v1289, %v1288
        %v1302 = vpack.c.b16 %v1291, %v1290
        %v1303 = vpack.c.b16 %v1293, %v1292
        %v1304 = vpack.c.b16 %v1295, %v1294
        %v1305 = vpack.c.b16 %v1297, %v1296
        %1314 = vmatprep.subr.bf16.mxu0 0
        %1315 = vmatpush1.bf16.msra.mxu0 %v1298
        %1316 = vmatprep.subr.bf16.mxu0 0
        %1317 = vmatpush1.bf16.msra.mxu0 %v1299
        %1318 = vmatprep.subr.bf16.mxu0 0
        %1319 = vmatpush1.bf16.msra.mxu0 %v1300
        %1320 = vmatprep.subr.bf16.mxu0 0
        %1321 = vmatpush1.bf16.msra.mxu0 %v1301
        %1322 = vmatprep.subr.bf16.mxu0 0
        %1323 = vmatpush1.bf16.msra.mxu0 %v1302
        %1324 = vmatprep.subr.bf16.mxu0 0
        %1325 = vmatpush1.bf16.msra.mxu0 %v1303
        %1326 = vmatprep.subr.bf16.mxu0 0
        %1327 = vmatpush1.bf16.msra.mxu0 %v1304
        %1328 = vmatprep.subr.bf16.mxu0 0
        %1329 = vmatpush1.bf16.msra.mxu0 %v1305
        %1330 = vmatprep.subr.bf16.mxu0 0
        %1331 = vmatpush1.bf16.msra.mxu0 0
        %1332 = vmatprep.subr.bf16.mxu0 0
        %1333 = vmatpush1.bf16.msra.mxu0 0
        %1334 = vmatprep.subr.bf16.mxu0 0
        %1335 = vmatpush1.bf16.msra.mxu0 0
        %1336 = vmatprep.subr.bf16.mxu0 0
        %1337 = vmatpush1.bf16.msra.mxu0 0
        %1338 = vmatprep.subr.bf16.mxu0 0
        %1339 = vmatpush1.bf16.msra.mxu0 0
        %1340 = vmatprep.subr.bf16.mxu0 0
        %1341 = vmatpush1.bf16.msra.mxu0 0
        %1342 = vmatprep.subr.bf16.mxu0 0
        %1343 = vmatpush1.bf16.msra.mxu0 0
        %1344 = vmatprep.subr.bf16.mxu0 0
        %1345 = vmatpush1.bf16.msra.mxu0 0
        %1346 = vmatprep.mubr.bf16.mxu0 0
        %1347 = vmatmul.mubr.bf16.gmra.mrb[0].mxu0 %v1246
        %v1348 = vpop.f32.mrb[0].mxu0
        %v1349 = vadd.f32 0.0, %v1348
        %v1350 = vpop.f32.mrb[0].mxu0
        %v1351 = vpop.f32.mrb[0].mxu0
        %v1352 = vpop.f32.mrb[0].mxu0
        %1353 = vdwg.mxu0
        %v1354 = vadd.f32 %v1248, %v1349
        %s1355 = scalar_lea.vmem %s7, 2
        %v1356 = vld [vmem:[%s1355] sm:$0x1]
        %v1358 = vlaneseq
        %v1359 = vshrl.u32 %v1358, 7
        %v1360 = vsub.s32 0, %v1359
        %v1361 = vrot.slane %v1356, %v1360
        %v1363 = vadd.f32 %v1354, %v1361
        %s1364 = scalar_lea.vmem %s8, 192
        %v1365 = vld [vmem:[%s1364] sm:$0xf]
        %v1366 = vld [vmem:[%s1364 + $0x4] sm:$0xf]
        %v1367 = vld [vmem:[%s1364 + $0x8] sm:$0xf]
        %v1368 = vld [vmem:[%s1364 + $0xc] sm:$0xf]
        %v1369 = vld [vmem:[%s1364 + $0x10] sm:$0xf]
        %v1370 = vld [vmem:[%s1364 + $0x14] sm:$0xf]
        %v1371 = vld [vmem:[%s1364 + $0x18] sm:$0xf]
        %v1372 = vld [vmem:[%s1364 + $0x1c] sm:$0xf]
        %v1373 = vld [vmem:[%s1364 + $0x20] sm:$0xf]
        %v1374 = vld [vmem:[%s1364 + $0x24] sm:$0xf]
        %v1375 = vld [vmem:[%s1364 + $0x28] sm:$0xf]
        %v1376 = vld [vmem:[%s1364 + $0x2c] sm:$0xf]
        %v1377 = vld [vmem:[%s1364 + $0x30] sm:$0xf]
        %v1378 = vld [vmem:[%s1364 + $0x34] sm:$0xf]
        %v1379 = vld [vmem:[%s1364 + $0x38] sm:$0xf]
        %v1380 = vld [vmem:[%s1364 + $0x3c] sm:$0xf]
        %s1381 = scalar_lea.vmem %s9, 3
        %v1382 = vld [vmem:[%s1381] sm:$0x1]
        %v1384 = vlaneseq
        %v1385 = vshrl.u32 %v1384, 7
        %v1386 = vsub.s32 0, %v1385
        %v1387 = vrot.slane %v1382, %v1386
        %v1405 = vunpack.c.l.b16 %v1365
        %v1406 = vunpack.c.l.b16 %v1366
        %v1407 = vunpack.c.l.b16 %v1367
        %v1408 = vunpack.c.l.b16 %v1368
        %v1409 = vunpack.c.l.b16 %v1369
        %v1410 = vunpack.c.l.b16 %v1370
        %v1411 = vunpack.c.l.b16 %v1371
        %v1412 = vunpack.c.l.b16 %v1372
        %v1413 = vunpack.c.l.b16 %v1373
        %v1414 = vunpack.c.l.b16 %v1374
        %v1415 = vunpack.c.l.b16 %v1375
        %v1416 = vunpack.c.l.b16 %v1376
        %v1417 = vunpack.c.l.b16 %v1377
        %v1418 = vunpack.c.l.b16 %v1378
        %v1419 = vunpack.c.l.b16 %v1379
        %v1420 = vunpack.c.l.b16 %v1380
        %v1421 = vpack.c.b16 %v1406, %v1405
        %v1422 = vpack.c.b16 %v1408, %v1407
        %v1423 = vpack.c.b16 %v1410, %v1409
        %v1424 = vpack.c.b16 %v1412, %v1411
        %v1425 = vpack.c.b16 %v1414, %v1413
        %v1426 = vpack.c.b16 %v1416, %v1415
        %v1427 = vpack.c.b16 %v1418, %v1417
        %v1428 = vpack.c.b16 %v1420, %v1419
        %1437 = vmatprep.subr.bf16.mxu0 0
        %1438 = vmatpush1.bf16.msra.mxu0 %v1421
        %1439 = vmatprep.subr.bf16.mxu0 0
        %1440 = vmatpush1.bf16.msra.mxu0 %v1422
        %1441 = vmatprep.subr.bf16.mxu0 0
        %1442 = vmatpush1.bf16.msra.mxu0 %v1423
        %1443 = vmatprep.subr.bf16.mxu0 0
        %1444 = vmatpush1.bf16.msra.mxu0 %v1424
        %1445 = vmatprep.subr.bf16.mxu0 0
        %1446 = vmatpush1.bf16.msra.mxu0 %v1425
        %1447 = vmatprep.subr.bf16.mxu0 0
        %1448 = vmatpush1.bf16.msra.mxu0 %v1426
        %1449 = vmatprep.subr.bf16.mxu0 0
        %1450 = vmatpush1.bf16.msra.mxu0 %v1427
        %1451 = vmatprep.subr.bf16.mxu0 0
        %1452 = vmatpush1.bf16.msra.mxu0 %v1428
        %1453 = vmatprep.subr.bf16.mxu0 0
        %1454 = vmatpush1.bf16.msra.mxu0 0
        %1455 = vmatprep.subr.bf16.mxu0 0
        %1456 = vmatpush1.bf16.msra.mxu0 0
        %1457 = vmatprep.subr.bf16.mxu0 0
        %1458 = vmatpush1.bf16.msra.mxu0 0
        %1459 = vmatprep.subr.bf16.mxu0 0
        %1460 = vmatpush1.bf16.msra.mxu0 0
        %1461 = vmatprep.subr.bf16.mxu0 0
        %1462 = vmatpush1.bf16.msra.mxu0 0
        %1463 = vmatprep.subr.bf16.mxu0 0
        %1464 = vmatpush1.bf16.msra.mxu0 0
        %1465 = vmatprep.subr.bf16.mxu0 0
        %1466 = vmatpush1.bf16.msra.mxu0 0
        %1467 = vmatprep.subr.bf16.mxu0 0
        %1468 = vmatpush1.bf16.msra.mxu0 0
        %1469 = vmatprep.mubr.bf16.mxu0 0
        %1470 = vmatmul.mubr.bf16.gmra.mrb[0].mxu0 %v1246
        %v1471 = vpop.f32.mrb[0].mxu0
        %v1472 = vadd.f32 %v1387, %v1471
        %v1473 = vpop.f32.mrb[0].mxu0
        %v1474 = vpop.f32.mrb[0].mxu0
        %v1475 = vpop.f32.mrb[0].mxu0
        %1476 = vdwg.mxu0
        %v1477 = vmax.f32 %v1472, 0.0
        %v1478 = vmul.f32 %v818, %v1477
        %v1479 = vadd.f32 %v1363, %v1478
        %v1480 = vpack.c.bf16 %v1479, %v1479
        %v1481 = vmul.f32 %v823, %v1245
        %v1482 = vadd.f32 %v1481, 0.0
        %v1483 = vmul.f32 %v827, %v1479
        %v1484 = vadd.f32 %v1482, %v1483
        %v1485 = vld [vmem:[%s1249 + $0x40] sm:$0xf]
        %v1486 = vld [vmem:[%s1249 + $0x44] sm:$0xf]
        %v1487 = vld [vmem:[%s1249 + $0x48] sm:$0xf]
        %v1488 = vld [vmem:[%s1249 + $0x4c] sm:$0xf]
        %v1489 = vld [vmem:[%s1249 + $0x50] sm:$0xf]
        %v1490 = vld [vmem:[%s1249 + $0x54] sm:$0xf]
        %v1491 = vld [vmem:[%s1249 + $0x58] sm:$0xf]
        %v1492 = vld [vmem:[%s1249 + $0x5c] sm:$0xf]
        %v1493 = vld [vmem:[%s1249 + $0x60] sm:$0xf]
        %v1494 = vld [vmem:[%s1249 + $0x64] sm:$0xf]
        %v1495 = vld [vmem:[%s1249 + $0x68] sm:$0xf]
        %v1496 = vld [vmem:[%s1249 + $0x6c] sm:$0xf]
        %v1497 = vld [vmem:[%s1249 + $0x70] sm:$0xf]
        %v1498 = vld [vmem:[%s1249 + $0x74] sm:$0xf]
        %v1499 = vld [vmem:[%s1249 + $0x78] sm:$0xf]
        %v1500 = vld [vmem:[%s1249 + $0x7c] sm:$0xf]
        %v1501 = vld [vmem:[%s1249 + $0x80] sm:$0xf]
        %v1502 = vld [vmem:[%s1249 + $0x84] sm:$0xf]
        %v1503 = vld [vmem:[%s1249 + $0x88] sm:$0xf]
        %v1504 = vld [vmem:[%s1249 + $0x8c] sm:$0xf]
        %v1505 = vld [vmem:[%s1249 + $0x90] sm:$0xf]
        %v1506 = vld [vmem:[%s1249 + $0x94] sm:$0xf]
        %v1507 = vld [vmem:[%s1249 + $0x98] sm:$0xf]
        %v1508 = vld [vmem:[%s1249 + $0x9c] sm:$0xf]
        %v1509 = vld [vmem:[%s1249 + $0xa0] sm:$0xf]
        %v1510 = vld [vmem:[%s1249 + $0xa4] sm:$0xf]
        %v1511 = vld [vmem:[%s1249 + $0xa8] sm:$0xf]
        %v1512 = vld [vmem:[%s1249 + $0xac] sm:$0xf]
        %v1513 = vld [vmem:[%s1249 + $0xb0] sm:$0xf]
        %v1514 = vld [vmem:[%s1249 + $0xb4] sm:$0xf]
        %v1515 = vld [vmem:[%s1249 + $0xb8] sm:$0xf]
        %v1516 = vld [vmem:[%s1249 + $0xbc] sm:$0xf]
        %v1549 = vunpack.c.l.b16 %v1485
        %v1550 = vunpack.c.l.b16 %v1486
        %v1551 = vunpack.c.l.b16 %v1487
        %v1552 = vunpack.c.l.b16 %v1488
        %v1553 = vunpack.c.l.b16 %v1489
        %v1554 = vunpack.c.l.b16 %v1490
        %v1555 = vunpack.c.l.b16 %v1491
        %v1556 = vunpack.c.l.b16 %v1492
        %v1557 = vunpack.c.l.b16 %v1493
        %v1558 = vunpack.c.l.b16 %v1494
        %v1559 = vunpack.c.l.b16 %v1495
        %v1560 = vunpack.c.l.b16 %v1496
        %v1561 = vunpack.c.l.b16 %v1497
        %v1562 = vunpack.c.l.b16 %v1498
        %v1563 = vunpack.c.l.b16 %v1499
        %v1564 = vunpack.c.l.b16 %v1500
        %v1565 = vunpack.c.l.b16 %v1501
        %v1566 = vunpack.c.l.b16 %v1502
        %v1567 = vunpack.c.l.b16 %v1503
        %v1568 = vunpack.c.l.b16 %v1504
        %v1569 = vunpack.c.l.b16 %v1505
        %v1570 = vunpack.c.l.b16 %v1506
        %v1571 = vunpack.c.l.b16 %v1507
        %v1572 = vunpack.c.l.b16 %v1508
        %v1573 = vunpack.c.l.b16 %v1509
        %v1574 = vunpack.c.l.b16 %v1510
        %v1575 = vunpack.c.l.b16 %v1511
        %v1576 = vunpack.c.l.b16 %v1512
        %v1577 = vunpack.c.l.b16 %v1513
        %v1578 = vunpack.c.l.b16 %v1514
        %v1579 = vunpack.c.l.b16 %v1515
        %v1580 = vunpack.c.l.b16 %v1516
        %v1581 = vpack.c.b16 %v1550, %v1549
        %v1582 = vpack.c.b16 %v1552, %v1551
        %v1583 = vpack.c.b16 %v1554, %v1553
        %v1584 = vpack.c.b16 %v1556, %v1555
        %v1585 = vpack.c.b16 %v1558, %v1557
        %v1586 = vpack.c.b16 %v1560, %v1559
        %v1587 = vpack.c.b16 %v1562, %v1561
        %v1588 = vpack.c.b16 %v1564, %v1563
        %v1589 = vpack.c.b16 %v1566, %v1565
        %v1590 = vpack.c.b16 %v1568, %v1567
        %v1591 = vpack.c.b16 %v1570, %v1569
        %v1592 = vpack.c.b16 %v1572, %v1571
        %v1593 = vpack.c.b16 %v1574, %v1573
        %v1594 = vpack.c.b16 %v1576, %v1575
        %v1595 = vpack.c.b16 %v1578, %v1577
        %v1596 = vpack.c.b16 %v1580, %v1579
        %1613 = vmatprep.subr.bf16.mxu0 0
        %1614 = vmatpush1.bf16.msra.mxu0 %v1581
        %1615 = vmatprep.subr.bf16.mxu0 0
        %1616 = vmatpush1.bf16.msra.mxu0 %v1582
        %1617 = vmatprep.subr.bf16.mxu0 0
        %1618 = vmatpush1.bf16.msra.mxu0 %v1583
        %1619 = vmatprep.subr.bf16.mxu0 0
        %1620 = vmatpush1.bf16.msra.mxu0 %v1584
        %1621 = vmatprep.subr.bf16.mxu0 0
        %1622 = vmatpush1.bf16.msra.mxu0 %v1585
        %1623 = vmatprep.subr.bf16.mxu0 0
        %1624 = vmatpush1.bf16.msra.mxu0 %v1586
        %1625 = vmatprep.subr.bf16.mxu0 0
        %1626 = vmatpush1.bf16.msra.mxu0 %v1587
        %1627 = vmatprep.subr.bf16.mxu0 0
        %1628 = vmatpush1.bf16.msra.mxu0 %v1588
        %1629 = vmatprep.subr.bf16.mxu0 0
        %1630 = vmatpush1.bf16.msra.mxu0 %v1589
        %1631 = vmatprep.subr.bf16.mxu0 0
        %1632 = vmatpush1.bf16.msra.mxu0 %v1590
        %1633 = vmatprep.subr.bf16.mxu0 0
        %1634 = vmatpush1.bf16.msra.mxu0 %v1591
        %1635 = vmatprep.subr.bf16.mxu0 0
        %1636 = vmatpush1.bf16.msra.mxu0 %v1592
        %1637 = vmatprep.subr.bf16.mxu0 0
        %1638 = vmatpush1.bf16.msra.mxu0 %v1593
        %1639 = vmatprep.subr.bf16.mxu0 0
        %1640 = vmatpush1.bf16.msra.mxu0 %v1594
        %1641 = vmatprep.subr.bf16.mxu0 0
        %1642 = vmatpush1.bf16.msra.mxu0 %v1595
        %1643 = vmatprep.subr.bf16.mxu0 0
        %1644 = vmatpush1.bf16.msra.mxu0 %v1596
        %1645 = vmatprep.mubr.bf16.mxu0 %v1480
        %1646 = vmatmul.mubr.bf16.gmra.mrb[0].mxu0 %v1246
        %v1647 = vpop.f32.mrb[0].mxu0
        %v1648 = vadd.f32 0.0, %v1647
        %v1649 = vpop.f32.mrb[0].mxu0
        %v1650 = vpop.f32.mrb[0].mxu0
        %v1651 = vpop.f32.mrb[0].mxu0
        %1652 = vdwg.mxu0
        %v1653 = vadd.f32 %v1484, %v1648
        %s1654 = scalar_lea.vmem %s7, 3
        %v1655 = vld [vmem:[%s1654] sm:$0x1]
        %v1657 = vlaneseq
        %v1658 = vshrl.u32 %v1657, 7
        %v1659 = vsub.s32 0, %v1658
        %v1660 = vrot.slane %v1655, %v1659
        %v1662 = vadd.f32 %v1653, %v1660
        %s1663 = scalar_lea.vmem %s8, 256
        %v1664 = vld [vmem:[%s1663] sm:$0xf]
        %v1665 = vld [vmem:[%s1663 + $0x4] sm:$0xf]
        %v1666 = vld [vmem:[%s1663 + $0x8] sm:$0xf]
        %v1667 = vld [vmem:[%s1663 + $0xc] sm:$0xf]
        %v1668 = vld [vmem:[%s1663 + $0x10] sm:$0xf]
        %v1669 = vld [vmem:[%s1663 + $0x14] sm:$0xf]
        %v1670 = vld [vmem:[%s1663 + $0x18] sm:$0xf]
        %v1671 = vld [vmem:[%s1663 + $0x1c] sm:$0xf]
        %v1672 = vld [vmem:[%s1663 + $0x20] sm:$0xf]
        %v1673 = vld [vmem:[%s1663 + $0x24] sm:$0xf]
        %v1674 = vld [vmem:[%s1663 + $0x28] sm:$0xf]
        %v1675 = vld [vmem:[%s1663 + $0x2c] sm:$0xf]
        %v1676 = vld [vmem:[%s1663 + $0x30] sm:$0xf]
        %v1677 = vld [vmem:[%s1663 + $0x34] sm:$0xf]
        %v1678 = vld [vmem:[%s1663 + $0x38] sm:$0xf]
        %v1679 = vld [vmem:[%s1663 + $0x3c] sm:$0xf]
        %s1680 = scalar_lea.vmem %s9, 4
        %v1681 = vld [vmem:[%s1680] sm:$0x1]
        %v1683 = vlaneseq
        %v1684 = vshrl.u32 %v1683, 7
        %v1685 = vsub.s32 0, %v1684
        %v1686 = vrot.slane %v1681, %v1685
        %v1704 = vunpack.c.l.b16 %v1664
        %v1705 = vunpack.c.l.b16 %v1665
        %v1706 = vunpack.c.l.b16 %v1666
        %v1707 = vunpack.c.l.b16 %v1667
        %v1708 = vunpack.c.l.b16 %v1668
        %v1709 = vunpack.c.l.b16 %v1669
        %v1710 = vunpack.c.l.b16 %v1670
        %v1711 = vunpack.c.l.b16 %v1671
        %v1712 = vunpack.c.l.b16 %v1672
        %v1713 = vunpack.c.l.b16 %v1673
        %v1714 = vunpack.c.l.b16 %v1674
        %v1715 = vunpack.c.l.b16 %v1675
        %v1716 = vunpack.c.l.b16 %v1676
        %v1717 = vunpack.c.l.b16 %v1677
        %v1718 = vunpack.c.l.b16 %v1678
        %v1719 = vunpack.c.l.b16 %v1679
        %v1720 = vpack.c.b16 %v1705, %v1704
        %v1721 = vpack.c.b16 %v1707, %v1706
        %v1722 = vpack.c.b16 %v1709, %v1708
        %v1723 = vpack.c.b16 %v1711, %v1710
        %v1724 = vpack.c.b16 %v1713, %v1712
        %v1725 = vpack.c.b16 %v1715, %v1714
        %v1726 = vpack.c.b16 %v1717, %v1716
        %v1727 = vpack.c.b16 %v1719, %v1718
        %1736 = vmatprep.subr.bf16.mxu0 0
        %1737 = vmatpush1.bf16.msra.mxu0 %v1720
        %1738 = vmatprep.subr.bf16.mxu0 0
        %1739 = vmatpush1.bf16.msra.mxu0 %v1721
        %1740 = vmatprep.subr.bf16.mxu0 0
        %1741 = vmatpush1.bf16.msra.mxu0 %v1722
        %1742 = vmatprep.subr.bf16.mxu0 0
        %1743 = vmatpush1.bf16.msra.mxu0 %v1723
        %1744 = vmatprep.subr.bf16.mxu0 0
        %1745 = vmatpush1.bf16.msra.mxu0 %v1724
        %1746 = vmatprep.subr.bf16.mxu0 0
        %1747 = vmatpush1.bf16.msra.mxu0 %v1725
        %1748 = vmatprep.subr.bf16.mxu0 0
        %1749 = vmatpush1.bf16.msra.mxu0 %v1726
        %1750 = vmatprep.subr.bf16.mxu0 0
        %1751 = vmatpush1.bf16.msra.mxu0 %v1727
        %1752 = vmatprep.subr.bf16.mxu0 0
        %1753 = vmatpush1.bf16.msra.mxu0 0
        %1754 = vmatprep.subr.bf16.mxu0 0
        %1755 = vmatpush1.bf16.msra.mxu0 0
        %1756 = vmatprep.subr.bf16.mxu0 0
        %1757 = vmatpush1.bf16.msra.mxu0 0
        %1758 = vmatprep.subr.bf16.mxu0 0
        %1759 = vmatpush1.bf16.msra.mxu0 0
        %1760 = vmatprep.subr.bf16.mxu0 0
        %1761 = vmatpush1.bf16.msra.mxu0 0
        %1762 = vmatprep.subr.bf16.mxu0 0
        %1763 = vmatpush1.bf16.msra.mxu0 0
        %1764 = vmatprep.subr.bf16.mxu0 0
        %1765 = vmatpush1.bf16.msra.mxu0 0
        %1766 = vmatprep.subr.bf16.mxu0 0
        %1767 = vmatpush1.bf16.msra.mxu0 0
        %1768 = vmatprep.mubr.bf16.mxu0 0
        %1769 = vmatmul.mubr.bf16.gmra.mrb[0].mxu0 %v1246
        %v1770 = vpop.f32.mrb[0].mxu0
        %v1771 = vadd.f32 %v1686, %v1770
        %v1772 = vpop.f32.mrb[0].mxu0
        %v1773 = vpop.f32.mrb[0].mxu0
        %v1774 = vpop.f32.mrb[0].mxu0
        %1775 = vdwg.mxu0
        %v1776 = vmax.f32 %v1771, 0.0
        %v1777 = vmul.f32 %v1123, %v1776
        %v1778 = vadd.f32 %v1662, %v1777
        %s1779 = scalar_lea.vmem %s8, 320
        %v1780 = vld [vmem:[%s1779] sm:$0xf]
        %v1781 = vld [vmem:[%s1779 + $0x4] sm:$0xf]
        %v1782 = vld [vmem:[%s1779 + $0x8] sm:$0xf]
        %v1783 = vld [vmem:[%s1779 + $0xc] sm:$0xf]
        %v1784 = vld [vmem:[%s1779 + $0x10] sm:$0xf]
        %v1785 = vld [vmem:[%s1779 + $0x14] sm:$0xf]
        %v1786 = vld [vmem:[%s1779 + $0x18] sm:$0xf]
        %v1787 = vld [vmem:[%s1779 + $0x1c] sm:$0xf]
        %v1788 = vld [vmem:[%s1779 + $0x20] sm:$0xf]
        %v1789 = vld [vmem:[%s1779 + $0x24] sm:$0xf]
        %v1790 = vld [vmem:[%s1779 + $0x28] sm:$0xf]
        %v1791 = vld [vmem:[%s1779 + $0x2c] sm:$0xf]
        %v1792 = vld [vmem:[%s1779 + $0x30] sm:$0xf]
        %v1793 = vld [vmem:[%s1779 + $0x34] sm:$0xf]
        %v1794 = vld [vmem:[%s1779 + $0x38] sm:$0xf]
        %v1795 = vld [vmem:[%s1779 + $0x3c] sm:$0xf]
        %s1796 = scalar_lea.vmem %s9, 5
        %v1797 = vld [vmem:[%s1796] sm:$0x1]
        %v1799 = vlaneseq
        %v1800 = vshrl.u32 %v1799, 7
        %v1801 = vsub.s32 0, %v1800
        %v1802 = vrot.slane %v1797, %v1801
        %v1820 = vunpack.c.l.b16 %v1780
        %v1821 = vunpack.c.l.b16 %v1781
        %v1822 = vunpack.c.l.b16 %v1782
        %v1823 = vunpack.c.l.b16 %v1783
        %v1824 = vunpack.c.l.b16 %v1784
        %v1825 = vunpack.c.l.b16 %v1785
        %v1826 = vunpack.c.l.b16 %v1786
        %v1827 = vunpack.c.l.b16 %v1787
        %v1828 = vunpack.c.l.b16 %v1788
        %v1829 = vunpack.c.l.b16 %v1789
        %v1830 = vunpack.c.l.b16 %v1790
        %v1831 = vunpack.c.l.b16 %v1791
        %v1832 = vunpack.c.l.b16 %v1792
        %v1833 = vunpack.c.l.b16 %v1793
        %v1834 = vunpack.c.l.b16 %v1794
        %v1835 = vunpack.c.l.b16 %v1795
        %v1836 = vpack.c.b16 %v1821, %v1820
        %v1837 = vpack.c.b16 %v1823, %v1822
        %v1838 = vpack.c.b16 %v1825, %v1824
        %v1839 = vpack.c.b16 %v1827, %v1826
        %v1840 = vpack.c.b16 %v1829, %v1828
        %v1841 = vpack.c.b16 %v1831, %v1830
        %v1842 = vpack.c.b16 %v1833, %v1832
        %v1843 = vpack.c.b16 %v1835, %v1834
        %1852 = vmatprep.subr.bf16.mxu0 0
        %1853 = vmatpush1.bf16.msra.mxu0 %v1836
        %1854 = vmatprep.subr.bf16.mxu0 0
        %1855 = vmatpush1.bf16.msra.mxu0 %v1837
        %1856 = vmatprep.subr.bf16.mxu0 0
        %1857 = vmatpush1.bf16.msra.mxu0 %v1838
        %1858 = vmatprep.subr.bf16.mxu0 0
        %1859 = vmatpush1.bf16.msra.mxu0 %v1839
        %1860 = vmatprep.subr.bf16.mxu0 0
        %1861 = vmatpush1.bf16.msra.mxu0 %v1840
        %1862 = vmatprep.subr.bf16.mxu0 0
        %1863 = vmatpush1.bf16.msra.mxu0 %v1841
        %1864 = vmatprep.subr.bf16.mxu0 0
        %1865 = vmatpush1.bf16.msra.mxu0 %v1842
        %1866 = vmatprep.subr.bf16.mxu0 0
        %1867 = vmatpush1.bf16.msra.mxu0 %v1843
        %1868 = vmatprep.subr.bf16.mxu0 0
        %1869 = vmatpush1.bf16.msra.mxu0 0
        %1870 = vmatprep.subr.bf16.mxu0 0
        %1871 = vmatpush1.bf16.msra.mxu0 0
        %1872 = vmatprep.subr.bf16.mxu0 0
        %1873 = vmatpush1.bf16.msra.mxu0 0
        %1874 = vmatprep.subr.bf16.mxu0 0
        %1875 = vmatpush1.bf16.msra.mxu0 0
        %1876 = vmatprep.subr.bf16.mxu0 0
        %1877 = vmatpush1.bf16.msra.mxu0 0
        %1878 = vmatprep.subr.bf16.mxu0 0
        %1879 = vmatpush1.bf16.msra.mxu0 0
        %1880 = vmatprep.subr.bf16.mxu0 0
        %1881 = vmatpush1.bf16.msra.mxu0 0
        %1882 = vmatprep.subr.bf16.mxu0 0
        %1883 = vmatpush1.bf16.msra.mxu0 0
        %1884 = vmatprep.mubr.bf16.mxu0 0
        %1885 = vmatmul.mubr.bf16.gmra.mrb[0].mxu0 %v1480
        %v1886 = vpop.f32.mrb[0].mxu0
        %v1887 = vadd.f32 %v1802, %v1886
        %v1888 = vpop.f32.mrb[0].mxu0
        %v1889 = vpop.f32.mrb[0].mxu0
        %v1890 = vpop.f32.mrb[0].mxu0
        %1891 = vdwg.mxu0
        %v1892 = vmax.f32 %v1887, 0.0
        %v1893 = vmul.f32 %v1241, %v1892
        %v1894 = vadd.f32 %v1778, %v1893
        %v1895 = vadd.f32 %v1479, %v1894
        %v1896 = vmul.f32 %v1895, 0.5
        %v1897 = vpack.c.bf16 %v1896, %v1896
        %v1898 = vld [vmem:[%s10] sm:$0xf]
        %v1899 = vld [vmem:[%s10 + $0x4] sm:$0xf]
        %v1900 = vld [vmem:[%s10 + $0x8] sm:$0xf]
        %v1901 = vld [vmem:[%s10 + $0xc] sm:$0xf]
        %v1902 = vld [vmem:[%s10 + $0x10] sm:$0xf]
        %v1903 = vld [vmem:[%s10 + $0x14] sm:$0xf]
        %v1904 = vld [vmem:[%s10 + $0x18] sm:$0xf]
        %v1905 = vld [vmem:[%s10 + $0x1c] sm:$0xf]
        %v1906 = vld [vmem:[%s10 + $0x20] sm:$0xf]
        %v1907 = vld [vmem:[%s10 + $0x24] sm:$0xf]
        %v1908 = vld [vmem:[%s10 + $0x28] sm:$0xf]
        %v1909 = vld [vmem:[%s10 + $0x2c] sm:$0xf]
        %v1910 = vld [vmem:[%s10 + $0x30] sm:$0xf]
        %v1911 = vld [vmem:[%s10 + $0x34] sm:$0xf]
        %v1912 = vld [vmem:[%s10 + $0x38] sm:$0xf]
        %v1913 = vld [vmem:[%s10 + $0x3c] sm:$0xf]
        %v1914 = vld [vmem:[%s11] sm:$0x1]
        %v1916 = vlaneseq
        %v1917 = vshrl.u32 %v1916, 7
        %v1918 = vsub.s32 0, %v1917
        %v1919 = vrot.slane %v1914, %v1918
        %v1937 = vunpack.c.l.b16 %v1898
        %v1938 = vunpack.c.l.b16 %v1899
        %v1939 = vunpack.c.l.b16 %v1900
        %v1940 = vunpack.c.l.b16 %v1901
        %v1941 = vunpack.c.l.b16 %v1902
        %v1942 = vunpack.c.l.b16 %v1903
        %v1943 = vunpack.c.l.b16 %v1904
        %v1944 = vunpack.c.l.b16 %v1905
        %v1945 = vunpack.c.l.b16 %v1906
        %v1946 = vunpack.c.l.b16 %v1907
        %v1947 = vunpack.c.l.b16 %v1908
        %v1948 = vunpack.c.l.b16 %v1909
        %v1949 = vunpack.c.l.b16 %v1910
        %v1950 = vunpack.c.l.b16 %v1911
        %v1951 = vunpack.c.l.b16 %v1912
        %v1952 = vunpack.c.l.b16 %v1913
        %v1953 = vpack.c.b16 %v1938, %v1937
        %v1954 = vpack.c.b16 %v1940, %v1939
        %v1955 = vpack.c.b16 %v1942, %v1941
        %v1956 = vpack.c.b16 %v1944, %v1943
        %v1957 = vpack.c.b16 %v1946, %v1945
        %v1958 = vpack.c.b16 %v1948, %v1947
        %v1959 = vpack.c.b16 %v1950, %v1949
        %v1960 = vpack.c.b16 %v1952, %v1951
        %1969 = vmatprep.subr.bf16.mxu0 0
        %1970 = vmatpush1.bf16.msra.mxu0 %v1953
        %1971 = vmatprep.subr.bf16.mxu0 0
        %1972 = vmatpush1.bf16.msra.mxu0 %v1954
        %1973 = vmatprep.subr.bf16.mxu0 0
        %1974 = vmatpush1.bf16.msra.mxu0 %v1955
        %1975 = vmatprep.subr.bf16.mxu0 0
        %1976 = vmatpush1.bf16.msra.mxu0 %v1956
        %1977 = vmatprep.subr.bf16.mxu0 0
        %1978 = vmatpush1.bf16.msra.mxu0 %v1957
        %1979 = vmatprep.subr.bf16.mxu0 0
        %1980 = vmatpush1.bf16.msra.mxu0 %v1958
        %1981 = vmatprep.subr.bf16.mxu0 0
        %1982 = vmatpush1.bf16.msra.mxu0 %v1959
        %1983 = vmatprep.subr.bf16.mxu0 0
        %1984 = vmatpush1.bf16.msra.mxu0 %v1960
        %1985 = vmatprep.subr.bf16.mxu0 0
        %1986 = vmatpush1.bf16.msra.mxu0 0
        %1987 = vmatprep.subr.bf16.mxu0 0
        %1988 = vmatpush1.bf16.msra.mxu0 0
        %1989 = vmatprep.subr.bf16.mxu0 0
        %1990 = vmatpush1.bf16.msra.mxu0 0
        %1991 = vmatprep.subr.bf16.mxu0 0
        %1992 = vmatpush1.bf16.msra.mxu0 0
        %1993 = vmatprep.subr.bf16.mxu0 0
        %1994 = vmatpush1.bf16.msra.mxu0 0
        %1995 = vmatprep.subr.bf16.mxu0 0
        %1996 = vmatpush1.bf16.msra.mxu0 0
        %1997 = vmatprep.subr.bf16.mxu0 0
        %1998 = vmatpush1.bf16.msra.mxu0 0
        %1999 = vmatprep.subr.bf16.mxu0 0
        %2000 = vmatpush1.bf16.msra.mxu0 0
        %2001 = vmatprep.mubr.bf16.mxu0 0
        %2002 = vmatmul.mubr.bf16.gmra.mrb[0].mxu0 %v1897
        %v2003 = vpop.f32.mrb[0].mxu0
        %v2004 = vadd.f32 %v1919, %v2003
        %v2005 = vpop.f32.mrb[0].mxu0
        %v2006 = vpop.f32.mrb[0].mxu0
        %v2007 = vpop.f32.mrb[0].mxu0
        %2008 = vdwg.mxu0
        %v2009 = vld [vmem:[%s12] sm:$0xf]
        %v2010 = vld [vmem:[%s12 + $0x4] sm:$0xf]
        %v2011 = vld [vmem:[%s12 + $0x8] sm:$0xf]
        %v2012 = vld [vmem:[%s12 + $0xc] sm:$0xf]
        %v2013 = vld [vmem:[%s12 + $0x10] sm:$0xf]
        %v2014 = vld [vmem:[%s12 + $0x14] sm:$0xf]
        %v2015 = vld [vmem:[%s12 + $0x18] sm:$0xf]
        %v2016 = vld [vmem:[%s12 + $0x1c] sm:$0xf]
        %v2017 = vld [vmem:[%s12 + $0x20] sm:$0xf]
        %v2018 = vld [vmem:[%s12 + $0x24] sm:$0xf]
        %v2019 = vld [vmem:[%s12 + $0x28] sm:$0xf]
        %v2020 = vld [vmem:[%s12 + $0x2c] sm:$0xf]
        %v2021 = vld [vmem:[%s12 + $0x30] sm:$0xf]
        %v2022 = vld [vmem:[%s12 + $0x34] sm:$0xf]
        %v2023 = vld [vmem:[%s12 + $0x38] sm:$0xf]
        %v2024 = vld [vmem:[%s12 + $0x3c] sm:$0xf]
        %v2025 = vld [vmem:[%s13] sm:$0x1]
        %v2027 = vlaneseq
        %v2028 = vshrl.u32 %v2027, 7
        %v2029 = vsub.s32 0, %v2028
        %v2030 = vrot.slane %v2025, %v2029
        %v2048 = vunpack.c.l.b16 %v2009
        %v2049 = vunpack.c.l.b16 %v2010
        %v2050 = vunpack.c.l.b16 %v2011
        %v2051 = vunpack.c.l.b16 %v2012
        %v2052 = vunpack.c.l.b16 %v2013
        %v2053 = vunpack.c.l.b16 %v2014
        %v2054 = vunpack.c.l.b16 %v2015
        %v2055 = vunpack.c.l.b16 %v2016
        %v2056 = vunpack.c.l.b16 %v2017
        %v2057 = vunpack.c.l.b16 %v2018
        %v2058 = vunpack.c.l.b16 %v2019
        %v2059 = vunpack.c.l.b16 %v2020
        %v2060 = vunpack.c.l.b16 %v2021
        %v2061 = vunpack.c.l.b16 %v2022
        %v2062 = vunpack.c.l.b16 %v2023
        %v2063 = vunpack.c.l.b16 %v2024
        %v2064 = vpack.c.b16 %v2049, %v2048
        %v2065 = vpack.c.b16 %v2051, %v2050
        %v2066 = vpack.c.b16 %v2053, %v2052
        %v2067 = vpack.c.b16 %v2055, %v2054
        %v2068 = vpack.c.b16 %v2057, %v2056
        %v2069 = vpack.c.b16 %v2059, %v2058
        %v2070 = vpack.c.b16 %v2061, %v2060
        %v2071 = vpack.c.b16 %v2063, %v2062
        %2080 = vmatprep.subr.bf16.mxu0 0
        %2081 = vmatpush1.bf16.msra.mxu0 %v2064
        %2082 = vmatprep.subr.bf16.mxu0 0
        %2083 = vmatpush1.bf16.msra.mxu0 %v2065
        %2084 = vmatprep.subr.bf16.mxu0 0
        %2085 = vmatpush1.bf16.msra.mxu0 %v2066
        %2086 = vmatprep.subr.bf16.mxu0 0
        %2087 = vmatpush1.bf16.msra.mxu0 %v2067
        %2088 = vmatprep.subr.bf16.mxu0 0
        %2089 = vmatpush1.bf16.msra.mxu0 %v2068
        %2090 = vmatprep.subr.bf16.mxu0 0
        %2091 = vmatpush1.bf16.msra.mxu0 %v2069
        %2092 = vmatprep.subr.bf16.mxu0 0
        %2093 = vmatpush1.bf16.msra.mxu0 %v2070
        %2094 = vmatprep.subr.bf16.mxu0 0
        %2095 = vmatpush1.bf16.msra.mxu0 %v2071
        %2096 = vmatprep.subr.bf16.mxu0 0
        %2097 = vmatpush1.bf16.msra.mxu0 0
        %2098 = vmatprep.subr.bf16.mxu0 0
        %2099 = vmatpush1.bf16.msra.mxu0 0
        %2100 = vmatprep.subr.bf16.mxu0 0
        %2101 = vmatpush1.bf16.msra.mxu0 0
        %2102 = vmatprep.subr.bf16.mxu0 0
        %2103 = vmatpush1.bf16.msra.mxu0 0
        %2104 = vmatprep.subr.bf16.mxu0 0
        %2105 = vmatpush1.bf16.msra.mxu0 0
        %2106 = vmatprep.subr.bf16.mxu0 0
        %2107 = vmatpush1.bf16.msra.mxu0 0
        %2108 = vmatprep.subr.bf16.mxu0 0
        %2109 = vmatpush1.bf16.msra.mxu0 0
        %2110 = vmatprep.subr.bf16.mxu0 0
        %2111 = vmatpush1.bf16.msra.mxu0 0
        %2112 = vmatprep.mubr.bf16.mxu0 0
        %2113 = vmatmul.mubr.bf16.gmra.mrb[0].mxu0 %v1897
        %v2114 = vpop.f32.mrb[0].mxu0
        %v2115 = vadd.f32 %v2030, %v2114
        %v2116 = vpop.f32.mrb[0].mxu0
        %v2117 = vpop.f32.mrb[0].mxu0
        %v2118 = vpop.f32.mrb[0].mxu0
        %2119 = vdwg.mxu0
        %s2120 = sld [smem:[#allocation2]]
        %v2121 = vmax.f32 %v2115, 0.0
        %v2122 = vstv %s2120
        %v2123 = vmul.f32 %v2122, %v2121
        %v2124 = vadd.f32 %v2004, %v2123
        %vm2125 = vcmask 15360
        %2126 = vst.msk [vmem:[%s524] sm:$0xff] %vm2125, %v2124
        %v2127 = vrot.slane %v1245, 4
        %v2128 = vadd.f32 %v1245, %v2127
        %v2129 = vrot.slane %v2128, 2
        %v2130 = vadd.f32 %v2128, %v2129
        %v2131 = vrot.slane %v2130, 1
        %v2132 = vadd.f32 %v2130, %v2131
        %v2133 = vrcp.pop 8.0
        %v2134 = vmul.f32 %v2132, %v2133
        %2135 = vst [vmem:[%s516] sm:$0x1] %v2134
        %v2136 = vrot.slane %v1896, 4
        %v2137 = vadd.f32 %v1896, %v2136
        %v2138 = vrot.slane %v2137, 2
        %v2139 = vadd.f32 %v2137, %v2138
        %v2140 = vrot.slane %v2139, 1
        %v2141 = vadd.f32 %v2139, %v2140
        %v2142 = vmul.f32 %v2141, %v2133
        %s2143 = scalar_lea.vmem %s516, 1 [#allocation7]
        %2144 = vst [vmem:[%s2143] sm:$0x1] %v2142
        %p2145 = scmp.lt.s32.totalorder %s30, 1
        %s2146 = scalar_select %p2145, %s30, 1
        %s2147 = smul.addr %s2146, 8
        %s2148 = scalar_lea.vmem %s14, %s2147
        %s2149 = sand.u32 %s363, 1
        %s2150 = sand.u32 %s363, 1
        %s2151 = smul.addr %s2150, 2
        %s2152 = scalar_lea.vmem [#allocation7], %s2151
        // Predicated region
        $region85: #{forward.2} parent=75 // pred_check
          %p2153 = pneg %p347
        $region86: #{forward.2} parent=75 // pred_check_branch
          %2155 = sbr.rel (%p2153) target = $region88
        $region87: #{forward.2} parent=75 // pred_region
          _
        $region88: #{forward.2} parent=75 // pred_fallthru
          _
        // Predicated region
        $region89: #{forward.2} parent=75 // pred_check
          %p2156 = pneg %p373
        $region90: #{forward.2} parent=75 // pred_check_branch
          %2158 = sbr.rel (%p2156) target = $region92
        $region91: #{forward.2} parent=75 // pred_region
          %s2159 = scalar_lea.vmem %s15, %s30
          // Predicated region
          $region93: #{forward.2} parent=91 // pred_check
            _
          $region94: #{forward.2} parent=91 // pred_check_branch
            %2161 = sbr.rel (0) target = $region96
          $region95: #{forward.2} parent=91 // pred_region
            // Predicated region
            $region97: #{forward.2} parent=95 // pred_check
              _
            $region98: #{forward.2} parent=95 // pred_check_branch
              %2163 = sbr.rel target = $region100
            $region99: #{forward.2} parent=95 // pred_region
              // Predicated region
              $region112: #{forward.2} parent=99 // pred_check
                _
              $region113: #{forward.2} parent=99 // pred_check_branch
                %2180 = sbr.rel (0) target = $region115
              $region114: #{forward.2} parent=99 // pred_region
                loop: start=0, step=1, limit=1
                $region116: #{forward.2} parent=114 // loop_pre_header
                  _
                $region117: #{forward.2} parent=114 // loop_header
                  %s2183 = sphi 0, %s2187
                  %p2184 = scmp.ge.s32.totalorder %s2183, 1
                  %s2188 = sphi %s2152, %s2152
                  %s2189 = sphi %s2159, %s2159
                $region118: #{forward.2} parent=114 // loop_header_branch
                  %2186 = sbr.rel (%p2184) target = $region122
                $region119: #{forward.2} parent=114 // loop_body
                  %v2190 = vld [vmem:[%s2188] sm:$0x1]
                  %2191 = vst [vmem:[%s2189] sm:$0x1] %v2190
                  %v2192 = vld [vmem:[%s2188 + $0x1] sm:$0x1]
                  %2193 = vst [vmem:[%s2189 + $0x2] sm:$0x1] %v2192
                $region120: #{forward.2} parent=114 // loop_footer
                  %s2187 = sadd.s32 1, %s2183
                $region121: #{forward.2} parent=114 // loop_footer_branch
                  %2182 = sbr.rel target = $region117
                $region122: #{forward.2} parent=114 // loop_exit
                  _
              $region115: #{forward.2} parent=99 // pred_fallthru
                _
            $region100: #{forward.2} parent=95 // pred_fallthru
              _
            // Predicated region
            $region101: #{forward.2} parent=95 // pred_check
              _
            $region102: #{forward.2} parent=95 // pred_check_branch
              %2165 = sbr.rel (0) target = $region104
            $region103: #{forward.2} parent=95 // pred_region
              loop: start=0, step=1, limit=1
              $region105: #{forward.2} parent=103 // loop_pre_header
                _
              $region106: #{forward.2} parent=103 // loop_header
                %s2168 = sphi 0, %s2172
                %p2169 = scmp.ge.s32.totalorder %s2168, 1
                %s2173 = sphi %s2152, %s2152
                %s2174 = sphi %s2159, %s2159
              $region107: #{forward.2} parent=103 // loop_header_branch
                %2171 = sbr.rel (%p2169) target = $region111
              $region108: #{forward.2} parent=103 // loop_body
                %v2175 = vld [vmem:[%s2173] sm:$0x1]
                %2176 = vst [vmem:[%s2174] sm:$0x1] %v2175
                %v2177 = vld [vmem:[%s2173 + $0x1] sm:$0x1]
                %2178 = vst [vmem:[%s2174 + $0x2] sm:$0x1] %v2177
              $region109: #{forward.2} parent=103 // loop_footer
                %s2172 = sadd.s32 1, %s2168
              $region110: #{forward.2} parent=103 // loop_footer_branch
                %2167 = sbr.rel target = $region106
              $region111: #{forward.2} parent=103 // loop_exit
                _
            $region104: #{forward.2} parent=95 // pred_fallthru
              _
          $region96: #{forward.2} parent=91 // pred_fallthru
            _
          %2194 = vnop
        $region92: #{forward.2} parent=75 // pred_fallthru
          _
      $region76: #{forward.2} parent=5 // pred_fallthru
        _
      %p2195 = scmp.le.s32.totalorder 2, %s25
      // Predicated region
      $region123: #{forward.2} parent=5 // pred_check
        %p2196 = pneg %p2195
      $region124: #{forward.2} parent=5 // pred_check_branch
        %2198 = sbr.rel (%p2196) target = $region126
      $region125: #{forward.2} parent=5 // pred_region
        %s2199 = ssub.s32 %s25, 2
        // Predicated region
        $region127: #{forward.2} parent=125 // pred_check
          %p2200 = pneg %p353
        $region128: #{forward.2} parent=125 // pred_check_branch
          %2202 = sbr.rel (%p2200) target = $region130
        $region129: #{forward.2} parent=125 // pred_region
          %p2203 = scmp.lt.s32.totalorder %s31, 1
          %s2204 = scalar_select %p2203, %s31, 1
          %s2205 = smul.addr %s2204, 8
          %s2206 = scalar_lea.vmem %s14, %s2205
        $region130: #{forward.2} parent=125 // pred_fallthru
          _
        // Predicated region
        $region131: #{forward.2} parent=125 // pred_check
          %p2207 = pneg %p379
        $region132: #{forward.2} parent=125 // pred_check_branch
          %2209 = sbr.rel (%p2207) target = $region134
        $region133: #{forward.2} parent=125 // pred_region
          %s2210 = sand.u32 %s364, 1
          %s2211 = sand.u32 %s364, 1
          %s2212 = smul.addr %s2211, 2
          %s2213 = scalar_lea.vmem [#allocation7], %s2212
        $region134: #{forward.2} parent=125 // pred_fallthru
          _
      $region126: #{forward.2} parent=5 // pred_fallthru
        _
    $region6: #{forward.2} parent=1 // loop_footer
      %s29 = sadd.s32 1, %s25
    $region7: #{forward.2} parent=1 // loop_footer_branch
      %24 = sbr.rel target = $region3
    $region8: #{forward.2} parent=1 // loop_exit
      _
    %2214 = vsyncpa [#allocation4], 1
    %s2215 = scalar_lea.sflag [#allocation4], 1
    %2216 = vsyncpa %s2215, 1
    %2217 = vsyncpa [#allocation6], 1

// kernel: forward.3
$region0: #{forward.3}
  #allocation0 [shape = 'u32[]', space=smem, size = 0x4, offset = 0x4, fixed_abs, tag = 'smem constant byte address 0x4 - core index']
  #allocation1 [shape = 'u32[144,128]{1,0:T(1,128)}', space=vmem, size = 0x12000, scoped, tag = 'internal scratch']
  #allocation2 [shape = 'f32[1]{0:T(128)S(6)}', space=smem, size = 0x200, scoped, tag = 'scoped memory for forward.3']
  #allocation3 [shape = 'f32[1]{0:T(128)S(6)}', space=smem, size = 0x200, scoped, tag = 'scoped memory for forward.3']
  %s0 = inlined_call_operand.vmem [shape: f32[3], index: 0, kind: input, shape index: {}]
  %s1 = inlined_call_operand.vmem [shape: f32[3], index: 1, kind: input, shape index: {}]
  %s2 = inlined_call_operand.<no memory space> [shape: f32[1], index: 2, kind: input, shape index: {}]
  %s3 = inlined_call_operand.<no memory space> [shape: f32[1], index: 3, kind: input, shape index: {}]
  %s4 = inlined_call_operand.vmem [shape: f32[2,4,3], index: 4, kind: input, shape index: {}]
  %s5 = inlined_call_operand.vmem [shape: f32[2,2,1,128], index: 5, kind: input, shape index: {}]
  %s6 = inlined_call_operand.vmem [shape: bf16[3,128], index: 6, kind: input, shape index: {}]
  %s7 = inlined_call_operand.vmem [shape: f32[1,128], index: 7, kind: input, shape index: {}]
  %s8 = inlined_call_operand.vmem [shape: bf16[2,384,128], index: 8, kind: input, shape index: {}]
  %s9 = inlined_call_operand.vmem [shape: f32[4,1,128], index: 9, kind: input, shape index: {}]
  %s10 = inlined_call_operand.vmem [shape: bf16[6,128,128], index: 10, kind: input, shape index: {}]
  %s11 = inlined_call_operand.vmem [shape: f32[6,1,128], index: 11, kind: input, shape index: {}]
  %s12 = inlined_call_operand.vmem [shape: bf16[128,2], index: 12, kind: input, shape index: {}]
  %s13 = inlined_call_operand.vmem [shape: f32[1,2], index: 13, kind: input, shape index: {}]
  %s14 = inlined_call_operand.vmem [shape: bf16[128,2], index: 14, kind: input, shape index: {}]
  %s15 = inlined_call_operand.vmem [shape: f32[1,2], index: 15, kind: input, shape index: {}]
  %s16 = inlined_call_operand.vmem [shape: f32[2,4,2], index: 16, kind: output, shape index: {}]
  %s17 = sld [smem:[#allocation0]]
  $region139: #{forward.3} parent=0
    _
  %s19 = ssub.s32 1, %s17
  %s20 = scalar_select 0, %s19, %s17
  %21 = sst [smem:[#allocation2]] %s2
  %22 = sst [smem:[#allocation3]] %s3
  $region1: #{forward.3} parent=0
    #allocation4 [shape = 'u8[512]{0}', space=smem, size = 0x200, scoped, tag = 'input window, operand 0, single buffered']
    #allocation5 [shape = 's32[2]{0}', space=sflag, size = 0x8, scoped, tag = 'scoped memory for forward.3']
    #allocation6 [shape = 'u8[512]{0}', space=smem, size = 0x200, scoped, tag = 'input window, operand 1, single buffered']
    #allocation7 [shape = 's32[1]{0}', space=sflag, size = 0x4, scoped, tag = 'scoped memory for forward.3']
    #allocation8 [shape = 'u8[2048]{0}', space=vmem, size = 0x800, scoped, tag = 'input window, operand 5']
    %23 = vsyncpa [#allocation5], 0
    %24 = vsyncpa [#allocation7], 0
    loop: start=0, step=1, limit=4
    $region2: #{forward.3} parent=1 // loop_pre_header
      _
    $region3: #{forward.3} parent=1 // loop_header
      %s26 = sphi 0, %s30
      %p27 = scmp.ge.s32.totalorder %s26, 4
      %s34 = sphi 0, %s34
      %s36 = sphi 0, %s34
      %s37 = sphi 0, %s36
      %s51 = sphi 0, %s37
      %s55 = sphi 0, %s55
      %s57 = sphi 0, %s55
      %s58 = sphi 0, %s57
      %s72 = sphi 0, %s58
      %s76 = sphi 0, %s76
      %s78 = sphi 0, %s76
      %s79 = sphi 0, %s78
      %s93 = sphi 0, %s79
      %s97 = sphi 0, %s97
      %s99 = sphi 0, %s97
      %s100 = sphi 0, %s99
      %s114 = sphi 0, %s100
      %s120 = sphi 0, %s122
      %s123 = sphi 0, %s120
      %s124 = sphi 0, %s123
      %s140 = sphi 0, %s124
      %s146 = sphi 0, %s148
      %s149 = sphi 0, %s146
      %s150 = sphi 0, %s149
      %s166 = sphi 0, %s150
      %s170 = sphi 0, %s170
      %s172 = sphi 0, %s170
      %s173 = sphi 0, %s172
      %s187 = sphi 0, %s173
      %s191 = sphi 0, %s191
      %s193 = sphi 0, %s191
      %s194 = sphi 0, %s193
      %s208 = sphi 0, %s194
      %s212 = sphi 0, %s212
      %s214 = sphi 0, %s212
      %s215 = sphi 0, %s214
      %s229 = sphi 0, %s215
      %s233 = sphi 0, %s233
      %s235 = sphi 0, %s233
      %s236 = sphi 0, %s235
      %s250 = sphi 0, %s236
      %s254 = sphi 0, %s254
      %s256 = sphi 0, %s254
      %s257 = sphi 0, %s256
      %s271 = sphi 0, %s257
      %s275 = sphi 0, %s275
      %s277 = sphi 0, %s275
      %s278 = sphi 0, %s277
      %s292 = sphi 0, %s278
      %s296 = sphi 0, %s296
      %s298 = sphi 0, %s296
      %s299 = sphi 0, %s298
      %s313 = sphi 0, %s299
      %s317 = sphi 0, %s317
      %s319 = sphi 0, %s317
      %s320 = sphi 0, %s319
      %s334 = sphi 0, %s320
      %s338 = sphi 0, %s338
      %s340 = sphi 0, %s338
      %s341 = sphi 0, %s340
      %s355 = sphi 0, %s341
      %s359 = sphi 0, %s359
      %s361 = sphi 0, %s359
      %s362 = sphi 0, %s361
      %s376 = sphi 0, %s362
      %s382 = sphi 0, %s384
      %s385 = sphi 0, %s382
      %s386 = sphi 0, %s385
      %s402 = sphi 0, %s386
    $region4: #{forward.3} parent=1 // loop_header_branch
      %29 = sbr.rel (%p27) target = $region8
    $region5: #{forward.3} parent=1 // loop_body
      %s31 = ssub.s32 %s26, 1
      %s32 = ssub.s32 %s26, 2
      %s33 = sadd.s32 %s26, 1
      %s35 = sadd.s32 %s34, 1
      %p38 = scmp.eq.s32.totalorder %s26, 1
      %p39 = scmp.ne.s32.totalorder %s34, %s36
      %p40 = scmp.eq.s32.totalorder %s26, 0
      %p41 = por %p39, %p40
      %p42 = scmp.ne.s32.totalorder %s34, %s36
      %p43 = scmp.eq.s32.totalorder %s31, 1
      %p44 = por %p42, %p43
      %p45 = scmp.ne.s32.totalorder %s36, %s37
      %p46 = scmp.eq.s32.totalorder %s31, 0
      %p47 = por %p45, %p46
      %p48 = scmp.ne.s32.totalorder %s36, %s37
      %p49 = scmp.eq.s32.totalorder %s32, 1
      %p50 = por %p48, %p49
      %p52 = scmp.ne.s32.totalorder %s37, %s51
      %p53 = scmp.eq.s32.totalorder %s32, 0
      %p54 = por %p52, %p53
      %s56 = sadd.s32 %s55, 1
      %p59 = scmp.eq.s32.totalorder %s26, 1
      %p60 = scmp.ne.s32.totalorder %s55, %s57
      %p61 = scmp.eq.s32.totalorder %s26, 0
      %p62 = por %p60, %p61
      %p63 = scmp.ne.s32.totalorder %s55, %s57
      %p64 = scmp.eq.s32.totalorder %s31, 1
      %p65 = por %p63, %p64
      %p66 = scmp.ne.s32.totalorder %s57, %s58
      %p67 = scmp.eq.s32.totalorder %s31, 0
      %p68 = por %p66, %p67
      %p69 = scmp.ne.s32.totalorder %s57, %s58
      %p70 = scmp.eq.s32.totalorder %s32, 1
      %p71 = por %p69, %p70
      %p73 = scmp.ne.s32.totalorder %s58, %s72
      %p74 = scmp.eq.s32.totalorder %s32, 0
      %p75 = por %p73, %p74
      %s77 = sadd.s32 %s76, 1
      %p80 = scmp.eq.s32.totalorder %s26, 1
      %p81 = scmp.ne.s32.totalorder %s76, %s78
      %p82 = scmp.eq.s32.totalorder %s26, 0
      %p83 = por %p81, %p82
      %p84 = scmp.ne.s32.totalorder %s76, %s78
      %p85 = scmp.eq.s32.totalorder %s31, 1
      %p86 = por %p84, %p85
      %p87 = scmp.ne.s32.totalorder %s78, %s79
      %p88 = scmp.eq.s32.totalorder %s31, 0
      %p89 = por %p87, %p88
      %p90 = scmp.ne.s32.totalorder %s78, %s79
      %p91 = scmp.eq.s32.totalorder %s32, 1
      %p92 = por %p90, %p91
      %p94 = scmp.ne.s32.totalorder %s79, %s93
      %p95 = scmp.eq.s32.totalorder %s32, 0
      %p96 = por %p94, %p95
      %s98 = sadd.s32 %s97, 1
      %p101 = scmp.eq.s32.totalorder %s26, 1
      %p102 = scmp.ne.s32.totalorder %s97, %s99
      %p103 = scmp.eq.s32.totalorder %s26, 0
      %p104 = por %p102, %p103
      %p105 = scmp.ne.s32.totalorder %s97, %s99
      %p106 = scmp.eq.s32.totalorder %s31, 1
      %p107 = por %p105, %p106
      %p108 = scmp.ne.s32.totalorder %s99, %s100
      %p109 = scmp.eq.s32.totalorder %s31, 0
      %p110 = por %p108, %p109
      %p111 = scmp.ne.s32.totalorder %s99, %s100
      %p112 = scmp.eq.s32.totalorder %s32, 1
      %p113 = por %p111, %p112
      %p115 = scmp.ne.s32.totalorder %s100, %s114
      %p116 = scmp.eq.s32.totalorder %s32, 0
      %p117 = por %p115, %p116
      %s118 = ssub.s32 %s26, %s33
      %p119 = scmp.eq.s32.totalorder %s118, 0
      %s121 = sadd.s32 %s120, 1
      %s122 = scalar_select %p119, %s120, %s121
      %p125 = pneg %p119
      %p126 = scmp.eq.s32.totalorder %s26, 1
      %p127 = por %p125, %p126
      %p128 = scmp.ne.s32.totalorder %s120, %s123
      %p129 = scmp.eq.s32.totalorder %s26, 0
      %p130 = por %p128, %p129
      %p131 = scmp.ne.s32.totalorder %s120, %s123
      %p132 = scmp.eq.s32.totalorder %s31, 1
      %p133 = por %p131, %p132
      %p134 = scmp.ne.s32.totalorder %s123, %s124
      %p135 = scmp.eq.s32.totalorder %s31, 0
      %p136 = por %p134, %p135
      %p137 = scmp.ne.s32.totalorder %s123, %s124
      %p138 = scmp.eq.s32.totalorder %s32, 1
      %p139 = por %p137, %p138
      %p141 = scmp.ne.s32.totalorder %s124, %s140
      %p142 = scmp.eq.s32.totalorder %s32, 0
      %p143 = por %p141, %p142
      %s144 = ssub.s32 %s26, %s33
      %p145 = scmp.eq.s32.totalorder %s144, 0
      %s147 = sadd.s32 %s146, 1
      %s148 = scalar_select %p145, %s146, %s147
      %p151 = pneg %p145
      %p152 = scmp.eq.s32.totalorder %s26, 1
      %p153 = por %p151, %p152
      %p154 = scmp.ne.s32.totalorder %s146, %s149
      %p155 = scmp.eq.s32.totalorder %s26, 0
      %p156 = por %p154, %p155
      %p157 = scmp.ne.s32.totalorder %s146, %s149
      %p158 = scmp.eq.s32.totalorder %s31, 1
      %p159 = por %p157, %p158
      %p160 = scmp.ne.s32.totalorder %s149, %s150
      %p161 = scmp.eq.s32.totalorder %s31, 0
      %p162 = por %p160, %p161
      %p163 = scmp.ne.s32.totalorder %s149, %s150
      %p164 = scmp.eq.s32.totalorder %s32, 1
      %p165 = por %p163, %p164
      %p167 = scmp.ne.s32.totalorder %s150, %s166
      %p168 = scmp.eq.s32.totalorder %s32, 0
      %p169 = por %p167, %p168
      %s171 = sadd.s32 %s170, 1
      %p174 = scmp.eq.s32.totalorder %s26, 1
      %p175 = scmp.ne.s32.totalorder %s170, %s172
      %p176 = scmp.eq.s32.totalorder %s26, 0
      %p177 = por %p175, %p176
      %p178 = scmp.ne.s32.totalorder %s170, %s172
      %p179 = scmp.eq.s32.totalorder %s31, 1
      %p180 = por %p178, %p179
      %p181 = scmp.ne.s32.totalorder %s172, %s173
      %p182 = scmp.eq.s32.totalorder %s31, 0
      %p183 = por %p181, %p182
      %p184 = scmp.ne.s32.totalorder %s172, %s173
      %p185 = scmp.eq.s32.totalorder %s32, 1
      %p186 = por %p184, %p185
      %p188 = scmp.ne.s32.totalorder %s173, %s187
      %p189 = scmp.eq.s32.totalorder %s32, 0
      %p190 = por %p188, %p189
      %s192 = sadd.s32 %s191, 1
      %p195 = scmp.eq.s32.totalorder %s26, 1
      %p196 = scmp.ne.s32.totalorder %s191, %s193
      %p197 = scmp.eq.s32.totalorder %s26, 0
      %p198 = por %p196, %p197
      %p199 = scmp.ne.s32.totalorder %s191, %s193
      %p200 = scmp.eq.s32.totalorder %s31, 1
      %p201 = por %p199, %p200
      %p202 = scmp.ne.s32.totalorder %s193, %s194
      %p203 = scmp.eq.s32.totalorder %s31, 0
      %p204 = por %p202, %p203
      %p205 = scmp.ne.s32.totalorder %s193, %s194
      %p206 = scmp.eq.s32.totalorder %s32, 1
      %p207 = por %p205, %p206
      %p209 = scmp.ne.s32.totalorder %s194, %s208
      %p210 = scmp.eq.s32.totalorder %s32, 0
      %p211 = por %p209, %p210
      %s213 = sadd.s32 %s212, 1
      %p216 = scmp.eq.s32.totalorder %s26, 1
      %p217 = scmp.ne.s32.totalorder %s212, %s214
      %p218 = scmp.eq.s32.totalorder %s26, 0
      %p219 = por %p217, %p218
      %p220 = scmp.ne.s32.totalorder %s212, %s214
      %p221 = scmp.eq.s32.totalorder %s31, 1
      %p222 = por %p220, %p221
      %p223 = scmp.ne.s32.totalorder %s214, %s215
      %p224 = scmp.eq.s32.totalorder %s31, 0
      %p225 = por %p223, %p224
      %p226 = scmp.ne.s32.totalorder %s214, %s215
      %p227 = scmp.eq.s32.totalorder %s32, 1
      %p228 = por %p226, %p227
      %p230 = scmp.ne.s32.totalorder %s215, %s229
      %p231 = scmp.eq.s32.totalorder %s32, 0
      %p232 = por %p230, %p231
      %s234 = sadd.s32 %s233, 1
      %p237 = scmp.eq.s32.totalorder %s26, 1
      %p238 = scmp.ne.s32.totalorder %s233, %s235
      %p239 = scmp.eq.s32.totalorder %s26, 0
      %p240 = por %p238, %p239
      %p241 = scmp.ne.s32.totalorder %s233, %s235
      %p242 = scmp.eq.s32.totalorder %s31, 1
      %p243 = por %p241, %p242
      %p244 = scmp.ne.s32.totalorder %s235, %s236
      %p245 = scmp.eq.s32.totalorder %s31, 0
      %p246 = por %p244, %p245
      %p247 = scmp.ne.s32.totalorder %s235, %s236
      %p248 = scmp.eq.s32.totalorder %s32, 1
      %p249 = por %p247, %p248
      %p251 = scmp.ne.s32.totalorder %s236, %s250
      %p252 = scmp.eq.s32.totalorder %s32, 0
      %p253 = por %p251, %p252
      %s255 = sadd.s32 %s254, 1
      %p258 = scmp.eq.s32.totalorder %s26, 1
      %p259 = scmp.ne.s32.totalorder %s254, %s256
      %p260 = scmp.eq.s32.totalorder %s26, 0
      %p261 = por %p259, %p260
      %p262 = scmp.ne.s32.totalorder %s254, %s256
      %p263 = scmp.eq.s32.totalorder %s31, 1
      %p264 = por %p262, %p263
      %p265 = scmp.ne.s32.totalorder %s256, %s257
      %p266 = scmp.eq.s32.totalorder %s31, 0
      %p267 = por %p265, %p266
      %p268 = scmp.ne.s32.totalorder %s256, %s257
      %p269 = scmp.eq.s32.totalorder %s32, 1
      %p270 = por %p268, %p269
      %p272 = scmp.ne.s32.totalorder %s257, %s271
      %p273 = scmp.eq.s32.totalorder %s32, 0
      %p274 = por %p272, %p273
      %s276 = sadd.s32 %s275, 1
      %p279 = scmp.eq.s32.totalorder %s26, 1
      %p280 = scmp.ne.s32.totalorder %s275, %s277
      %p281 = scmp.eq.s32.totalorder %s26, 0
      %p282 = por %p280, %p281
      %p283 = scmp.ne.s32.totalorder %s275, %s277
      %p284 = scmp.eq.s32.totalorder %s31, 1
      %p285 = por %p283, %p284
      %p286 = scmp.ne.s32.totalorder %s277, %s278
      %p287 = scmp.eq.s32.totalorder %s31, 0
      %p288 = por %p286, %p287
      %p289 = scmp.ne.s32.totalorder %s277, %s278
      %p290 = scmp.eq.s32.totalorder %s32, 1
      %p291 = por %p289, %p290
      %p293 = scmp.ne.s32.totalorder %s278, %s292
      %p294 = scmp.eq.s32.totalorder %s32, 0
      %p295 = por %p293, %p294
      %s297 = sadd.s32 %s296, 1
      %p300 = scmp.eq.s32.totalorder %s26, 1
      %p301 = scmp.ne.s32.totalorder %s296, %s298
      %p302 = scmp.eq.s32.totalorder %s26, 0
      %p303 = por %p301, %p302
      %p304 = scmp.ne.s32.totalorder %s296, %s298
      %p305 = scmp.eq.s32.totalorder %s31, 1
      %p306 = por %p304, %p305
      %p307 = scmp.ne.s32.totalorder %s298, %s299
      %p308 = scmp.eq.s32.totalorder %s31, 0
      %p309 = por %p307, %p308
      %p310 = scmp.ne.s32.totalorder %s298, %s299
      %p311 = scmp.eq.s32.totalorder %s32, 1
      %p312 = por %p310, %p311
      %p314 = scmp.ne.s32.totalorder %s299, %s313
      %p315 = scmp.eq.s32.totalorder %s32, 0
      %p316 = por %p314, %p315
      %s318 = sadd.s32 %s317, 1
      %p321 = scmp.eq.s32.totalorder %s26, 1
      %p322 = scmp.ne.s32.totalorder %s317, %s319
      %p323 = scmp.eq.s32.totalorder %s26, 0
      %p324 = por %p322, %p323
      %p325 = scmp.ne.s32.totalorder %s317, %s319
      %p326 = scmp.eq.s32.totalorder %s31, 1
      %p327 = por %p325, %p326
      %p328 = scmp.ne.s32.totalorder %s319, %s320
      %p329 = scmp.eq.s32.totalorder %s31, 0
      %p330 = por %p328, %p329
      %p331 = scmp.ne.s32.totalorder %s319, %s320
      %p332 = scmp.eq.s32.totalorder %s32, 1
      %p333 = por %p331, %p332
      %p335 = scmp.ne.s32.totalorder %s320, %s334
      %p336 = scmp.eq.s32.totalorder %s32, 0
      %p337 = por %p335, %p336
      %s339 = sadd.s32 %s338, 1
      %p342 = scmp.eq.s32.totalorder %s26, 1
      %p343 = scmp.ne.s32.totalorder %s338, %s340
      %p344 = scmp.eq.s32.totalorder %s26, 0
      %p345 = por %p343, %p344
      %p346 = scmp.ne.s32.totalorder %s338, %s340
      %p347 = scmp.eq.s32.totalorder %s31, 1
      %p348 = por %p346, %p347
      %p349 = scmp.ne.s32.totalorder %s340, %s341
      %p350 = scmp.eq.s32.totalorder %s31, 0
      %p351 = por %p349, %p350
      %p352 = scmp.ne.s32.totalorder %s340, %s341
      %p353 = scmp.eq.s32.totalorder %s32, 1
      %p354 = por %p352, %p353
      %p356 = scmp.ne.s32.totalorder %s341, %s355
      %p357 = scmp.eq.s32.totalorder %s32, 0
      %p358 = por %p356, %p357
      %s360 = sadd.s32 %s359, 1
      %p363 = scmp.eq.s32.totalorder %s26, 1
      %p364 = scmp.ne.s32.totalorder %s359, %s361
      %p365 = scmp.eq.s32.totalorder %s26, 0
      %p366 = por %p364, %p365
      %p367 = scmp.ne.s32.totalorder %s359, %s361
      %p368 = scmp.eq.s32.totalorder %s31, 1
      %p369 = por %p367, %p368
      %p370 = scmp.ne.s32.totalorder %s361, %s362
      %p371 = scmp.eq.s32.totalorder %s31, 0
      %p372 = por %p370, %p371
      %p373 = scmp.ne.s32.totalorder %s361, %s362
      %p374 = scmp.eq.s32.totalorder %s32, 1
      %p375 = por %p373, %p374
      %p377 = scmp.ne.s32.totalorder %s362, %s376
      %p378 = scmp.eq.s32.totalorder %s32, 0
      %p379 = por %p377, %p378
      %s380 = ssub.s32 %s26, %s33
      %p381 = scmp.eq.s32.totalorder %s380, 0
      %s383 = sadd.s32 %s382, 1
      %s384 = scalar_select %p381, %s382, %s383
      %p387 = pneg %p381
      %p388 = scmp.eq.s32.totalorder %s26, 1
      %p389 = por %p387, %p388
      %p390 = scmp.ne.s32.totalorder %s382, %s385
      %p391 = scmp.eq.s32.totalorder %s26, 0
      %p392 = por %p390, %p391
      %p393 = scmp.ne.s32.totalorder %s382, %s385
      %p394 = scmp.eq.s32.totalorder %s31, 1
      %p395 = por %p393, %p394
      %p396 = scmp.ne.s32.totalorder %s385, %s386
      %p397 = scmp.eq.s32.totalorder %s31, 0
      %p398 = por %p396, %p397
      %p399 = scmp.ne.s32.totalorder %s385, %s386
      %p400 = scmp.eq.s32.totalorder %s32, 1
      %p401 = por %p399, %p400
      %p403 = scmp.ne.s32.totalorder %s386, %s402
      %p404 = scmp.eq.s32.totalorder %s32, 0
      %p405 = por %p403, %p404
      %p406 = scmp.le.s32.totalorder 1, %s26
      %p407 = scmp.lt.s32.totalorder %s26, 3
      %p408 = pnand %p406, %p407
      %p409 = pneg %p408
      // Predicated region
      $region9: #{forward.3} parent=5 // pred_check
        _
      $region10: #{forward.3} parent=5 // pred_check_branch
        %411 = sbr.rel (%p408) target = $region12
      $region11: #{forward.3} parent=5 // pred_region
        %s412 = ssub.s32 %s26, 1
        // Predicated region
        $region13: #{forward.3} parent=11 // pred_check
          %p413 = pneg %p47
        $region14: #{forward.3} parent=11 // pred_check_branch
          %415 = sbr.rel (%p413) target = $region16
        $region15: #{forward.3} parent=11 // pred_region
          %s417 = ssub.s32 16, 16
          %418 = vsyncadd [#allocation5], %s417
          %s420 = sshll.u32 %s0, 4
          %s421 = int_to_ptr.vmem [resolvable:$true] %s420
          %423 = dma.vmem_to_smem %s421, 16, [#allocation4], [#allocation5]
        $region16: #{forward.3} parent=11 // pred_fallthru
          _
        // Predicated region
        $region17: #{forward.3} parent=11 // pred_check
          %p424 = pneg %p68
        $region18: #{forward.3} parent=11 // pred_check_branch
          %426 = sbr.rel (%p424) target = $region20
        $region19: #{forward.3} parent=11 // pred_region
          %s428 = ssub.s32 16, 16
          %429 = vsyncadd [#allocation7], %s428
          %s431 = sshll.u32 %s1, 4
          %s432 = int_to_ptr.vmem [resolvable:$true] %s431
          %434 = dma.vmem_to_smem %s432, 16, [#allocation6], [#allocation7]
        $region20: #{forward.3} parent=11 // pred_fallthru
          _
        // Predicated region
        $region21: #{forward.3} parent=11 // pred_check
          %p435 = pneg %p89
        $region22: #{forward.3} parent=11 // pred_check_branch
          %437 = sbr.rel (%p435) target = $region24
        $region23: #{forward.3} parent=11 // pred_region
          _
        $region24: #{forward.3} parent=11 // pred_fallthru
          _
        // Predicated region
        $region25: #{forward.3} parent=11 // pred_check
          %p438 = pneg %p110
        $region26: #{forward.3} parent=11 // pred_check_branch
          %440 = sbr.rel (%p438) target = $region28
        $region27: #{forward.3} parent=11 // pred_region
          _
        $region28: #{forward.3} parent=11 // pred_fallthru
          _
        // Predicated region
        $region29: #{forward.3} parent=11 // pred_check
          %p441 = pneg %p183
        $region30: #{forward.3} parent=11 // pred_check_branch
          %443 = sbr.rel (%p441) target = $region32
        $region31: #{forward.3} parent=11 // pred_region
          _
        $region32: #{forward.3} parent=11 // pred_fallthru
          _
        // Predicated region
        $region33: #{forward.3} parent=11 // pred_check
          %p444 = pneg %p204
        $region34: #{forward.3} parent=11 // pred_check_branch
          %446 = sbr.rel (%p444) target = $region36
        $region35: #{forward.3} parent=11 // pred_region
          _
        $region36: #{forward.3} parent=11 // pred_fallthru
          _
        // Predicated region
        $region37: #{forward.3} parent=11 // pred_check
          %p447 = pneg %p225
        $region38: #{forward.3} parent=11 // pred_check_branch
          %449 = sbr.rel (%p447) target = $region40
        $region39: #{forward.3} parent=11 // pred_region
          _
        $region40: #{forward.3} parent=11 // pred_fallthru
          _
        // Predicated region
        $region41: #{forward.3} parent=11 // pred_check
          %p450 = pneg %p246
        $region42: #{forward.3} parent=11 // pred_check_branch
          %452 = sbr.rel (%p450) target = $region44
        $region43: #{forward.3} parent=11 // pred_region
          _
        $region44: #{forward.3} parent=11 // pred_fallthru
          _
        // Predicated region
        $region45: #{forward.3} parent=11 // pred_check
          %p453 = pneg %p267
        $region46: #{forward.3} parent=11 // pred_check_branch
          %455 = sbr.rel (%p453) target = $region48
        $region47: #{forward.3} parent=11 // pred_region
          _
        $region48: #{forward.3} parent=11 // pred_fallthru
          _
        // Predicated region
        $region49: #{forward.3} parent=11 // pred_check
          %p456 = pneg %p288
        $region50: #{forward.3} parent=11 // pred_check_branch
          %458 = sbr.rel (%p456) target = $region52
        $region51: #{forward.3} parent=11 // pred_region
          _
        $region52: #{forward.3} parent=11 // pred_fallthru
          _
        // Predicated region
        $region53: #{forward.3} parent=11 // pred_check
          %p459 = pneg %p309
        $region54: #{forward.3} parent=11 // pred_check_branch
          %461 = sbr.rel (%p459) target = $region56
        $region55: #{forward.3} parent=11 // pred_region
          _
        $region56: #{forward.3} parent=11 // pred_fallthru
          _
        // Predicated region
        $region57: #{forward.3} parent=11 // pred_check
          %p462 = pneg %p330
        $region58: #{forward.3} parent=11 // pred_check_branch
          %464 = sbr.rel (%p462) target = $region60
        $region59: #{forward.3} parent=11 // pred_region
          _
        $region60: #{forward.3} parent=11 // pred_fallthru
          _
        // Predicated region
        $region61: #{forward.3} parent=11 // pred_check
          %p465 = pneg %p351
        $region62: #{forward.3} parent=11 // pred_check_branch
          %467 = sbr.rel (%p465) target = $region64
        $region63: #{forward.3} parent=11 // pred_region
          _
        $region64: #{forward.3} parent=11 // pred_fallthru
          _
        // Predicated region
        $region65: #{forward.3} parent=11 // pred_check
          %p468 = pneg %p372
        $region66: #{forward.3} parent=11 // pred_check_branch
          %470 = sbr.rel (%p468) target = $region68
        $region67: #{forward.3} parent=11 // pred_region
          _
        $region68: #{forward.3} parent=11 // pred_fallthru
          _
      $region12: #{forward.3} parent=5 // pred_fallthru
        _
      %p471 = scmp.lt.s32.totalorder %s26, 2
      // Predicated region
      $region69: #{forward.3} parent=5 // pred_check
        %p472 = pneg %p471
      $region70: #{forward.3} parent=5 // pred_check_branch
        %474 = sbr.rel (%p472) target = $region72
      $region71: #{forward.3} parent=5 // pred_region
        // Predicated region
        $region73: #{forward.3} parent=71 // pred_check
          %p475 = pneg %p130
        $region74: #{forward.3} parent=71 // pred_check_branch
          %477 = sbr.rel (%p475) target = $region76
        $region75: #{forward.3} parent=71 // pred_region
          %p478 = scmp.lt.s32.totalorder %s26, 1
          %s479 = scalar_select %p478, %s26, 1
          %s480 = smul.addr %s479, 4
          %s481 = scalar_lea.vmem %s4, %s480
        $region76: #{forward.3} parent=71 // pred_fallthru
          _
        // Predicated region
        $region77: #{forward.3} parent=71 // pred_check
          %p482 = pneg %p156
        $region78: #{forward.3} parent=71 // pred_check_branch
          %484 = sbr.rel (%p482) target = $region80
        $region79: #{forward.3} parent=71 // pred_region
          %s485 = sand.u32 %s146, 1
          %s486 = sand.u32 %s146, 1
          %s487 = smul.addr %s486, 2
          %s488 = scalar_lea.vmem [#allocation8], %s487
          %s489 = scalar_lea.vmem %s5, %s26
          // Predicated region
          $region81: #{forward.3} parent=79 // pred_check
            _
          $region82: #{forward.3} parent=79 // pred_check_branch
            %491 = sbr.rel (0) target = $region84
          $region83: #{forward.3} parent=79 // pred_region
            // Predicated region
            $region85: #{forward.3} parent=83 // pred_check
              _
            $region86: #{forward.3} parent=83 // pred_check_branch
              %493 = sbr.rel target = $region88
            $region87: #{forward.3} parent=83 // pred_region
              // Predicated region
              $region100: #{forward.3} parent=87 // pred_check
                _
              $region101: #{forward.3} parent=87 // pred_check_branch
                %510 = sbr.rel (0) target = $region103
              $region102: #{forward.3} parent=87 // pred_region
                loop: start=0, step=1, limit=1
                $region104: #{forward.3} parent=102 // loop_pre_header
                  _
                $region105: #{forward.3} parent=102 // loop_header
                  %s513 = sphi 0, %s517
                  %p514 = scmp.ge.s32.totalorder %s513, 1
                  %s518 = sphi %s489, %s489
                  %s519 = sphi %s488, %s488
                $region106: #{forward.3} parent=102 // loop_header_branch
                  %516 = sbr.rel (%p514) target = $region110
                $region107: #{forward.3} parent=102 // loop_body
                  %v520 = vld [vmem:[%s518] sm:$0x1]
                  %521 = vst [vmem:[%s519] sm:$0x1] %v520
                  %v522 = vld [vmem:[%s518 + $0x2] sm:$0x1]
                  %523 = vst [vmem:[%s519 + $0x1] sm:$0x1] %v522
                $region108: #{forward.3} parent=102 // loop_footer
                  %s517 = sadd.s32 1, %s513
                $region109: #{forward.3} parent=102 // loop_footer_branch
                  %512 = sbr.rel target = $region105
                $region110: #{forward.3} parent=102 // loop_exit
                  _
              $region103: #{forward.3} parent=87 // pred_fallthru
                _
            $region88: #{forward.3} parent=83 // pred_fallthru
              _
            // Predicated region
            $region89: #{forward.3} parent=83 // pred_check
              _
            $region90: #{forward.3} parent=83 // pred_check_branch
              %495 = sbr.rel (0) target = $region92
            $region91: #{forward.3} parent=83 // pred_region
              loop: start=0, step=1, limit=1
              $region93: #{forward.3} parent=91 // loop_pre_header
                _
              $region94: #{forward.3} parent=91 // loop_header
                %s498 = sphi 0, %s502
                %p499 = scmp.ge.s32.totalorder %s498, 1
                %s503 = sphi %s489, %s489
                %s504 = sphi %s488, %s488
              $region95: #{forward.3} parent=91 // loop_header_branch
                %501 = sbr.rel (%p499) target = $region99
              $region96: #{forward.3} parent=91 // loop_body
                %v505 = vld [vmem:[%s503] sm:$0x1]
                %506 = vst [vmem:[%s504] sm:$0x1] %v505
                %v507 = vld [vmem:[%s503 + $0x2] sm:$0x1]
                %508 = vst [vmem:[%s504 + $0x1] sm:$0x1] %v507
              $region97: #{forward.3} parent=91 // loop_footer
                %s502 = sadd.s32 1, %s498
              $region98: #{forward.3} parent=91 // loop_footer_branch
                %497 = sbr.rel target = $region94
              $region99: #{forward.3} parent=91 // loop_exit
                _
            $region92: #{forward.3} parent=83 // pred_fallthru
              _
          $region84: #{forward.3} parent=79 // pred_fallthru
            _
          %524 = vnop
        $region80: #{forward.3} parent=71 // pred_fallthru
          _
      $region72: #{forward.3} parent=5 // pred_fallthru
        _
      %p525 = scmp.le.s32.totalorder 1, %s26
      %p526 = scmp.lt.s32.totalorder %s26, 3
      %p527 = pnand %p525, %p526
      %p528 = pneg %p527
      // Predicated region
      $region111: #{forward.3} parent=5 // pred_check
        _
      $region112: #{forward.3} parent=5 // pred_check_branch
        %530 = sbr.rel (%p527) target = $region114
      $region113: #{forward.3} parent=5 // pred_region
        %s531 = ssub.s32 %s26, 1
        // Predicated region
        $region115: #{forward.3} parent=113 // pred_check
          %p532 = pneg %p47
        $region116: #{forward.3} parent=113 // pred_check_branch
          %534 = sbr.rel (%p532) target = $region118
        $region117: #{forward.3} parent=113 // pred_region
          %535 = dma.done [#allocation5], 16
        $region118: #{forward.3} parent=113 // pred_fallthru
          _
        // Predicated region
        $region119: #{forward.3} parent=113 // pred_check
          %p536 = pneg %p68
        $region120: #{forward.3} parent=113 // pred_check_branch
          %538 = sbr.rel (%p536) target = $region122
        $region121: #{forward.3} parent=113 // pred_region
          %539 = dma.done [#allocation7], 16
        $region122: #{forward.3} parent=113 // pred_fallthru
          _
        %s540 = sand.u32 %s149, 1
        %s541 = sand.u32 %s149, 1
        %s542 = smul.addr %s541, 2
        %s543 = scalar_lea.vmem [#allocation8], %s542
        // Predicated region
        $region123: #{forward.3} parent=113 // pred_check
          %p544 = pneg %p162
        $region124: #{forward.3} parent=113 // pred_check_branch
          %546 = sbr.rel (%p544) target = $region126
        $region125: #{forward.3} parent=113 // pred_region
          _
        $region126: #{forward.3} parent=113 // pred_fallthru
          _
        %547 = sfence
        %p548 = pneg %p47
        %p549 = pneg %p44
        %p550 = pneg %p68
        %p551 = pneg %p65
        %p552 = pneg %p89
        %p553 = pneg %p86
        %p554 = pneg %p110
        %p555 = pneg %p107
        %p556 = scmp.lt.s32.totalorder %s31, 1
        %s557 = scalar_select %p556, %s31, 1
        %s558 = smul.addr %s557, 4
        %s559 = scalar_lea.vmem %s4, %s558
        %p560 = pneg %p136
        %p561 = pneg %p133
        %s562 = sand.u32 %s149, 1
        %s563 = sand.u32 %s149, 1
        %s564 = smul.addr %s563, 2
        %s565 = scalar_lea.vmem [#allocation8], %s564
        %p566 = pneg %p162
        %p567 = pneg %p159
        %p568 = pneg %p183
        %p569 = pneg %p180
        %p570 = pneg %p204
        %p571 = pneg %p201
        %p572 = pneg %p225
        %p573 = pneg %p222
        %p574 = pneg %p246
        %p575 = pneg %p243
        %p576 = pneg %p267
        %p577 = pneg %p264
        %p578 = pneg %p288
        %p579 = pneg %p285
        %p580 = pneg %p309
        %p581 = pneg %p306
        %p582 = pneg %p330
        %p583 = pneg %p327
        %p584 = pneg %p351
        %p585 = pneg %p348
        %p586 = pneg %p372
        %p587 = pneg %p369
        %p588 = pneg %p398
        %p589 = pneg %p395
        %p590 = scmp.lt.s32.totalorder %s31, 1
        %s591 = scalar_select %p590, %s31, 1
        %s592 = smul.addr %s591, 4
        %s593 = scalar_lea.vmem %s16, %s592
        %p594 = scmp.lt.s32.totalorder %s31, 1
        %s595 = scalar_select %p594, %s31, 1
        %s596 = smul.addr %s595, 4
        %s597 = scalar_lea.vmem %s4, %s596
        %p598 = scmp.lt.s32.totalorder %s31, 1
        %s599 = scalar_select %p598, %s31, 1
        %s600 = smul.addr %s599, 4
        %s601 = scalar_lea.vmem %s16, %s600
        %v603 = vld [vmem:[%s597] sm:$0xf]
        %v604 = vpack.c.bf16 %v603, %v603
        %v605 = vld [vmem:[%s6] sm:$0x3]
        %v606 = vld [vmem:[%s7] sm:$0x1]
        %v608 = vlaneseq
        %v609 = vshrl.u32 %v608, 7
        %v610 = vsub.s32 0, %v609
        %v611 = vrot.slane %v606, %v610
        %vm613 = vcmask 23552
        %v615 = vsel %vm613, %v604, 0
        %vm617 = vcmask 1040384
        %vm618 = vcmask 1041408
        %v619 = vsel %vm617, 4294967295, 65535
        %v620 = vsel %vm618, %v619, 0
        %v622 = vand.u32 %v605, %v620
        %624 = vmatprep.subr.bf16.mxu0 0
        %625 = vmatpush1.bf16.msra.mxu0 %v622
        %626 = vmatprep.subr.bf16.mxu0 0
        %627 = vmatpush1.bf16.msra.mxu0 0
        %628 = vmatprep.subr.bf16.mxu0 0
        %629 = vmatpush1.bf16.msra.mxu0 0
        %630 = vmatprep.subr.bf16.mxu0 0
        %631 = vmatpush1.bf16.msra.mxu0 0
        %632 = vmatprep.subr.bf16.mxu0 0
        %633 = vmatpush1.bf16.msra.mxu0 0
        %634 = vmatprep.subr.bf16.mxu0 0
        %635 = vmatpush1.bf16.msra.mxu0 0
        %636 = vmatprep.subr.bf16.mxu0 0
        %637 = vmatpush1.bf16.msra.mxu0 0
        %638 = vmatprep.subr.bf16.mxu0 0
        %639 = vmatpush1.bf16.msra.mxu0 0
        %640 = vmatprep.subr.bf16.mxu0 0
        %641 = vmatpush1.bf16.msra.mxu0 0
        %642 = vmatprep.subr.bf16.mxu0 0
        %643 = vmatpush1.bf16.msra.mxu0 0
        %644 = vmatprep.subr.bf16.mxu0 0
        %645 = vmatpush1.bf16.msra.mxu0 0
        %646 = vmatprep.subr.bf16.mxu0 0
        %647 = vmatpush1.bf16.msra.mxu0 0
        %648 = vmatprep.subr.bf16.mxu0 0
        %649 = vmatpush1.bf16.msra.mxu0 0
        %650 = vmatprep.subr.bf16.mxu0 0
        %651 = vmatpush1.bf16.msra.mxu0 0
        %652 = vmatprep.subr.bf16.mxu0 0
        %653 = vmatpush1.bf16.msra.mxu0 0
        %654 = vmatprep.subr.bf16.mxu0 0
        %655 = vmatpush1.bf16.msra.mxu0 0
        %656 = vmatprep.mubr.bf16.mxu0 0
        %657 = vmatmul.mubr.bf16.gmra.mrb[0].mxu0 %v615
        %v658 = vpop.f32.mrb[0].mxu0
        %v659 = vadd.f32 %v611, %v658
        %v660 = vpop.f32.mrb[0].mxu0
        %v661 = vpop.f32.mrb[0].mxu0
        %v662 = vpop.f32.mrb[0].mxu0
        %663 = vdwg.mxu0
        %v664 = vld [vmem:[%s543] sm:$0x1]
        %v666 = vlaneseq
        %v667 = vshrl.u32 %v666, 7
        %v668 = vsub.s32 0, %v667
        %v669 = vrot.slane %v664, %v668
        %v671 = vadd.f32 %v659, %v669
        %v672 = vpack.c.bf16 %v671, %v671
        %s673 = sld [smem:[#allocation4]]
        %v674 = vstv %s673
        %v675 = vmul.f32 %v674, %v671
        %v676 = vadd.f32 %v675, 0.0
        %v677 = vld [vmem:[%s8] sm:$0xf]
        %v678 = vld [vmem:[%s8 + $0x4] sm:$0xf]
        %v679 = vld [vmem:[%s8 + $0x8] sm:$0xf]
        %v680 = vld [vmem:[%s8 + $0xc] sm:$0xf]
        %v681 = vld [vmem:[%s8 + $0x10] sm:$0xf]
        %v682 = vld [vmem:[%s8 + $0x14] sm:$0xf]
        %v683 = vld [vmem:[%s8 + $0x18] sm:$0xf]
        %v684 = vld [vmem:[%s8 + $0x1c] sm:$0xf]
        %v685 = vld [vmem:[%s8 + $0x20] sm:$0xf]
        %v686 = vld [vmem:[%s8 + $0x24] sm:$0xf]
        %v687 = vld [vmem:[%s8 + $0x28] sm:$0xf]
        %v688 = vld [vmem:[%s8 + $0x2c] sm:$0xf]
        %v689 = vld [vmem:[%s8 + $0x30] sm:$0xf]
        %v690 = vld [vmem:[%s8 + $0x34] sm:$0xf]
        %v691 = vld [vmem:[%s8 + $0x38] sm:$0xf]
        %v692 = vld [vmem:[%s8 + $0x3c] sm:$0xf]
        %v709 = vunpack.c.l.b16 %v677
        %v710 = vunpack.c.l.b16 %v678
        %v711 = vunpack.c.l.b16 %v679
        %v712 = vunpack.c.l.b16 %v680
        %v713 = vunpack.c.l.b16 %v681
        %v714 = vunpack.c.l.b16 %v682
        %v715 = vunpack.c.l.b16 %v683
        %v716 = vunpack.c.l.b16 %v684
        %v717 = vunpack.c.l.b16 %v685
        %v718 = vunpack.c.l.b16 %v686
        %v719 = vunpack.c.l.b16 %v687
        %v720 = vunpack.c.l.b16 %v688
        %v721 = vunpack.c.l.b16 %v689
        %v722 = vunpack.c.l.b16 %v690
        %v723 = vunpack.c.l.b16 %v691
        %v724 = vunpack.c.l.b16 %v692
        %v725 = vpack.c.b16 %v710, %v709
        %v726 = vpack.c.b16 %v712, %v711
        %v727 = vpack.c.b16 %v714, %v713
        %v728 = vpack.c.b16 %v716, %v715
        %v729 = vpack.c.b16 %v718, %v717
        %v730 = vpack.c.b16 %v720, %v719
        %v731 = vpack.c.b16 %v722, %v721
        %v732 = vpack.c.b16 %v724, %v723
        %741 = vmatprep.subr.bf16.mxu0 0
        %742 = vmatpush1.bf16.msra.mxu0 %v725
        %743 = vmatprep.subr.bf16.mxu0 0
        %744 = vmatpush1.bf16.msra.mxu0 %v726
        %745 = vmatprep.subr.bf16.mxu0 0
        %746 = vmatpush1.bf16.msra.mxu0 %v727
        %747 = vmatprep.subr.bf16.mxu0 0
        %748 = vmatpush1.bf16.msra.mxu0 %v728
        %749 = vmatprep.subr.bf16.mxu0 0
        %750 = vmatpush1.bf16.msra.mxu0 %v729
        %751 = vmatprep.subr.bf16.mxu0 0
        %752 = vmatpush1.bf16.msra.mxu0 %v730
        %753 = vmatprep.subr.bf16.mxu0 0
        %754 = vmatpush1.bf16.msra.mxu0 %v731
        %755 = vmatprep.subr.bf16.mxu0 0
        %756 = vmatpush1.bf16.msra.mxu0 %v732
        %757 = vmatprep.subr.bf16.mxu0 0
        %758 = vmatpush1.bf16.msra.mxu0 0
        %759 = vmatprep.subr.bf16.mxu0 0
        %760 = vmatpush1.bf16.msra.mxu0 0
        %761 = vmatprep.subr.bf16.mxu0 0
        %762 = vmatpush1.bf16.msra.mxu0 0
        %763 = vmatprep.subr.bf16.mxu0 0
        %764 = vmatpush1.bf16.msra.mxu0 0
        %765 = vmatprep.subr.bf16.mxu0 0
        %766 = vmatpush1.bf16.msra.mxu0 0
        %767 = vmatprep.subr.bf16.mxu0 0
        %768 = vmatpush1.bf16.msra.mxu0 0
        %769 = vmatprep.subr.bf16.mxu0 0
        %770 = vmatpush1.bf16.msra.mxu0 0
        %771 = vmatprep.subr.bf16.mxu0 0
        %772 = vmatpush1.bf16.msra.mxu0 0
        %773 = vmatprep.mubr.bf16.mxu0 0
        %774 = vmatmul.mubr.bf16.gmra.mrb[0].mxu0 %v672
        %v775 = vpop.f32.mrb[0].mxu0
        %v776 = vadd.f32 0.0, %v775
        %v777 = vpop.f32.mrb[0].mxu0
        %v778 = vpop.f32.mrb[0].mxu0
        %v779 = vpop.f32.mrb[0].mxu0
        %780 = vdwg.mxu0
        %v781 = vadd.f32 %v676, %v776
        %v782 = vld [vmem:[%s9] sm:$0x1]
        %v784 = vlaneseq
        %v785 = vshrl.u32 %v784, 7
        %v786 = vsub.s32 0, %v785
        %v787 = vrot.slane %v782, %v786
        %v789 = vadd.f32 %v781, %v787
        %v790 = vld [vmem:[%s10] sm:$0xf]
        %v791 = vld [vmem:[%s10 + $0x4] sm:$0xf]
        %v792 = vld [vmem:[%s10 + $0x8] sm:$0xf]
        %v793 = vld [vmem:[%s10 + $0xc] sm:$0xf]
        %v794 = vld [vmem:[%s10 + $0x10] sm:$0xf]
        %v795 = vld [vmem:[%s10 + $0x14] sm:$0xf]
        %v796 = vld [vmem:[%s10 + $0x18] sm:$0xf]
        %v797 = vld [vmem:[%s10 + $0x1c] sm:$0xf]
        %v798 = vld [vmem:[%s10 + $0x20] sm:$0xf]
        %v799 = vld [vmem:[%s10 + $0x24] sm:$0xf]
        %v800 = vld [vmem:[%s10 + $0x28] sm:$0xf]
        %v801 = vld [vmem:[%s10 + $0x2c] sm:$0xf]
        %v802 = vld [vmem:[%s10 + $0x30] sm:$0xf]
        %v803 = vld [vmem:[%s10 + $0x34] sm:$0xf]
        %v804 = vld [vmem:[%s10 + $0x38] sm:$0xf]
        %v805 = vld [vmem:[%s10 + $0x3c] sm:$0xf]
        %v806 = vld [vmem:[%s11] sm:$0x1]
        %v808 = vlaneseq
        %v809 = vshrl.u32 %v808, 7
        %v810 = vsub.s32 0, %v809
        %v811 = vrot.slane %v806, %v810
        %v829 = vunpack.c.l.b16 %v790
        %v830 = vunpack.c.l.b16 %v791
        %v831 = vunpack.c.l.b16 %v792
        %v832 = vunpack.c.l.b16 %v793
        %v833 = vunpack.c.l.b16 %v794
        %v834 = vunpack.c.l.b16 %v795
        %v835 = vunpack.c.l.b16 %v796
        %v836 = vunpack.c.l.b16 %v797
        %v837 = vunpack.c.l.b16 %v798
        %v838 = vunpack.c.l.b16 %v799
        %v839 = vunpack.c.l.b16 %v800
        %v840 = vunpack.c.l.b16 %v801
        %v841 = vunpack.c.l.b16 %v802
        %v842 = vunpack.c.l.b16 %v803
        %v843 = vunpack.c.l.b16 %v804
        %v844 = vunpack.c.l.b16 %v805
        %v845 = vpack.c.b16 %v830, %v829
        %v846 = vpack.c.b16 %v832, %v831
        %v847 = vpack.c.b16 %v834, %v833
        %v848 = vpack.c.b16 %v836, %v835
        %v849 = vpack.c.b16 %v838, %v837
        %v850 = vpack.c.b16 %v840, %v839
        %v851 = vpack.c.b16 %v842, %v841
        %v852 = vpack.c.b16 %v844, %v843
        %861 = vmatprep.subr.bf16.mxu0 0
        %862 = vmatpush1.bf16.msra.mxu0 %v845
        %863 = vmatprep.subr.bf16.mxu0 0
        %864 = vmatpush1.bf16.msra.mxu0 %v846
        %865 = vmatprep.subr.bf16.mxu0 0
        %866 = vmatpush1.bf16.msra.mxu0 %v847
        %867 = vmatprep.subr.bf16.mxu0 0
        %868 = vmatpush1.bf16.msra.mxu0 %v848
        %869 = vmatprep.subr.bf16.mxu0 0
        %870 = vmatpush1.bf16.msra.mxu0 %v849
        %871 = vmatprep.subr.bf16.mxu0 0
        %872 = vmatpush1.bf16.msra.mxu0 %v850
        %873 = vmatprep.subr.bf16.mxu0 0
        %874 = vmatpush1.bf16.msra.mxu0 %v851
        %875 = vmatprep.subr.bf16.mxu0 0
        %876 = vmatpush1.bf16.msra.mxu0 %v852
        %877 = vmatprep.subr.bf16.mxu0 0
        %878 = vmatpush1.bf16.msra.mxu0 0
        %879 = vmatprep.subr.bf16.mxu0 0
        %880 = vmatpush1.bf16.msra.mxu0 0
        %881 = vmatprep.subr.bf16.mxu0 0
        %882 = vmatpush1.bf16.msra.mxu0 0
        %883 = vmatprep.subr.bf16.mxu0 0
        %884 = vmatpush1.bf16.msra.mxu0 0
        %885 = vmatprep.subr.bf16.mxu0 0
        %886 = vmatpush1.bf16.msra.mxu0 0
        %887 = vmatprep.subr.bf16.mxu0 0
        %888 = vmatpush1.bf16.msra.mxu0 0
        %889 = vmatprep.subr.bf16.mxu0 0
        %890 = vmatpush1.bf16.msra.mxu0 0
        %891 = vmatprep.subr.bf16.mxu0 0
        %892 = vmatpush1.bf16.msra.mxu0 0
        %893 = vmatprep.mubr.bf16.mxu0 0
        %894 = vmatmul.mubr.bf16.gmra.mrb[0].mxu0 %v672
        %v895 = vpop.f32.mrb[0].mxu0
        %v896 = vadd.f32 %v811, %v895
        %v897 = vpop.f32.mrb[0].mxu0
        %v898 = vpop.f32.mrb[0].mxu0
        %v899 = vpop.f32.mrb[0].mxu0
        %900 = vdwg.mxu0
        %s901 = sld [smem:[#allocation6]]
        %v902 = vtanh.pop %v896
        %v903 = vstv %s901
        %v904 = vmul.f32 %v903, %v902
        %v905 = vadd.f32 %v789, %v904
        %v906 = vpack.c.bf16 %v905, %v905
        %s907 = sld [smem:[#allocation4 + $0x1]]
        %v908 = vstv %s907
        %v909 = vmul.f32 %v908, %v671
        %v910 = vadd.f32 %v909, 0.0
        %s911 = sld [smem:[#allocation4 + $0x2]]
        %v912 = vstv %s911
        %v913 = vmul.f32 %v912, %v905
        %v914 = vadd.f32 %v910, %v913
        %v915 = vld [vmem:[%s8 + $0x40] sm:$0xf]
        %v916 = vld [vmem:[%s8 + $0x44] sm:$0xf]
        %v917 = vld [vmem:[%s8 + $0x48] sm:$0xf]
        %v918 = vld [vmem:[%s8 + $0x4c] sm:$0xf]
        %v919 = vld [vmem:[%s8 + $0x50] sm:$0xf]
        %v920 = vld [vmem:[%s8 + $0x54] sm:$0xf]
        %v921 = vld [vmem:[%s8 + $0x58] sm:$0xf]
        %v922 = vld [vmem:[%s8 + $0x5c] sm:$0xf]
        %v923 = vld [vmem:[%s8 + $0x60] sm:$0xf]
        %v924 = vld [vmem:[%s8 + $0x64] sm:$0xf]
        %v925 = vld [vmem:[%s8 + $0x68] sm:$0xf]
        %v926 = vld [vmem:[%s8 + $0x6c] sm:$0xf]
        %v927 = vld [vmem:[%s8 + $0x70] sm:$0xf]
        %v928 = vld [vmem:[%s8 + $0x74] sm:$0xf]
        %v929 = vld [vmem:[%s8 + $0x78] sm:$0xf]
        %v930 = vld [vmem:[%s8 + $0x7c] sm:$0xf]
        %v931 = vld [vmem:[%s8 + $0x80] sm:$0xf]
        %v932 = vld [vmem:[%s8 + $0x84] sm:$0xf]
        %v933 = vld [vmem:[%s8 + $0x88] sm:$0xf]
        %v934 = vld [vmem:[%s8 + $0x8c] sm:$0xf]
        %v935 = vld [vmem:[%s8 + $0x90] sm:$0xf]
        %v936 = vld [vmem:[%s8 + $0x94] sm:$0xf]
        %v937 = vld [vmem:[%s8 + $0x98] sm:$0xf]
        %v938 = vld [vmem:[%s8 + $0x9c] sm:$0xf]
        %v939 = vld [vmem:[%s8 + $0xa0] sm:$0xf]
        %v940 = vld [vmem:[%s8 + $0xa4] sm:$0xf]
        %v941 = vld [vmem:[%s8 + $0xa8] sm:$0xf]
        %v942 = vld [vmem:[%s8 + $0xac] sm:$0xf]
        %v943 = vld [vmem:[%s8 + $0xb0] sm:$0xf]
        %v944 = vld [vmem:[%s8 + $0xb4] sm:$0xf]
        %v945 = vld [vmem:[%s8 + $0xb8] sm:$0xf]
        %v946 = vld [vmem:[%s8 + $0xbc] sm:$0xf]
        %v979 = vunpack.c.l.b16 %v915
        %v980 = vunpack.c.l.b16 %v916
        %v981 = vunpack.c.l.b16 %v917
        %v982 = vunpack.c.l.b16 %v918
        %v983 = vunpack.c.l.b16 %v919
        %v984 = vunpack.c.l.b16 %v920
        %v985 = vunpack.c.l.b16 %v921
        %v986 = vunpack.c.l.b16 %v922
        %v987 = vunpack.c.l.b16 %v923
        %v988 = vunpack.c.l.b16 %v924
        %v989 = vunpack.c.l.b16 %v925
        %v990 = vunpack.c.l.b16 %v926
        %v991 = vunpack.c.l.b16 %v927
        %v992 = vunpack.c.l.b16 %v928
        %v993 = vunpack.c.l.b16 %v929
        %v994 = vunpack.c.l.b16 %v930
        %v995 = vunpack.c.l.b16 %v931
        %v996 = vunpack.c.l.b16 %v932
        %v997 = vunpack.c.l.b16 %v933
        %v998 = vunpack.c.l.b16 %v934
        %v999 = vunpack.c.l.b16 %v935
        %v1000 = vunpack.c.l.b16 %v936
        %v1001 = vunpack.c.l.b16 %v937
        %v1002 = vunpack.c.l.b16 %v938
        %v1003 = vunpack.c.l.b16 %v939
        %v1004 = vunpack.c.l.b16 %v940
        %v1005 = vunpack.c.l.b16 %v941
        %v1006 = vunpack.c.l.b16 %v942
        %v1007 = vunpack.c.l.b16 %v943
        %v1008 = vunpack.c.l.b16 %v944
        %v1009 = vunpack.c.l.b16 %v945
        %v1010 = vunpack.c.l.b16 %v946
        %v1011 = vpack.c.b16 %v980, %v979
        %v1012 = vpack.c.b16 %v982, %v981
        %v1013 = vpack.c.b16 %v984, %v983
        %v1014 = vpack.c.b16 %v986, %v985
        %v1015 = vpack.c.b16 %v988, %v987
        %v1016 = vpack.c.b16 %v990, %v989
        %v1017 = vpack.c.b16 %v992, %v991
        %v1018 = vpack.c.b16 %v994, %v993
        %v1019 = vpack.c.b16 %v996, %v995
        %v1020 = vpack.c.b16 %v998, %v997
        %v1021 = vpack.c.b16 %v1000, %v999
        %v1022 = vpack.c.b16 %v1002, %v1001
        %v1023 = vpack.c.b16 %v1004, %v1003
        %v1024 = vpack.c.b16 %v1006, %v1005
        %v1025 = vpack.c.b16 %v1008, %v1007
        %v1026 = vpack.c.b16 %v1010, %v1009
        %1043 = vmatprep.subr.bf16.mxu0 0
        %1044 = vmatpush1.bf16.msra.mxu0 %v1011
        %1045 = vmatprep.subr.bf16.mxu0 0
        %1046 = vmatpush1.bf16.msra.mxu0 %v1012
        %1047 = vmatprep.subr.bf16.mxu0 0
        %1048 = vmatpush1.bf16.msra.mxu0 %v1013
        %1049 = vmatprep.subr.bf16.mxu0 0
        %1050 = vmatpush1.bf16.msra.mxu0 %v1014
        %1051 = vmatprep.subr.bf16.mxu0 0
        %1052 = vmatpush1.bf16.msra.mxu0 %v1015
        %1053 = vmatprep.subr.bf16.mxu0 0
        %1054 = vmatpush1.bf16.msra.mxu0 %v1016
        %1055 = vmatprep.subr.bf16.mxu0 0
        %1056 = vmatpush1.bf16.msra.mxu0 %v1017
        %1057 = vmatprep.subr.bf16.mxu0 0
        %1058 = vmatpush1.bf16.msra.mxu0 %v1018
        %1059 = vmatprep.subr.bf16.mxu0 0
        %1060 = vmatpush1.bf16.msra.mxu0 %v1019
        %1061 = vmatprep.subr.bf16.mxu0 0
        %1062 = vmatpush1.bf16.msra.mxu0 %v1020
        %1063 = vmatprep.subr.bf16.mxu0 0
        %1064 = vmatpush1.bf16.msra.mxu0 %v1021
        %1065 = vmatprep.subr.bf16.mxu0 0
        %1066 = vmatpush1.bf16.msra.mxu0 %v1022
        %1067 = vmatprep.subr.bf16.mxu0 0
        %1068 = vmatpush1.bf16.msra.mxu0 %v1023
        %1069 = vmatprep.subr.bf16.mxu0 0
        %1070 = vmatpush1.bf16.msra.mxu0 %v1024
        %1071 = vmatprep.subr.bf16.mxu0 0
        %1072 = vmatpush1.bf16.msra.mxu0 %v1025
        %1073 = vmatprep.subr.bf16.mxu0 0
        %1074 = vmatpush1.bf16.msra.mxu0 %v1026
        %1075 = vmatprep.mubr.bf16.mxu0 %v906
        %1076 = vmatmul.mubr.bf16.gmra.mrb[0].mxu0 %v672
        %v1077 = vpop.f32.mrb[0].mxu0
        %v1078 = vadd.f32 0.0, %v1077
        %v1079 = vpop.f32.mrb[0].mxu0
        %v1080 = vpop.f32.mrb[0].mxu0
        %v1081 = vpop.f32.mrb[0].mxu0
        %1082 = vdwg.mxu0
        %v1083 = vadd.f32 %v914, %v1078
        %s1084 = scalar_lea.vmem %s9, 1
        %v1085 = vld [vmem:[%s1084] sm:$0x1]
        %v1087 = vlaneseq
        %v1088 = vshrl.u32 %v1087, 7
        %v1089 = vsub.s32 0, %v1088
        %v1090 = vrot.slane %v1085, %v1089
        %v1092 = vadd.f32 %v1083, %v1090
        %s1093 = scalar_lea.vmem %s10, 64
        %v1094 = vld [vmem:[%s1093] sm:$0xf]
        %v1095 = vld [vmem:[%s1093 + $0x4] sm:$0xf]
        %v1096 = vld [vmem:[%s1093 + $0x8] sm:$0xf]
        %v1097 = vld [vmem:[%s1093 + $0xc] sm:$0xf]
        %v1098 = vld [vmem:[%s1093 + $0x10] sm:$0xf]
        %v1099 = vld [vmem:[%s1093 + $0x14] sm:$0xf]
        %v1100 = vld [vmem:[%s1093 + $0x18] sm:$0xf]
        %v1101 = vld [vmem:[%s1093 + $0x1c] sm:$0xf]
        %v1102 = vld [vmem:[%s1093 + $0x20] sm:$0xf]
        %v1103 = vld [vmem:[%s1093 + $0x24] sm:$0xf]
        %v1104 = vld [vmem:[%s1093 + $0x28] sm:$0xf]
        %v1105 = vld [vmem:[%s1093 + $0x2c] sm:$0xf]
        %v1106 = vld [vmem:[%s1093 + $0x30] sm:$0xf]
        %v1107 = vld [vmem:[%s1093 + $0x34] sm:$0xf]
        %v1108 = vld [vmem:[%s1093 + $0x38] sm:$0xf]
        %v1109 = vld [vmem:[%s1093 + $0x3c] sm:$0xf]
        %s1110 = scalar_lea.vmem %s11, 1
        %v1111 = vld [vmem:[%s1110] sm:$0x1]
        %v1113 = vlaneseq
        %v1114 = vshrl.u32 %v1113, 7
        %v1115 = vsub.s32 0, %v1114
        %v1116 = vrot.slane %v1111, %v1115
        %v1134 = vunpack.c.l.b16 %v1094
        %v1135 = vunpack.c.l.b16 %v1095
        %v1136 = vunpack.c.l.b16 %v1096
        %v1137 = vunpack.c.l.b16 %v1097
        %v1138 = vunpack.c.l.b16 %v1098
        %v1139 = vunpack.c.l.b16 %v1099
        %v1140 = vunpack.c.l.b16 %v1100
        %v1141 = vunpack.c.l.b16 %v1101
        %v1142 = vunpack.c.l.b16 %v1102
        %v1143 = vunpack.c.l.b16 %v1103
        %v1144 = vunpack.c.l.b16 %v1104
        %v1145 = vunpack.c.l.b16 %v1105
        %v1146 = vunpack.c.l.b16 %v1106
        %v1147 = vunpack.c.l.b16 %v1107
        %v1148 = vunpack.c.l.b16 %v1108
        %v1149 = vunpack.c.l.b16 %v1109
        %v1150 = vpack.c.b16 %v1135, %v1134
        %v1151 = vpack.c.b16 %v1137, %v1136
        %v1152 = vpack.c.b16 %v1139, %v1138
        %v1153 = vpack.c.b16 %v1141, %v1140
        %v1154 = vpack.c.b16 %v1143, %v1142
        %v1155 = vpack.c.b16 %v1145, %v1144
        %v1156 = vpack.c.b16 %v1147, %v1146
        %v1157 = vpack.c.b16 %v1149, %v1148
        %1166 = vmatprep.subr.bf16.mxu0 0
        %1167 = vmatpush1.bf16.msra.mxu0 %v1150
        %1168 = vmatprep.subr.bf16.mxu0 0
        %1169 = vmatpush1.bf16.msra.mxu0 %v1151
        %1170 = vmatprep.subr.bf16.mxu0 0
        %1171 = vmatpush1.bf16.msra.mxu0 %v1152
        %1172 = vmatprep.subr.bf16.mxu0 0
        %1173 = vmatpush1.bf16.msra.mxu0 %v1153
        %1174 = vmatprep.subr.bf16.mxu0 0
        %1175 = vmatpush1.bf16.msra.mxu0 %v1154
        %1176 = vmatprep.subr.bf16.mxu0 0
        %1177 = vmatpush1.bf16.msra.mxu0 %v1155
        %1178 = vmatprep.subr.bf16.mxu0 0
        %1179 = vmatpush1.bf16.msra.mxu0 %v1156
        %1180 = vmatprep.subr.bf16.mxu0 0
        %1181 = vmatpush1.bf16.msra.mxu0 %v1157
        %1182 = vmatprep.subr.bf16.mxu0 0
        %1183 = vmatpush1.bf16.msra.mxu0 0
        %1184 = vmatprep.subr.bf16.mxu0 0
        %1185 = vmatpush1.bf16.msra.mxu0 0
        %1186 = vmatprep.subr.bf16.mxu0 0
        %1187 = vmatpush1.bf16.msra.mxu0 0
        %1188 = vmatprep.subr.bf16.mxu0 0
        %1189 = vmatpush1.bf16.msra.mxu0 0
        %1190 = vmatprep.subr.bf16.mxu0 0
        %1191 = vmatpush1.bf16.msra.mxu0 0
        %1192 = vmatprep.subr.bf16.mxu0 0
        %1193 = vmatpush1.bf16.msra.mxu0 0
        %1194 = vmatprep.subr.bf16.mxu0 0
        %1195 = vmatpush1.bf16.msra.mxu0 0
        %1196 = vmatprep.subr.bf16.mxu0 0
        %1197 = vmatpush1.bf16.msra.mxu0 0
        %1198 = vmatprep.mubr.bf16.mxu0 0
        %1199 = vmatmul.mubr.bf16.gmra.mrb[0].mxu0 %v672
        %v1200 = vpop.f32.mrb[0].mxu0
        %v1201 = vadd.f32 %v1116, %v1200
        %v1202 = vpop.f32.mrb[0].mxu0
        %v1203 = vpop.f32.mrb[0].mxu0
        %v1204 = vpop.f32.mrb[0].mxu0
        %1205 = vdwg.mxu0
        %s1206 = sld [smem:[#allocation6 + $0x1]]
        %v1207 = vtanh.pop %v1201
        %v1208 = vstv %s1206
        %v1209 = vmul.f32 %v1208, %v1207
        %v1210 = vadd.f32 %v1092, %v1209
        %s1211 = scalar_lea.vmem %s10, 128
        %v1212 = vld [vmem:[%s1211] sm:$0xf]
        %v1213 = vld [vmem:[%s1211 + $0x4] sm:$0xf]
        %v1214 = vld [vmem:[%s1211 + $0x8] sm:$0xf]
        %v1215 = vld [vmem:[%s1211 + $0xc] sm:$0xf]
        %v1216 = vld [vmem:[%s1211 + $0x10] sm:$0xf]
        %v1217 = vld [vmem:[%s1211 + $0x14] sm:$0xf]
        %v1218 = vld [vmem:[%s1211 + $0x18] sm:$0xf]
        %v1219 = vld [vmem:[%s1211 + $0x1c] sm:$0xf]
        %v1220 = vld [vmem:[%s1211 + $0x20] sm:$0xf]
        %v1221 = vld [vmem:[%s1211 + $0x24] sm:$0xf]
        %v1222 = vld [vmem:[%s1211 + $0x28] sm:$0xf]
        %v1223 = vld [vmem:[%s1211 + $0x2c] sm:$0xf]
        %v1224 = vld [vmem:[%s1211 + $0x30] sm:$0xf]
        %v1225 = vld [vmem:[%s1211 + $0x34] sm:$0xf]
        %v1226 = vld [vmem:[%s1211 + $0x38] sm:$0xf]
        %v1227 = vld [vmem:[%s1211 + $0x3c] sm:$0xf]
        %s1228 = scalar_lea.vmem %s11, 2
        %v1229 = vld [vmem:[%s1228] sm:$0x1]
        %v1231 = vlaneseq
        %v1232 = vshrl.u32 %v1231, 7
        %v1233 = vsub.s32 0, %v1232
        %v1234 = vrot.slane %v1229, %v1233
        %v1252 = vunpack.c.l.b16 %v1212
        %v1253 = vunpack.c.l.b16 %v1213
        %v1254 = vunpack.c.l.b16 %v1214
        %v1255 = vunpack.c.l.b16 %v1215
        %v1256 = vunpack.c.l.b16 %v1216
        %v1257 = vunpack.c.l.b16 %v1217
        %v1258 = vunpack.c.l.b16 %v1218
        %v1259 = vunpack.c.l.b16 %v1219
        %v1260 = vunpack.c.l.b16 %v1220
        %v1261 = vunpack.c.l.b16 %v1221
        %v1262 = vunpack.c.l.b16 %v1222
        %v1263 = vunpack.c.l.b16 %v1223
        %v1264 = vunpack.c.l.b16 %v1224
        %v1265 = vunpack.c.l.b16 %v1225
        %v1266 = vunpack.c.l.b16 %v1226
        %v1267 = vunpack.c.l.b16 %v1227
        %v1268 = vpack.c.b16 %v1253, %v1252
        %v1269 = vpack.c.b16 %v1255, %v1254
        %v1270 = vpack.c.b16 %v1257, %v1256
        %v1271 = vpack.c.b16 %v1259, %v1258
        %v1272 = vpack.c.b16 %v1261, %v1260
        %v1273 = vpack.c.b16 %v1263, %v1262
        %v1274 = vpack.c.b16 %v1265, %v1264
        %v1275 = vpack.c.b16 %v1267, %v1266
        %1284 = vmatprep.subr.bf16.mxu0 0
        %1285 = vmatpush1.bf16.msra.mxu0 %v1268
        %1286 = vmatprep.subr.bf16.mxu0 0
        %1287 = vmatpush1.bf16.msra.mxu0 %v1269
        %1288 = vmatprep.subr.bf16.mxu0 0
        %1289 = vmatpush1.bf16.msra.mxu0 %v1270
        %1290 = vmatprep.subr.bf16.mxu0 0
        %1291 = vmatpush1.bf16.msra.mxu0 %v1271
        %1292 = vmatprep.subr.bf16.mxu0 0
        %1293 = vmatpush1.bf16.msra.mxu0 %v1272
        %1294 = vmatprep.subr.bf16.mxu0 0
        %1295 = vmatpush1.bf16.msra.mxu0 %v1273
        %1296 = vmatprep.subr.bf16.mxu0 0
        %1297 = vmatpush1.bf16.msra.mxu0 %v1274
        %1298 = vmatprep.subr.bf16.mxu0 0
        %1299 = vmatpush1.bf16.msra.mxu0 %v1275
        %1300 = vmatprep.subr.bf16.mxu0 0
        %1301 = vmatpush1.bf16.msra.mxu0 0
        %1302 = vmatprep.subr.bf16.mxu0 0
        %1303 = vmatpush1.bf16.msra.mxu0 0
        %1304 = vmatprep.subr.bf16.mxu0 0
        %1305 = vmatpush1.bf16.msra.mxu0 0
        %1306 = vmatprep.subr.bf16.mxu0 0
        %1307 = vmatpush1.bf16.msra.mxu0 0
        %1308 = vmatprep.subr.bf16.mxu0 0
        %1309 = vmatpush1.bf16.msra.mxu0 0
        %1310 = vmatprep.subr.bf16.mxu0 0
        %1311 = vmatpush1.bf16.msra.mxu0 0
        %1312 = vmatprep.subr.bf16.mxu0 0
        %1313 = vmatpush1.bf16.msra.mxu0 0
        %1314 = vmatprep.subr.bf16.mxu0 0
        %1315 = vmatpush1.bf16.msra.mxu0 0
        %1316 = vmatprep.mubr.bf16.mxu0 0
        %1317 = vmatmul.mubr.bf16.gmra.mrb[0].mxu0 %v906
        %v1318 = vpop.f32.mrb[0].mxu0
        %v1319 = vadd.f32 %v1234, %v1318
        %v1320 = vpop.f32.mrb[0].mxu0
        %v1321 = vpop.f32.mrb[0].mxu0
        %v1322 = vpop.f32.mrb[0].mxu0
        %1323 = vdwg.mxu0
        %s1324 = sld [smem:[#allocation6 + $0x2]]
        %v1325 = vtanh.pop %v1319
        %v1326 = vstv %s1324
        %v1327 = vmul.f32 %v1326, %v1325
        %v1328 = vadd.f32 %v1210, %v1327
        %v1329 = vadd.f32 %v905, %v1328
        %v1330 = vmul.f32 %v1329, 0.5
        %s1331 = scalar_lea.vmem %s543, 1 [#allocation8]
        %v1332 = vld [vmem:[%s1331] sm:$0x1]
        %v1334 = vlaneseq
        %v1335 = vshrl.u32 %v1334, 7
        %v1336 = vsub.s32 0, %v1335
        %v1337 = vrot.slane %v1332, %v1336
        %v1339 = vadd.f32 %v1330, %v1337
        %v1340 = vpack.c.bf16 %v1339, %v1339
        %v1341 = vmul.f32 %v674, %v1339
        %v1342 = vadd.f32 %v1341, 0.0
        %s1343 = scalar_lea.vmem %s8, 192
        %v1344 = vld [vmem:[%s1343] sm:$0xf]
        %v1345 = vld [vmem:[%s1343 + $0x4] sm:$0xf]
        %v1346 = vld [vmem:[%s1343 + $0x8] sm:$0xf]
        %v1347 = vld [vmem:[%s1343 + $0xc] sm:$0xf]
        %v1348 = vld [vmem:[%s1343 + $0x10] sm:$0xf]
        %v1349 = vld [vmem:[%s1343 + $0x14] sm:$0xf]
        %v1350 = vld [vmem:[%s1343 + $0x18] sm:$0xf]
        %v1351 = vld [vmem:[%s1343 + $0x1c] sm:$0xf]
        %v1352 = vld [vmem:[%s1343 + $0x20] sm:$0xf]
        %v1353 = vld [vmem:[%s1343 + $0x24] sm:$0xf]
        %v1354 = vld [vmem:[%s1343 + $0x28] sm:$0xf]
        %v1355 = vld [vmem:[%s1343 + $0x2c] sm:$0xf]
        %v1356 = vld [vmem:[%s1343 + $0x30] sm:$0xf]
        %v1357 = vld [vmem:[%s1343 + $0x34] sm:$0xf]
        %v1358 = vld [vmem:[%s1343 + $0x38] sm:$0xf]
        %v1359 = vld [vmem:[%s1343 + $0x3c] sm:$0xf]
        %v1376 = vunpack.c.l.b16 %v1344
        %v1377 = vunpack.c.l.b16 %v1345
        %v1378 = vunpack.c.l.b16 %v1346
        %v1379 = vunpack.c.l.b16 %v1347
        %v1380 = vunpack.c.l.b16 %v1348
        %v1381 = vunpack.c.l.b16 %v1349
        %v1382 = vunpack.c.l.b16 %v1350
        %v1383 = vunpack.c.l.b16 %v1351
        %v1384 = vunpack.c.l.b16 %v1352
        %v1385 = vunpack.c.l.b16 %v1353
        %v1386 = vunpack.c.l.b16 %v1354
        %v1387 = vunpack.c.l.b16 %v1355
        %v1388 = vunpack.c.l.b16 %v1356
        %v1389 = vunpack.c.l.b16 %v1357
        %v1390 = vunpack.c.l.b16 %v1358
        %v1391 = vunpack.c.l.b16 %v1359
        %v1392 = vpack.c.b16 %v1377, %v1376
        %v1393 = vpack.c.b16 %v1379, %v1378
        %v1394 = vpack.c.b16 %v1381, %v1380
        %v1395 = vpack.c.b16 %v1383, %v1382
        %v1396 = vpack.c.b16 %v1385, %v1384
        %v1397 = vpack.c.b16 %v1387, %v1386
        %v1398 = vpack.c.b16 %v1389, %v1388
        %v1399 = vpack.c.b16 %v1391, %v1390
        %1408 = vmatprep.subr.bf16.mxu0 0
        %1409 = vmatpush1.bf16.msra.mxu0 %v1392
        %1410 = vmatprep.subr.bf16.mxu0 0
        %1411 = vmatpush1.bf16.msra.mxu0 %v1393
        %1412 = vmatprep.subr.bf16.mxu0 0
        %1413 = vmatpush1.bf16.msra.mxu0 %v1394
        %1414 = vmatprep.subr.bf16.mxu0 0
        %1415 = vmatpush1.bf16.msra.mxu0 %v1395
        %1416 = vmatprep.subr.bf16.mxu0 0
        %1417 = vmatpush1.bf16.msra.mxu0 %v1396
        %1418 = vmatprep.subr.bf16.mxu0 0
        %1419 = vmatpush1.bf16.msra.mxu0 %v1397
        %1420 = vmatprep.subr.bf16.mxu0 0
        %1421 = vmatpush1.bf16.msra.mxu0 %v1398
        %1422 = vmatprep.subr.bf16.mxu0 0
        %1423 = vmatpush1.bf16.msra.mxu0 %v1399
        %1424 = vmatprep.subr.bf16.mxu0 0
        %1425 = vmatpush1.bf16.msra.mxu0 0
        %1426 = vmatprep.subr.bf16.mxu0 0
        %1427 = vmatpush1.bf16.msra.mxu0 0
        %1428 = vmatprep.subr.bf16.mxu0 0
        %1429 = vmatpush1.bf16.msra.mxu0 0
        %1430 = vmatprep.subr.bf16.mxu0 0
        %1431 = vmatpush1.bf16.msra.mxu0 0
        %1432 = vmatprep.subr.bf16.mxu0 0
        %1433 = vmatpush1.bf16.msra.mxu0 0
        %1434 = vmatprep.subr.bf16.mxu0 0
        %1435 = vmatpush1.bf16.msra.mxu0 0
        %1436 = vmatprep.subr.bf16.mxu0 0
        %1437 = vmatpush1.bf16.msra.mxu0 0
        %1438 = vmatprep.subr.bf16.mxu0 0
        %1439 = vmatpush1.bf16.msra.mxu0 0
        %1440 = vmatprep.mubr.bf16.mxu0 0
        %1441 = vmatmul.mubr.bf16.gmra.mrb[0].mxu0 %v1340
        %v1442 = vpop.f32.mrb[0].mxu0
        %v1443 = vadd.f32 0.0, %v1442
        %v1444 = vpop.f32.mrb[0].mxu0
        %v1445 = vpop.f32.mrb[0].mxu0
        %v1446 = vpop.f32.mrb[0].mxu0
        %1447 = vdwg.mxu0
        %v1448 = vadd.f32 %v1342, %v1443
        %s1449 = scalar_lea.vmem %s9, 2
        %v1450 = vld [vmem:[%s1449] sm:$0x1]
        %v1452 = vlaneseq
        %v1453 = vshrl.u32 %v1452, 7
        %v1454 = vsub.s32 0, %v1453
        %v1455 = vrot.slane %v1450, %v1454
        %v1457 = vadd.f32 %v1448, %v1455
        %s1458 = scalar_lea.vmem %s10, 192
        %v1459 = vld [vmem:[%s1458] sm:$0xf]
        %v1460 = vld [vmem:[%s1458 + $0x4] sm:$0xf]
        %v1461 = vld [vmem:[%s1458 + $0x8] sm:$0xf]
        %v1462 = vld [vmem:[%s1458 + $0xc] sm:$0xf]
        %v1463 = vld [vmem:[%s1458 + $0x10] sm:$0xf]
        %v1464 = vld [vmem:[%s1458 + $0x14] sm:$0xf]
        %v1465 = vld [vmem:[%s1458 + $0x18] sm:$0xf]
        %v1466 = vld [vmem:[%s1458 + $0x1c] sm:$0xf]
        %v1467 = vld [vmem:[%s1458 + $0x20] sm:$0xf]
        %v1468 = vld [vmem:[%s1458 + $0x24] sm:$0xf]
        %v1469 = vld [vmem:[%s1458 + $0x28] sm:$0xf]
        %v1470 = vld [vmem:[%s1458 + $0x2c] sm:$0xf]
        %v1471 = vld [vmem:[%s1458 + $0x30] sm:$0xf]
        %v1472 = vld [vmem:[%s1458 + $0x34] sm:$0xf]
        %v1473 = vld [vmem:[%s1458 + $0x38] sm:$0xf]
        %v1474 = vld [vmem:[%s1458 + $0x3c] sm:$0xf]
        %s1475 = scalar_lea.vmem %s11, 3
        %v1476 = vld [vmem:[%s1475] sm:$0x1]
        %v1478 = vlaneseq
        %v1479 = vshrl.u32 %v1478, 7
        %v1480 = vsub.s32 0, %v1479
        %v1481 = vrot.slane %v1476, %v1480
        %v1499 = vunpack.c.l.b16 %v1459
        %v1500 = vunpack.c.l.b16 %v1460
        %v1501 = vunpack.c.l.b16 %v1461
        %v1502 = vunpack.c.l.b16 %v1462
        %v1503 = vunpack.c.l.b16 %v1463
        %v1504 = vunpack.c.l.b16 %v1464
        %v1505 = vunpack.c.l.b16 %v1465
        %v1506 = vunpack.c.l.b16 %v1466
        %v1507 = vunpack.c.l.b16 %v1467
        %v1508 = vunpack.c.l.b16 %v1468
        %v1509 = vunpack.c.l.b16 %v1469
        %v1510 = vunpack.c.l.b16 %v1470
        %v1511 = vunpack.c.l.b16 %v1471
        %v1512 = vunpack.c.l.b16 %v1472
        %v1513 = vunpack.c.l.b16 %v1473
        %v1514 = vunpack.c.l.b16 %v1474
        %v1515 = vpack.c.b16 %v1500, %v1499
        %v1516 = vpack.c.b16 %v1502, %v1501
        %v1517 = vpack.c.b16 %v1504, %v1503
        %v1518 = vpack.c.b16 %v1506, %v1505
        %v1519 = vpack.c.b16 %v1508, %v1507
        %v1520 = vpack.c.b16 %v1510, %v1509
        %v1521 = vpack.c.b16 %v1512, %v1511
        %v1522 = vpack.c.b16 %v1514, %v1513
        %1531 = vmatprep.subr.bf16.mxu0 0
        %1532 = vmatpush1.bf16.msra.mxu0 %v1515
        %1533 = vmatprep.subr.bf16.mxu0 0
        %1534 = vmatpush1.bf16.msra.mxu0 %v1516
        %1535 = vmatprep.subr.bf16.mxu0 0
        %1536 = vmatpush1.bf16.msra.mxu0 %v1517
        %1537 = vmatprep.subr.bf16.mxu0 0
        %1538 = vmatpush1.bf16.msra.mxu0 %v1518
        %1539 = vmatprep.subr.bf16.mxu0 0
        %1540 = vmatpush1.bf16.msra.mxu0 %v1519
        %1541 = vmatprep.subr.bf16.mxu0 0
        %1542 = vmatpush1.bf16.msra.mxu0 %v1520
        %1543 = vmatprep.subr.bf16.mxu0 0
        %1544 = vmatpush1.bf16.msra.mxu0 %v1521
        %1545 = vmatprep.subr.bf16.mxu0 0
        %1546 = vmatpush1.bf16.msra.mxu0 %v1522
        %1547 = vmatprep.subr.bf16.mxu0 0
        %1548 = vmatpush1.bf16.msra.mxu0 0
        %1549 = vmatprep.subr.bf16.mxu0 0
        %1550 = vmatpush1.bf16.msra.mxu0 0
        %1551 = vmatprep.subr.bf16.mxu0 0
        %1552 = vmatpush1.bf16.msra.mxu0 0
        %1553 = vmatprep.subr.bf16.mxu0 0
        %1554 = vmatpush1.bf16.msra.mxu0 0
        %1555 = vmatprep.subr.bf16.mxu0 0
        %1556 = vmatpush1.bf16.msra.mxu0 0
        %1557 = vmatprep.subr.bf16.mxu0 0
        %1558 = vmatpush1.bf16.msra.mxu0 0
        %1559 = vmatprep.subr.bf16.mxu0 0
        %1560 = vmatpush1.bf16.msra.mxu0 0
        %1561 = vmatprep.subr.bf16.mxu0 0
        %1562 = vmatpush1.bf16.msra.mxu0 0
        %1563 = vmatprep.mubr.bf16.mxu0 0
        %1564 = vmatmul.mubr.bf16.gmra.mrb[0].mxu0 %v1340
        %v1565 = vpop.f32.mrb[0].mxu0
        %v1566 = vadd.f32 %v1481, %v1565
        %v1567 = vpop.f32.mrb[0].mxu0
        %v1568 = vpop.f32.mrb[0].mxu0
        %v1569 = vpop.f32.mrb[0].mxu0
        %1570 = vdwg.mxu0
        %v1571 = vtanh.pop %v1566
        %v1572 = vmul.f32 %v903, %v1571
        %v1573 = vadd.f32 %v1457, %v1572
        %v1574 = vpack.c.bf16 %v1573, %v1573
        %v1575 = vmul.f32 %v908, %v1339
        %v1576 = vadd.f32 %v1575, 0.0
        %v1577 = vmul.f32 %v912, %v1573
        %v1578 = vadd.f32 %v1576, %v1577
        %v1579 = vld [vmem:[%s1343 + $0x40] sm:$0xf]
        %v1580 = vld [vmem:[%s1343 + $0x44] sm:$0xf]
        %v1581 = vld [vmem:[%s1343 + $0x48] sm:$0xf]
        %v1582 = vld [vmem:[%s1343 + $0x4c] sm:$0xf]
        %v1583 = vld [vmem:[%s1343 + $0x50] sm:$0xf]
        %v1584 = vld [vmem:[%s1343 + $0x54] sm:$0xf]
        %v1585 = vld [vmem:[%s1343 + $0x58] sm:$0xf]
        %v1586 = vld [vmem:[%s1343 + $0x5c] sm:$0xf]
        %v1587 = vld [vmem:[%s1343 + $0x60] sm:$0xf]
        %v1588 = vld [vmem:[%s1343 + $0x64] sm:$0xf]
        %v1589 = vld [vmem:[%s1343 + $0x68] sm:$0xf]
        %v1590 = vld [vmem:[%s1343 + $0x6c] sm:$0xf]
        %v1591 = vld [vmem:[%s1343 + $0x70] sm:$0xf]
        %v1592 = vld [vmem:[%s1343 + $0x74] sm:$0xf]
        %v1593 = vld [vmem:[%s1343 + $0x78] sm:$0xf]
        %v1594 = vld [vmem:[%s1343 + $0x7c] sm:$0xf]
        %v1595 = vld [vmem:[%s1343 + $0x80] sm:$0xf]
        %v1596 = vld [vmem:[%s1343 + $0x84] sm:$0xf]
        %v1597 = vld [vmem:[%s1343 + $0x88] sm:$0xf]
        %v1598 = vld [vmem:[%s1343 + $0x8c] sm:$0xf]
        %v1599 = vld [vmem:[%s1343 + $0x90] sm:$0xf]
        %v1600 = vld [vmem:[%s1343 + $0x94] sm:$0xf]
        %v1601 = vld [vmem:[%s1343 + $0x98] sm:$0xf]
        %v1602 = vld [vmem:[%s1343 + $0x9c] sm:$0xf]
        %v1603 = vld [vmem:[%s1343 + $0xa0] sm:$0xf]
        %v1604 = vld [vmem:[%s1343 + $0xa4] sm:$0xf]
        %v1605 = vld [vmem:[%s1343 + $0xa8] sm:$0xf]
        %v1606 = vld [vmem:[%s1343 + $0xac] sm:$0xf]
        %v1607 = vld [vmem:[%s1343 + $0xb0] sm:$0xf]
        %v1608 = vld [vmem:[%s1343 + $0xb4] sm:$0xf]
        %v1609 = vld [vmem:[%s1343 + $0xb8] sm:$0xf]
        %v1610 = vld [vmem:[%s1343 + $0xbc] sm:$0xf]
        %v1643 = vunpack.c.l.b16 %v1579
        %v1644 = vunpack.c.l.b16 %v1580
        %v1645 = vunpack.c.l.b16 %v1581
        %v1646 = vunpack.c.l.b16 %v1582
        %v1647 = vunpack.c.l.b16 %v1583
        %v1648 = vunpack.c.l.b16 %v1584
        %v1649 = vunpack.c.l.b16 %v1585
        %v1650 = vunpack.c.l.b16 %v1586
        %v1651 = vunpack.c.l.b16 %v1587
        %v1652 = vunpack.c.l.b16 %v1588
        %v1653 = vunpack.c.l.b16 %v1589
        %v1654 = vunpack.c.l.b16 %v1590
        %v1655 = vunpack.c.l.b16 %v1591
        %v1656 = vunpack.c.l.b16 %v1592
        %v1657 = vunpack.c.l.b16 %v1593
        %v1658 = vunpack.c.l.b16 %v1594
        %v1659 = vunpack.c.l.b16 %v1595
        %v1660 = vunpack.c.l.b16 %v1596
        %v1661 = vunpack.c.l.b16 %v1597
        %v1662 = vunpack.c.l.b16 %v1598
        %v1663 = vunpack.c.l.b16 %v1599
        %v1664 = vunpack.c.l.b16 %v1600
        %v1665 = vunpack.c.l.b16 %v1601
        %v1666 = vunpack.c.l.b16 %v1602
        %v1667 = vunpack.c.l.b16 %v1603
        %v1668 = vunpack.c.l.b16 %v1604
        %v1669 = vunpack.c.l.b16 %v1605
        %v1670 = vunpack.c.l.b16 %v1606
        %v1671 = vunpack.c.l.b16 %v1607
        %v1672 = vunpack.c.l.b16 %v1608
        %v1673 = vunpack.c.l.b16 %v1609
        %v1674 = vunpack.c.l.b16 %v1610
        %v1675 = vpack.c.b16 %v1644, %v1643
        %v1676 = vpack.c.b16 %v1646, %v1645
        %v1677 = vpack.c.b16 %v1648, %v1647
        %v1678 = vpack.c.b16 %v1650, %v1649
        %v1679 = vpack.c.b16 %v1652, %v1651
        %v1680 = vpack.c.b16 %v1654, %v1653
        %v1681 = vpack.c.b16 %v1656, %v1655
        %v1682 = vpack.c.b16 %v1658, %v1657
        %v1683 = vpack.c.b16 %v1660, %v1659
        %v1684 = vpack.c.b16 %v1662, %v1661
        %v1685 = vpack.c.b16 %v1664, %v1663
        %v1686 = vpack.c.b16 %v1666, %v1665
        %v1687 = vpack.c.b16 %v1668, %v1667
        %v1688 = vpack.c.b16 %v1670, %v1669
        %v1689 = vpack.c.b16 %v1672, %v1671
        %v1690 = vpack.c.b16 %v1674, %v1673
        %1707 = vmatprep.subr.bf16.mxu0 0
        %1708 = vmatpush1.bf16.msra.mxu0 %v1675
        %1709 = vmatprep.subr.bf16.mxu0 0
        %1710 = vmatpush1.bf16.msra.mxu0 %v1676
        %1711 = vmatprep.subr.bf16.mxu0 0
        %1712 = vmatpush1.bf16.msra.mxu0 %v1677
        %1713 = vmatprep.subr.bf16.mxu0 0
        %1714 = vmatpush1.bf16.msra.mxu0 %v1678
        %1715 = vmatprep.subr.bf16.mxu0 0
        %1716 = vmatpush1.bf16.msra.mxu0 %v1679
        %1717 = vmatprep.subr.bf16.mxu0 0
        %1718 = vmatpush1.bf16.msra.mxu0 %v1680
        %1719 = vmatprep.subr.bf16.mxu0 0
        %1720 = vmatpush1.bf16.msra.mxu0 %v1681
        %1721 = vmatprep.subr.bf16.mxu0 0
        %1722 = vmatpush1.bf16.msra.mxu0 %v1682
        %1723 = vmatprep.subr.bf16.mxu0 0
        %1724 = vmatpush1.bf16.msra.mxu0 %v1683
        %1725 = vmatprep.subr.bf16.mxu0 0
        %1726 = vmatpush1.bf16.msra.mxu0 %v1684
        %1727 = vmatprep.subr.bf16.mxu0 0
        %1728 = vmatpush1.bf16.msra.mxu0 %v1685
        %1729 = vmatprep.subr.bf16.mxu0 0
        %1730 = vmatpush1.bf16.msra.mxu0 %v1686
        %1731 = vmatprep.subr.bf16.mxu0 0
        %1732 = vmatpush1.bf16.msra.mxu0 %v1687
        %1733 = vmatprep.subr.bf16.mxu0 0
        %1734 = vmatpush1.bf16.msra.mxu0 %v1688
        %1735 = vmatprep.subr.bf16.mxu0 0
        %1736 = vmatpush1.bf16.msra.mxu0 %v1689
        %1737 = vmatprep.subr.bf16.mxu0 0
        %1738 = vmatpush1.bf16.msra.mxu0 %v1690
        %1739 = vmatprep.mubr.bf16.mxu0 %v1574
        %1740 = vmatmul.mubr.bf16.gmra.mrb[0].mxu0 %v1340
        %v1741 = vpop.f32.mrb[0].mxu0
        %v1742 = vadd.f32 0.0, %v1741
        %v1743 = vpop.f32.mrb[0].mxu0
        %v1744 = vpop.f32.mrb[0].mxu0
        %v1745 = vpop.f32.mrb[0].mxu0
        %1746 = vdwg.mxu0
        %v1747 = vadd.f32 %v1578, %v1742
        %s1748 = scalar_lea.vmem %s9, 3
        %v1749 = vld [vmem:[%s1748] sm:$0x1]
        %v1751 = vlaneseq
        %v1752 = vshrl.u32 %v1751, 7
        %v1753 = vsub.s32 0, %v1752
        %v1754 = vrot.slane %v1749, %v1753
        %v1756 = vadd.f32 %v1747, %v1754
        %s1757 = scalar_lea.vmem %s10, 256
        %v1758 = vld [vmem:[%s1757] sm:$0xf]
        %v1759 = vld [vmem:[%s1757 + $0x4] sm:$0xf]
        %v1760 = vld [vmem:[%s1757 + $0x8] sm:$0xf]
        %v1761 = vld [vmem:[%s1757 + $0xc] sm:$0xf]
        %v1762 = vld [vmem:[%s1757 + $0x10] sm:$0xf]
        %v1763 = vld [vmem:[%s1757 + $0x14] sm:$0xf]
        %v1764 = vld [vmem:[%s1757 + $0x18] sm:$0xf]
        %v1765 = vld [vmem:[%s1757 + $0x1c] sm:$0xf]
        %v1766 = vld [vmem:[%s1757 + $0x20] sm:$0xf]
        %v1767 = vld [vmem:[%s1757 + $0x24] sm:$0xf]
        %v1768 = vld [vmem:[%s1757 + $0x28] sm:$0xf]
        %v1769 = vld [vmem:[%s1757 + $0x2c] sm:$0xf]
        %v1770 = vld [vmem:[%s1757 + $0x30] sm:$0xf]
        %v1771 = vld [vmem:[%s1757 + $0x34] sm:$0xf]
        %v1772 = vld [vmem:[%s1757 + $0x38] sm:$0xf]
        %v1773 = vld [vmem:[%s1757 + $0x3c] sm:$0xf]
        %s1774 = scalar_lea.vmem %s11, 4
        %v1775 = vld [vmem:[%s1774] sm:$0x1]
        %v1777 = vlaneseq
        %v1778 = vshrl.u32 %v1777, 7
        %v1779 = vsub.s32 0, %v1778
        %v1780 = vrot.slane %v1775, %v1779
        %v1798 = vunpack.c.l.b16 %v1758
        %v1799 = vunpack.c.l.b16 %v1759
        %v1800 = vunpack.c.l.b16 %v1760
        %v1801 = vunpack.c.l.b16 %v1761
        %v1802 = vunpack.c.l.b16 %v1762
        %v1803 = vunpack.c.l.b16 %v1763
        %v1804 = vunpack.c.l.b16 %v1764
        %v1805 = vunpack.c.l.b16 %v1765
        %v1806 = vunpack.c.l.b16 %v1766
        %v1807 = vunpack.c.l.b16 %v1767
        %v1808 = vunpack.c.l.b16 %v1768
        %v1809 = vunpack.c.l.b16 %v1769
        %v1810 = vunpack.c.l.b16 %v1770
        %v1811 = vunpack.c.l.b16 %v1771
        %v1812 = vunpack.c.l.b16 %v1772
        %v1813 = vunpack.c.l.b16 %v1773
        %v1814 = vpack.c.b16 %v1799, %v1798
        %v1815 = vpack.c.b16 %v1801, %v1800
        %v1816 = vpack.c.b16 %v1803, %v1802
        %v1817 = vpack.c.b16 %v1805, %v1804
        %v1818 = vpack.c.b16 %v1807, %v1806
        %v1819 = vpack.c.b16 %v1809, %v1808
        %v1820 = vpack.c.b16 %v1811, %v1810
        %v1821 = vpack.c.b16 %v1813, %v1812
        %1830 = vmatprep.subr.bf16.mxu0 0
        %1831 = vmatpush1.bf16.msra.mxu0 %v1814
        %1832 = vmatprep.subr.bf16.mxu0 0
        %1833 = vmatpush1.bf16.msra.mxu0 %v1815
        %1834 = vmatprep.subr.bf16.mxu0 0
        %1835 = vmatpush1.bf16.msra.mxu0 %v1816
        %1836 = vmatprep.subr.bf16.mxu0 0
        %1837 = vmatpush1.bf16.msra.mxu0 %v1817
        %1838 = vmatprep.subr.bf16.mxu0 0
        %1839 = vmatpush1.bf16.msra.mxu0 %v1818
        %1840 = vmatprep.subr.bf16.mxu0 0
        %1841 = vmatpush1.bf16.msra.mxu0 %v1819
        %1842 = vmatprep.subr.bf16.mxu0 0
        %1843 = vmatpush1.bf16.msra.mxu0 %v1820
        %1844 = vmatprep.subr.bf16.mxu0 0
        %1845 = vmatpush1.bf16.msra.mxu0 %v1821
        %1846 = vmatprep.subr.bf16.mxu0 0
        %1847 = vmatpush1.bf16.msra.mxu0 0
        %1848 = vmatprep.subr.bf16.mxu0 0
        %1849 = vmatpush1.bf16.msra.mxu0 0
        %1850 = vmatprep.subr.bf16.mxu0 0
        %1851 = vmatpush1.bf16.msra.mxu0 0
        %1852 = vmatprep.subr.bf16.mxu0 0
        %1853 = vmatpush1.bf16.msra.mxu0 0
        %1854 = vmatprep.subr.bf16.mxu0 0
        %1855 = vmatpush1.bf16.msra.mxu0 0
        %1856 = vmatprep.subr.bf16.mxu0 0
        %1857 = vmatpush1.bf16.msra.mxu0 0
        %1858 = vmatprep.subr.bf16.mxu0 0
        %1859 = vmatpush1.bf16.msra.mxu0 0
        %1860 = vmatprep.subr.bf16.mxu0 0
        %1861 = vmatpush1.bf16.msra.mxu0 0
        %1862 = vmatprep.mubr.bf16.mxu0 0
        %1863 = vmatmul.mubr.bf16.gmra.mrb[0].mxu0 %v1340
        %v1864 = vpop.f32.mrb[0].mxu0
        %v1865 = vadd.f32 %v1780, %v1864
        %v1866 = vpop.f32.mrb[0].mxu0
        %v1867 = vpop.f32.mrb[0].mxu0
        %v1868 = vpop.f32.mrb[0].mxu0
        %1869 = vdwg.mxu0
        %v1870 = vtanh.pop %v1865
        %v1871 = vmul.f32 %v1208, %v1870
        %v1872 = vadd.f32 %v1756, %v1871
        %s1873 = scalar_lea.vmem %s10, 320
        %v1874 = vld [vmem:[%s1873] sm:$0xf]
        %v1875 = vld [vmem:[%s1873 + $0x4] sm:$0xf]
        %v1876 = vld [vmem:[%s1873 + $0x8] sm:$0xf]
        %v1877 = vld [vmem:[%s1873 + $0xc] sm:$0xf]
        %v1878 = vld [vmem:[%s1873 + $0x10] sm:$0xf]
        %v1879 = vld [vmem:[%s1873 + $0x14] sm:$0xf]
        %v1880 = vld [vmem:[%s1873 + $0x18] sm:$0xf]
        %v1881 = vld [vmem:[%s1873 + $0x1c] sm:$0xf]
        %v1882 = vld [vmem:[%s1873 + $0x20] sm:$0xf]
        %v1883 = vld [vmem:[%s1873 + $0x24] sm:$0xf]
        %v1884 = vld [vmem:[%s1873 + $0x28] sm:$0xf]
        %v1885 = vld [vmem:[%s1873 + $0x2c] sm:$0xf]
        %v1886 = vld [vmem:[%s1873 + $0x30] sm:$0xf]
        %v1887 = vld [vmem:[%s1873 + $0x34] sm:$0xf]
        %v1888 = vld [vmem:[%s1873 + $0x38] sm:$0xf]
        %v1889 = vld [vmem:[%s1873 + $0x3c] sm:$0xf]
        %s1890 = scalar_lea.vmem %s11, 5
        %v1891 = vld [vmem:[%s1890] sm:$0x1]
        %v1893 = vlaneseq
        %v1894 = vshrl.u32 %v1893, 7
        %v1895 = vsub.s32 0, %v1894
        %v1896 = vrot.slane %v1891, %v1895
        %v1914 = vunpack.c.l.b16 %v1874
        %v1915 = vunpack.c.l.b16 %v1875
        %v1916 = vunpack.c.l.b16 %v1876
        %v1917 = vunpack.c.l.b16 %v1877
        %v1918 = vunpack.c.l.b16 %v1878
        %v1919 = vunpack.c.l.b16 %v1879
        %v1920 = vunpack.c.l.b16 %v1880
        %v1921 = vunpack.c.l.b16 %v1881
        %v1922 = vunpack.c.l.b16 %v1882
        %v1923 = vunpack.c.l.b16 %v1883
        %v1924 = vunpack.c.l.b16 %v1884
        %v1925 = vunpack.c.l.b16 %v1885
        %v1926 = vunpack.c.l.b16 %v1886
        %v1927 = vunpack.c.l.b16 %v1887
        %v1928 = vunpack.c.l.b16 %v1888
        %v1929 = vunpack.c.l.b16 %v1889
        %v1930 = vpack.c.b16 %v1915, %v1914
        %v1931 = vpack.c.b16 %v1917, %v1916
        %v1932 = vpack.c.b16 %v1919, %v1918
        %v1933 = vpack.c.b16 %v1921, %v1920
        %v1934 = vpack.c.b16 %v1923, %v1922
        %v1935 = vpack.c.b16 %v1925, %v1924
        %v1936 = vpack.c.b16 %v1927, %v1926
        %v1937 = vpack.c.b16 %v1929, %v1928
        %1946 = vmatprep.subr.bf16.mxu0 0
        %1947 = vmatpush1.bf16.msra.mxu0 %v1930
        %1948 = vmatprep.subr.bf16.mxu0 0
        %1949 = vmatpush1.bf16.msra.mxu0 %v1931
        %1950 = vmatprep.subr.bf16.mxu0 0
        %1951 = vmatpush1.bf16.msra.mxu0 %v1932
        %1952 = vmatprep.subr.bf16.mxu0 0
        %1953 = vmatpush1.bf16.msra.mxu0 %v1933
        %1954 = vmatprep.subr.bf16.mxu0 0
        %1955 = vmatpush1.bf16.msra.mxu0 %v1934
        %1956 = vmatprep.subr.bf16.mxu0 0
        %1957 = vmatpush1.bf16.msra.mxu0 %v1935
        %1958 = vmatprep.subr.bf16.mxu0 0
        %1959 = vmatpush1.bf16.msra.mxu0 %v1936
        %1960 = vmatprep.subr.bf16.mxu0 0
        %1961 = vmatpush1.bf16.msra.mxu0 %v1937
        %1962 = vmatprep.subr.bf16.mxu0 0
        %1963 = vmatpush1.bf16.msra.mxu0 0
        %1964 = vmatprep.subr.bf16.mxu0 0
        %1965 = vmatpush1.bf16.msra.mxu0 0
        %1966 = vmatprep.subr.bf16.mxu0 0
        %1967 = vmatpush1.bf16.msra.mxu0 0
        %1968 = vmatprep.subr.bf16.mxu0 0
        %1969 = vmatpush1.bf16.msra.mxu0 0
        %1970 = vmatprep.subr.bf16.mxu0 0
        %1971 = vmatpush1.bf16.msra.mxu0 0
        %1972 = vmatprep.subr.bf16.mxu0 0
        %1973 = vmatpush1.bf16.msra.mxu0 0
        %1974 = vmatprep.subr.bf16.mxu0 0
        %1975 = vmatpush1.bf16.msra.mxu0 0
        %1976 = vmatprep.subr.bf16.mxu0 0
        %1977 = vmatpush1.bf16.msra.mxu0 0
        %1978 = vmatprep.mubr.bf16.mxu0 0
        %1979 = vmatmul.mubr.bf16.gmra.mrb[0].mxu0 %v1574
        %v1980 = vpop.f32.mrb[0].mxu0
        %v1981 = vadd.f32 %v1896, %v1980
        %v1982 = vpop.f32.mrb[0].mxu0
        %v1983 = vpop.f32.mrb[0].mxu0
        %v1984 = vpop.f32.mrb[0].mxu0
        %1985 = vdwg.mxu0
        %v1986 = vtanh.pop %v1981
        %v1987 = vmul.f32 %v1326, %v1986
        %v1988 = vadd.f32 %v1872, %v1987
        %v1989 = vadd.f32 %v1573, %v1988
        %v1990 = vmul.f32 %v1989, 0.5
        %s1991 = sld [smem:[#allocation3]]
        %v1992 = vstv %s1991
        %v1993 = vmul.f32 %v1990, %v1992
        %v1994 = vpack.c.bf16 %v1993, %v1993
        %v1995 = vld [vmem:[%s12] sm:$0xf]
        %v1996 = vld [vmem:[%s12 + $0x4] sm:$0xf]
        %v1997 = vld [vmem:[%s12 + $0x8] sm:$0xf]
        %v1998 = vld [vmem:[%s12 + $0xc] sm:$0xf]
        %v1999 = vld [vmem:[%s12 + $0x10] sm:$0xf]
        %v2000 = vld [vmem:[%s12 + $0x14] sm:$0xf]
        %v2001 = vld [vmem:[%s12 + $0x18] sm:$0xf]
        %v2002 = vld [vmem:[%s12 + $0x1c] sm:$0xf]
        %v2003 = vld [vmem:[%s12 + $0x20] sm:$0xf]
        %v2004 = vld [vmem:[%s12 + $0x24] sm:$0xf]
        %v2005 = vld [vmem:[%s12 + $0x28] sm:$0xf]
        %v2006 = vld [vmem:[%s12 + $0x2c] sm:$0xf]
        %v2007 = vld [vmem:[%s12 + $0x30] sm:$0xf]
        %v2008 = vld [vmem:[%s12 + $0x34] sm:$0xf]
        %v2009 = vld [vmem:[%s12 + $0x38] sm:$0xf]
        %v2010 = vld [vmem:[%s12 + $0x3c] sm:$0xf]
        %v2011 = vld [vmem:[%s13] sm:$0x1]
        %v2013 = vlaneseq
        %v2014 = vshrl.u32 %v2013, 7
        %v2015 = vsub.s32 0, %v2014
        %v2016 = vrot.slane %v2011, %v2015
        %v2034 = vunpack.c.l.b16 %v1995
        %v2035 = vunpack.c.l.b16 %v1996
        %v2036 = vunpack.c.l.b16 %v1997
        %v2037 = vunpack.c.l.b16 %v1998
        %v2038 = vunpack.c.l.b16 %v1999
        %v2039 = vunpack.c.l.b16 %v2000
        %v2040 = vunpack.c.l.b16 %v2001
        %v2041 = vunpack.c.l.b16 %v2002
        %v2042 = vunpack.c.l.b16 %v2003
        %v2043 = vunpack.c.l.b16 %v2004
        %v2044 = vunpack.c.l.b16 %v2005
        %v2045 = vunpack.c.l.b16 %v2006
        %v2046 = vunpack.c.l.b16 %v2007
        %v2047 = vunpack.c.l.b16 %v2008
        %v2048 = vunpack.c.l.b16 %v2009
        %v2049 = vunpack.c.l.b16 %v2010
        %v2050 = vpack.c.b16 %v2035, %v2034
        %v2051 = vpack.c.b16 %v2037, %v2036
        %v2052 = vpack.c.b16 %v2039, %v2038
        %v2053 = vpack.c.b16 %v2041, %v2040
        %v2054 = vpack.c.b16 %v2043, %v2042
        %v2055 = vpack.c.b16 %v2045, %v2044
        %v2056 = vpack.c.b16 %v2047, %v2046
        %v2057 = vpack.c.b16 %v2049, %v2048
        %2066 = vmatprep.subr.bf16.mxu0 0
        %2067 = vmatpush1.bf16.msra.mxu0 %v2050
        %2068 = vmatprep.subr.bf16.mxu0 0
        %2069 = vmatpush1.bf16.msra.mxu0 %v2051
        %2070 = vmatprep.subr.bf16.mxu0 0
        %2071 = vmatpush1.bf16.msra.mxu0 %v2052
        %2072 = vmatprep.subr.bf16.mxu0 0
        %2073 = vmatpush1.bf16.msra.mxu0 %v2053
        %2074 = vmatprep.subr.bf16.mxu0 0
        %2075 = vmatpush1.bf16.msra.mxu0 %v2054
        %2076 = vmatprep.subr.bf16.mxu0 0
        %2077 = vmatpush1.bf16.msra.mxu0 %v2055
        %2078 = vmatprep.subr.bf16.mxu0 0
        %2079 = vmatpush1.bf16.msra.mxu0 %v2056
        %2080 = vmatprep.subr.bf16.mxu0 0
        %2081 = vmatpush1.bf16.msra.mxu0 %v2057
        %2082 = vmatprep.subr.bf16.mxu0 0
        %2083 = vmatpush1.bf16.msra.mxu0 0
        %2084 = vmatprep.subr.bf16.mxu0 0
        %2085 = vmatpush1.bf16.msra.mxu0 0
        %2086 = vmatprep.subr.bf16.mxu0 0
        %2087 = vmatpush1.bf16.msra.mxu0 0
        %2088 = vmatprep.subr.bf16.mxu0 0
        %2089 = vmatpush1.bf16.msra.mxu0 0
        %2090 = vmatprep.subr.bf16.mxu0 0
        %2091 = vmatpush1.bf16.msra.mxu0 0
        %2092 = vmatprep.subr.bf16.mxu0 0
        %2093 = vmatpush1.bf16.msra.mxu0 0
        %2094 = vmatprep.subr.bf16.mxu0 0
        %2095 = vmatpush1.bf16.msra.mxu0 0
        %2096 = vmatprep.subr.bf16.mxu0 0
        %2097 = vmatpush1.bf16.msra.mxu0 0
        %2098 = vmatprep.mubr.bf16.mxu0 0
        %2099 = vmatmul.mubr.bf16.gmra.mrb[0].mxu0 %v1994
        %v2100 = vpop.f32.mrb[0].mxu0
        %v2101 = vadd.f32 %v2016, %v2100
        %v2102 = vpop.f32.mrb[0].mxu0
        %v2103 = vpop.f32.mrb[0].mxu0
        %v2104 = vpop.f32.mrb[0].mxu0
        %2105 = vdwg.mxu0
        %v2106 = vld [vmem:[%s14] sm:$0xf]
        %v2107 = vld [vmem:[%s14 + $0x4] sm:$0xf]
        %v2108 = vld [vmem:[%s14 + $0x8] sm:$0xf]
        %v2109 = vld [vmem:[%s14 + $0xc] sm:$0xf]
        %v2110 = vld [vmem:[%s14 + $0x10] sm:$0xf]
        %v2111 = vld [vmem:[%s14 + $0x14] sm:$0xf]
        %v2112 = vld [vmem:[%s14 + $0x18] sm:$0xf]
        %v2113 = vld [vmem:[%s14 + $0x1c] sm:$0xf]
        %v2114 = vld [vmem:[%s14 + $0x20] sm:$0xf]
        %v2115 = vld [vmem:[%s14 + $0x24] sm:$0xf]
        %v2116 = vld [vmem:[%s14 + $0x28] sm:$0xf]
        %v2117 = vld [vmem:[%s14 + $0x2c] sm:$0xf]
        %v2118 = vld [vmem:[%s14 + $0x30] sm:$0xf]
        %v2119 = vld [vmem:[%s14 + $0x34] sm:$0xf]
        %v2120 = vld [vmem:[%s14 + $0x38] sm:$0xf]
        %v2121 = vld [vmem:[%s14 + $0x3c] sm:$0xf]
        %v2122 = vld [vmem:[%s15] sm:$0x1]
        %v2124 = vlaneseq
        %v2125 = vshrl.u32 %v2124, 7
        %v2126 = vsub.s32 0, %v2125
        %v2127 = vrot.slane %v2122, %v2126
        %v2145 = vunpack.c.l.b16 %v2106
        %v2146 = vunpack.c.l.b16 %v2107
        %v2147 = vunpack.c.l.b16 %v2108
        %v2148 = vunpack.c.l.b16 %v2109
        %v2149 = vunpack.c.l.b16 %v2110
        %v2150 = vunpack.c.l.b16 %v2111
        %v2151 = vunpack.c.l.b16 %v2112
        %v2152 = vunpack.c.l.b16 %v2113
        %v2153 = vunpack.c.l.b16 %v2114
        %v2154 = vunpack.c.l.b16 %v2115
        %v2155 = vunpack.c.l.b16 %v2116
        %v2156 = vunpack.c.l.b16 %v2117
        %v2157 = vunpack.c.l.b16 %v2118
        %v2158 = vunpack.c.l.b16 %v2119
        %v2159 = vunpack.c.l.b16 %v2120
        %v2160 = vunpack.c.l.b16 %v2121
        %v2161 = vpack.c.b16 %v2146, %v2145
        %v2162 = vpack.c.b16 %v2148, %v2147
        %v2163 = vpack.c.b16 %v2150, %v2149
        %v2164 = vpack.c.b16 %v2152, %v2151
        %v2165 = vpack.c.b16 %v2154, %v2153
        %v2166 = vpack.c.b16 %v2156, %v2155
        %v2167 = vpack.c.b16 %v2158, %v2157
        %v2168 = vpack.c.b16 %v2160, %v2159
        %2177 = vmatprep.subr.bf16.mxu0 0
        %2178 = vmatpush1.bf16.msra.mxu0 %v2161
        %2179 = vmatprep.subr.bf16.mxu0 0
        %2180 = vmatpush1.bf16.msra.mxu0 %v2162
        %2181 = vmatprep.subr.bf16.mxu0 0
        %2182 = vmatpush1.bf16.msra.mxu0 %v2163
        %2183 = vmatprep.subr.bf16.mxu0 0
        %2184 = vmatpush1.bf16.msra.mxu0 %v2164
        %2185 = vmatprep.subr.bf16.mxu0 0
        %2186 = vmatpush1.bf16.msra.mxu0 %v2165
        %2187 = vmatprep.subr.bf16.mxu0 0
        %2188 = vmatpush1.bf16.msra.mxu0 %v2166
        %2189 = vmatprep.subr.bf16.mxu0 0
        %2190 = vmatpush1.bf16.msra.mxu0 %v2167
        %2191 = vmatprep.subr.bf16.mxu0 0
        %2192 = vmatpush1.bf16.msra.mxu0 %v2168
        %2193 = vmatprep.subr.bf16.mxu0 0
        %2194 = vmatpush1.bf16.msra.mxu0 0
        %2195 = vmatprep.subr.bf16.mxu0 0
        %2196 = vmatpush1.bf16.msra.mxu0 0
        %2197 = vmatprep.subr.bf16.mxu0 0
        %2198 = vmatpush1.bf16.msra.mxu0 0
        %2199 = vmatprep.subr.bf16.mxu0 0
        %2200 = vmatpush1.bf16.msra.mxu0 0
        %2201 = vmatprep.subr.bf16.mxu0 0
        %2202 = vmatpush1.bf16.msra.mxu0 0
        %2203 = vmatprep.subr.bf16.mxu0 0
        %2204 = vmatpush1.bf16.msra.mxu0 0
        %2205 = vmatprep.subr.bf16.mxu0 0
        %2206 = vmatpush1.bf16.msra.mxu0 0
        %2207 = vmatprep.subr.bf16.mxu0 0
        %2208 = vmatpush1.bf16.msra.mxu0 0
        %2209 = vmatprep.mubr.bf16.mxu0 0
        %2210 = vmatmul.mubr.bf16.gmra.mrb[0].mxu0 %v1994
        %v2211 = vpop.f32.mrb[0].mxu0
        %v2212 = vadd.f32 %v2127, %v2211
        %v2213 = vpop.f32.mrb[0].mxu0
        %v2214 = vpop.f32.mrb[0].mxu0
        %v2215 = vpop.f32.mrb[0].mxu0
        %2216 = vdwg.mxu0
        %s2217 = sld [smem:[#allocation2]]
        %v2218 = vmax.f32 %v2212, 0.0
        %v2219 = vstv %s2217
        %v2220 = vmul.f32 %v2219, %v2218
        %v2221 = vadd.f32 %v2101, %v2220
        %vm2222 = vcmask 11264
        %2223 = vst.msk [vmem:[%s601] sm:$0xf] %vm2222, %v2221
        %p2224 = scmp.lt.s32.totalorder %s31, 1
        %s2225 = scalar_select %p2224, %s31, 1
        %s2226 = smul.addr %s2225, 4
        %s2227 = scalar_lea.vmem %s16, %s2226
        // Predicated region
        $region127: #{forward.3} parent=113 // pred_check
          %p2228 = pneg %p395
        $region128: #{forward.3} parent=113 // pred_check_branch
          %2230 = sbr.rel (%p2228) target = $region130
        $region129: #{forward.3} parent=113 // pred_region
          _
        $region130: #{forward.3} parent=113 // pred_fallthru
          _
      $region114: #{forward.3} parent=5 // pred_fallthru
        _
      %p2231 = scmp.le.s32.totalorder 2, %s26
      // Predicated region
      $region131: #{forward.3} parent=5 // pred_check
        %p2232 = pneg %p2231
      $region132: #{forward.3} parent=5 // pred_check_branch
        %2234 = sbr.rel (%p2232) target = $region134
      $region133: #{forward.3} parent=5 // pred_region
        %s2235 = ssub.s32 %s26, 2
        // Predicated region
        $region135: #{forward.3} parent=133 // pred_check
          %p2236 = pneg %p401
        $region136: #{forward.3} parent=133 // pred_check_branch
          %2238 = sbr.rel (%p2236) target = $region138
        $region137: #{forward.3} parent=133 // pred_region
          %p2239 = scmp.lt.s32.totalorder %s32, 1
          %s2240 = scalar_select %p2239, %s32, 1
          %s2241 = smul.addr %s2240, 4
          %s2242 = scalar_lea.vmem %s16, %s2241
        $region138: #{forward.3} parent=133 // pred_fallthru
          _
      $region134: #{forward.3} parent=5 // pred_fallthru
        _
    $region6: #{forward.3} parent=1 // loop_footer
      %s30 = sadd.s32 1, %s26
    $region7: #{forward.3} parent=1 // loop_footer_branch
      %25 = sbr.rel target = $region3
    $region8: #{forward.3} parent=1 // loop_exit
      _
    %2243 = vsyncpa [#allocation5], 1
    %s2244 = scalar_lea.sflag [#allocation5], 1
    %2245 = vsyncpa %s2244, 1
    %2246 = vsyncpa [#allocation7], 1

</llo_original>
